<compile_context>
chip_gen: v7x
topology: tpu7x:2x2x1
jax: 0.10.0
libtpu: 0.0.40
codegen_flags: <defaults>
</compile_context>

<pallas_src>
import functools
import math

import jax
import jax.numpy as jnp
from jax.experimental import pallas as pl
from jax.experimental.pallas import tpu as pltpu


def _permute(x, eq):
    """Layout-aware transpose: pltpu.einshape when available, else jnp.transpose."""
    src, dst = eq.split("->")
    if hasattr(pltpu, "einshape"):
        return pltpu.einshape(eq, x)
    return jnp.transpose(x, tuple(src.index(c) for c in dst))


# --------------------------------------------------------------------------- #
# Kernel 1: per-batch K/V projection into head-major, lane-dense layouts.
# --------------------------------------------------------------------------- #
def kv_project_kernel(x_ref, wk_ref, bk_ref, wv_ref, bv_ref, kt_ref, v_ref,
                      *, n_heads, d_k, d_v):
    H = n_heads
    mm = wk_ref.dtype
    x = x_ref[0].astype(mm)                                          # (S, D)
    S = x.shape[0]

    k2 = jnp.dot(x, wk_ref[...],
                 preferred_element_type=jnp.float32) + bk_ref[...]   # (S, H*d_k) f32
    # (S, H*d_k) -> (H, d_k, S): one 2-D transpose (bf16), then a free major split.
    kt_ref[0] = k2.astype(mm).T.reshape(H, d_k, S)

    v2 = jnp.dot(x, wv_ref[...],
                 preferred_element_type=jnp.float32) + bv_ref[...]   # (S, H*d_v) f32
    v_ref[0] = _permute(v2.astype(mm).reshape(S, H, d_v), "shd->hsd")  # (H, S, d_v)


# --------------------------------------------------------------------------- #
# Kernel 2: attention + residual + LN1 + FFN + residual + LN2 per query tile.
# --------------------------------------------------------------------------- #
def encoder_layer_kernel(
    x_ref, wq_ref, bq_ref, kt_ref, v_ref, wproj_ref, bproj_ref,
    g1_ref, be1_ref, w1_ref, c1_ref, w2_ref, c2_ref, g2_ref, be2_ref,
    out_ref, attn_ref, *, n_heads, d_k, d_v, eps,
):
    H = n_heads
    mm = wq_ref.dtype
    x = x_ref[0]                                                     # (TQ, D) f32
    tq, D = x.shape

    # ---- Q projection for this tile (bf16 MXU inputs, f32 accumulation) ------
    q2 = jnp.dot(x.astype(mm), wq_ref[...],
                 preferred_element_type=jnp.float32) + bq_ref[...]   # (TQ, H*d_k)
    qh = _permute(q2.astype(mm).reshape(tq, H, d_k), "qhd->hqd")     # (H, TQ, d_k)

    # ---- batched-over-heads scores vs pre-transposed K (H, d_k, S) -----------
    scores = jnp.einsum("hqd,hds->hqs", qh, kt_ref[0],
                        preferred_element_type=jnp.float32)          # (H, TQ, S)
    scores = scores * (1.0 / math.sqrt(d_k))                         # f32, post-matmul
    scores = scores - jnp.max(scores, axis=-1, keepdims=True)
    e = jnp.exp(scores)
    inv = pl.reciprocal(jnp.sum(e, axis=-1, keepdims=True), approx=False)
    attn = e * inv                                                   # rows sum to 1
    attn_ref[0] = attn.astype(attn_ref.dtype)                        # streamed per tile

    ctx = jnp.einsum("hqk,hkd->hqd", attn.astype(mm), v_ref[0],
                     preferred_element_type=jnp.float32)             # (H, TQ, d_v)
    context = _permute(ctx.astype(mm), "hqd->qhd").reshape(tq, H * d_v)

    proj = jnp.dot(context, wproj_ref[...],
                   preferred_element_type=jnp.float32) + bproj_ref[...]
    z = x + proj                                                     # dropout == id

    # ---- LayerNormalization #1 (torch.std is UNBIASED; eps added to std) -----
    mean = jnp.mean(z, axis=-1, keepdims=True)
    var = jnp.sum((z - mean) ** 2, axis=-1, keepdims=True) / (D - 1)
    inv_std1 = pl.reciprocal(jnp.sqrt(var) + eps, approx=False)
    ln1 = g1_ref[...] * ((z - mean) * inv_std1) + be1_ref[...]

    # ---- position-wise FFN (conv1x1 == matmul) --------------------------------
    h1 = jnp.maximum(
        jnp.dot(ln1.astype(mm), w1_ref[...],
                preferred_element_type=jnp.float32) + c1_ref[...], 0.0)
    h2 = jnp.dot(h1.astype(mm), w2_ref[...],
                 preferred_element_type=jnp.float32) + c2_ref[...]
    z2 = ln1 + h2                                                    # dropout == id

    # ---- LayerNormalization #2 -------------------------------------------------
    mean2 = jnp.mean(z2, axis=-1, keepdims=True)
    var2 = jnp.sum((z2 - mean2) ** 2, axis=-1, keepdims=True) / (D - 1)
    inv_std2 = pl.reciprocal(jnp.sqrt(var2) + eps, approx=False)
    out_ref[0] = g2_ref[...] * ((z2 - mean2) * inv_std2) + be2_ref[...]


# --------------------------------------------------------------------------- #
# Wrapper: generation-aware tiling / VMEM budget + the two pallas_calls.
# --------------------------------------------------------------------------- #
def _round_up(v, m):
    return ((v + m - 1) // m) * m


def _tpu_vmem_capacity_bytes():
    try:
        info = pltpu.get_tpu_info()
        cap = getattr(info, "vmem_capacity_bytes", None)
        if cap:
            return int(cap)
    except Exception:
        pass
    return 64 * 2**20   # conservative default: v7x per-TensorCore VMEM


def _vmem_footprint_bytes(S, D, d_ff, H, d_k, d_v, tq, mm_isz, attn_isz, wbuf):
    """Rough per-grid-step VMEM footprint of the main kernel (padded layouts)."""
    f32, L, SUB = 4, 128, 8
    ru = _round_up
    weights = wbuf * mm_isz * (ru(D, SUB) * ru(H * d_k, L)
                               + ru(H * d_v, SUB) * ru(D, L)
                               + ru(D, SUB) * ru(d_ff, L)
                               + ru(d_ff, SUB) * ru(D, L))
    small = wbuf * f32 * SUB * (ru(H * d_k, L) + 6 * ru(D, L) + ru(d_ff, L))
    x_b = 2 * f32 * tq * ru(D, L)
    kt_b = 2 * mm_isz * H * ru(d_k, SUB) * ru(S, L)
    v_b = 2 * mm_isz * H * ru(S, SUB) * ru(d_v, L)
    out_b = 2 * f32 * tq * ru(D, L)
    attn_b = 2 * attn_isz * H * tq * ru(S, L)
    live = f32 * (3 * H * tq * ru(S, L)          # scores / exp / attn (f32)
                  + 2 * H * tq * L               # qh / ctx (lane-padded heads)
                  + tq * ru(d_ff, L)             # FFN hidden
                  + 4 * tq * ru(D, L))           # z, ln1, h2, z2
    return weights + small + x_b + kt_b + v_b + out_b + attn_b + live


def encoder_layer(x, params, *, n_heads, d_k, d_v, eps=1e-6, tq=None,
                  matmul_dtype=jnp.bfloat16, attn_dtype=jnp.bfloat16,
                  single_buffer_weights=False):
    B, S, D = x.shape
    H = n_heads
    d_ff = params["w1"].shape[1]
    mm = matmul_dtype
    mm_isz = jnp.dtype(mm).itemsize
    attn_isz = jnp.dtype(attn_dtype).itemsize
    wbuf = 1 if single_buffer_weights else 2

    # ---- generation-aware tile size and scoped-VMEM budget --------------------
    capacity = _tpu_vmem_capacity_bytes()
    cap = max(32 * 2**20, capacity - 16 * 2**20)   # leave compiler headroom
    if tq is None:
        tq = min(S, 128)
        for cand in (256, 128):                    # 256 fills the 256-wide MXU (v6e/v7x)
            if S % cand == 0 and _vmem_footprint_bytes(
                    S, D, d_ff, H, d_k, d_v, cand, mm_isz, attn_isz, wbuf) <= 0.75 * cap:
                tq = cand
                break
    tq = min(tq, S)
    assert S % tq == 0, "sequence length must be divisible by the query tile"
    assert tq % 8 == 0 or tq == S, "query tile must be a multiple of 8"
    nq = S // tq

    need = _vmem_footprint_bytes(S, D, d_ff, H, d_k, d_v, tq, mm_isz, attn_isz, wbuf)
    vmem_limit = int(min(cap, max(32 * 2**20, 2 * need)))

    # ---- weights in matmul dtype ----------------------------------------------
    wq = params["wq"].astype(mm)
    wk = params["wk"].astype(mm)
    wv = params["wv"].astype(mm)
    wproj = params["wproj"].astype(mm)
    w1 = params["w1"].astype(mm)
    w2 = params["w2"].astype(mm)

    def _const(shape, nidx):
        zeros = (0,) * len(shape)
        idx = (lambda b: zeros) if nidx == 1 else (lambda b, qi: zeros)
        if single_buffer_weights:
            # Constant index map => the block is DMA'd once; a single buffer
            # halves its VMEM footprint (valuable on v7x's 64 MiB).
            try:
                return pl.BlockSpec(shape, idx, pipeline_mode=pl.Buffered(1))
            except TypeError:
                pass
        return pl.BlockSpec(shape, idx)

    # ---- pass 1: head-major K^T / V per batch element --------------------------
    kv_kernel = functools.partial(kv_project_kernel, n_heads=H, d_k=d_k, d_v=d_v)
    k_t, v_h = pl.pallas_call(
        kv_kernel,
        grid=(B,),
        in_specs=[
            pl.BlockSpec((1, S, D), lambda b: (b, 0, 0)),
            _const((D, H * d_k), 1), _const((1, H * d_k), 1),
            _const((D, H * d_v), 1), _const((1, H * d_v), 1),
        ],
        out_specs=(
            pl.BlockSpec((1, H, d_k, S), lambda b: (b, 0, 0, 0)),
            pl.BlockSpec((1, H, S, d_v), lambda b: (b, 0, 0, 0)),
        ),
        out_shape=(
            jax.ShapeDtypeStruct((B, H, d_k, S), mm),
            jax.ShapeDtypeStruct((B, H, S, d_v), mm),
        ),
        compiler_params=pltpu.CompilerParams(
            dimension_semantics=("parallel",),
            vmem_limit_bytes=vmem_limit),
    )(x, wk, params["bk"], wv, params["bv"])

    # ---- pass 2: attention + LN + FFN, fully parallel grid ----------------------
    kernel = functools.partial(
        encoder_layer_kernel, n_heads=H, d_k=d_k, d_v=d_v, eps=eps)
    enc_out, attn = pl.pallas_call(
        kernel,
        grid=(B, nq),
        in_specs=[
            pl.BlockSpec((1, tq, D), lambda b, qi: (b, qi, 0)),        # x query tile
            _const((D, H * d_k), 2), _const((1, H * d_k), 2),          # wq, bq
            pl.BlockSpec((1, H, d_k, S), lambda b, qi: (b, 0, 0, 0)),  # K^T per b
            pl.BlockSpec((1, H, S, d_v), lambda b, qi: (b, 0, 0, 0)),  # V per b
            _const((H * d_v, D), 2), _const((1, D), 2),                # wproj, bproj
            _const((1, D), 2), _const((1, D), 2),                      # gamma1, beta1
            _const((D, d_ff), 2), _const((1, d_ff), 2),                # conv1 W, b
            _const((d_ff, D), 2), _const((1, D), 2),                   # conv2 W, b
            _const((1, D), 2), _const((1, D), 2),                      # gamma2, beta2
        ],
        out_specs=(
            pl.BlockSpec((1, tq, D), lambda b, qi: (b, qi, 0)),
            pl.BlockSpec((1, H, tq, S), lambda b, qi: (b, 0, qi, 0)),
        ),
        out_shape=(
            jax.ShapeDtypeStruct((B, S, D), jnp.float32),
            jax.ShapeDtypeStruct((B, H, S, S), attn_dtype),
        ),
        compiler_params=pltpu.CompilerParams(
            dimension_semantics=("parallel", "parallel"),
            vmem_limit_bytes=vmem_limit),
    )(x, wq, params["bq"], k_t, v_h, wproj, params["bproj"],
      params["gamma1"], params["beta1"], w1, params["c1"], w2, params["c2"],
      params["gamma2"], params["beta2"])
    return enc_out, attn


def make_params(key, d_model, d_k, d_v, d_ff, n_heads):
    """Deterministic parameter init (xavier-normal weights, zero biases)."""
    def xavier(k, fan_in, fan_out):
        std = math.sqrt(2.0 / (fan_in + fan_out))
        return (std * jax.random.normal(k, (fan_in, fan_out))).astype(jnp.float32)

    ks = jax.random.split(key, 6)
    H = n_heads
    return {
        "wq": xavier(ks[0], d_model, H * d_k), "bq": jnp.zeros((1, H * d_k), jnp.float32),
        "wk": xavier(ks[1], d_model, H * d_k), "bk": jnp.zeros((1, H * d_k), jnp.float32),
        "wv": xavier(ks[2], d_model, H * d_v), "bv": jnp.zeros((1, H * d_v), jnp.float32),
        "wproj": xavier(ks[3], H * d_v, d_model), "bproj": jnp.zeros((1, d_model), jnp.float32),
        "gamma1": jnp.ones((1, d_model), jnp.float32), "beta1": jnp.zeros((1, d_model), jnp.float32),
        # conv1d kernel_size=1 weights stored already transposed to (in, out)
        "w1": xavier(ks[4], d_model, d_ff), "c1": jnp.zeros((1, d_ff), jnp.float32),
        "w2": xavier(ks[5], d_ff, d_model), "c2": jnp.zeros((1, d_model), jnp.float32),
        "gamma2": jnp.ones((1, d_model), jnp.float32), "beta2": jnp.zeros((1, d_model), jnp.float32),
    }


if __name__ == "__main__":
    # small, lane-aligned shapes (last dims multiples of 128)
    B, S = 2, 256
    d_model, d_ff = 128, 512
    n_heads, d_k, d_v = 4, 32, 32

    key = jax.random.PRNGKey(0)
    k_x, k_p = jax.random.split(key)
    x = jax.random.normal(k_x, (B, S, d_model), dtype=jnp.float32)
    params = make_params(k_p, d_model, d_k, d_v, d_ff, n_heads)

    enc_out, attn = encoder_layer(x, params, n_heads=n_heads, d_k=d_k, d_v=d_v)
    jax.block_until_ready((enc_out, attn))

    assert enc_out.shape == (B, S, d_model)
    assert attn.shape == (B, n_heads, S, S)
    assert bool(jnp.all(jnp.isfinite(enc_out)))
    row_sums = jnp.sum(attn.astype(jnp.float32), axis=-1)
    assert bool(jnp.allclose(row_sums, 1.0, atol=2e-2))
    print("KERNEL_OK")
</pallas_src>

<mosaic_0001>
module attributes {stable_mosaic.version = 11 : i64} {
  func.func @kv_project_kernel(%arg0: i32, %arg1: memref<1x256x128xf32, #tpu.memory_space<vmem>>, %arg2: memref<128x128xbf16, #tpu.memory_space<vmem>>, %arg3: memref<1x128xf32, #tpu.memory_space<vmem>>, %arg4: memref<128x128xbf16, #tpu.memory_space<vmem>>, %arg5: memref<1x128xf32, #tpu.memory_space<vmem>>, %arg6: memref<1x4x32x256xbf16, #tpu.memory_space<vmem>>, %arg7: memref<1x4x256x32xbf16, #tpu.memory_space<vmem>>) attributes {dimension_semantics = [#tpu.dimension_semantics<parallel>], iteration_bounds = array<i64: 2>, scalar_prefetch = 0 : i64, scratch_operands = 0 : i64, tpu.core_type = #tpu.core_type<tc>, window_params = [{transform_indices = @transform_0, window_bounds = array<i64: 1, 256, 128>}, {pipeline_mode = #tpu.pipeline_mode<synchronous>, transform_indices = @transform_1, window_bounds = array<i64: 128, 128>}, {pipeline_mode = #tpu.pipeline_mode<synchronous>, transform_indices = @transform_2, window_bounds = array<i64: 1, 128>}, {pipeline_mode = #tpu.pipeline_mode<synchronous>, transform_indices = @transform_3, window_bounds = array<i64: 128, 128>}, {pipeline_mode = #tpu.pipeline_mode<synchronous>, transform_indices = @transform_4, window_bounds = array<i64: 1, 128>}, {transform_indices = @transform_5, window_bounds = array<i64: 1, 4, 32, 256>}, {transform_indices = @transform_6, window_bounds = array<i64: 1, 4, 256, 32>}]} {
    %c0 = arith.constant 0 : index
    %c0_0 = arith.constant 0 : index
    %c0_1 = arith.constant 0 : index
    %0 = vector.load %arg1[%c0, %c0_0, %c0_1] : memref<1x256x128xf32, #tpu.memory_space<vmem>>, vector<1x256x128xf32>
    %1 = vector.shape_cast %0 : vector<1x256x128xf32> to vector<256x128xf32>
    %2 = arith.truncf %1 : vector<256x128xf32> to vector<256x128xbf16>
    %c0_2 = arith.constant 0 : index
    %c0_3 = arith.constant 0 : index
    %3 = vector.load %arg2[%c0_2, %c0_3] : memref<128x128xbf16, #tpu.memory_space<vmem>>, vector<128x128xbf16>
    %cst = arith.constant dense<0.000000e+00> : vector<256x128xf32>
    %4 = tpu.matmul %2, %3, %cst {dimension_numbers = #tpu.dot_dimension_numbers<[1], [0], [0], [1], [0, 0, 1, 1], [], []>} : vector<256x128xbf16>, vector<128x128xbf16>, vector<256x128xf32> -> vector<256x128xf32>
    %c0_4 = arith.constant 0 : index
    %c0_5 = arith.constant 0 : index
    %5 = vector.load %arg3[%c0_4, %c0_5] : memref<1x128xf32, #tpu.memory_space<vmem>>, vector<1x128xf32>
    %6 = vector.broadcast %5 : vector<1x128xf32> to vector<256x128xf32>
    %7 = arith.addf %4, %6 : vector<256x128xf32>
    %8 = arith.truncf %7 : vector<256x128xf32> to vector<256x128xbf16>
    %9 = tpu.transpose %8, [1, 0] : vector<256x128xbf16> -> vector<128x256xbf16>
    %10 = vector.shape_cast %9 : vector<128x256xbf16> to vector<4x32x256xbf16>
    %c0_6 = arith.constant 0 : index
    %c0_7 = arith.constant 0 : index
    %c0_8 = arith.constant 0 : index
    %c0_9 = arith.constant 0 : index
    %11 = vector.load %arg6[%c0_6, %c0_7, %c0_8, %c0_9] : memref<1x4x32x256xbf16, #tpu.memory_space<vmem>>, vector<1x4x32x256xbf16>
    %12 = vector.shape_cast %11 : vector<1x4x32x256xbf16> to vector<4x32x256xbf16>
    %13 = vector.shape_cast %10 : vector<4x32x256xbf16> to vector<1x4x32x256xbf16>
    tpu.vector_store %arg6[%c0_6, %c0_7, %c0_8, %c0_9], %13 {strides = array<i32>} : memref<1x4x32x256xbf16, #tpu.memory_space<vmem>>, vector<1x4x32x256xbf16>,
    %c0_10 = arith.constant 0 : index
    %c0_11 = arith.constant 0 : index
    %14 = vector.load %arg4[%c0_10, %c0_11] : memref<128x128xbf16, #tpu.memory_space<vmem>>, vector<128x128xbf16>
    %cst_12 = arith.constant dense<0.000000e+00> : vector<256x128xf32>
    %15 = tpu.matmul %2, %14, %cst_12 {dimension_numbers = #tpu.dot_dimension_numbers<[1], [0], [0], [1], [0, 0, 1, 1], [], []>} : vector<256x128xbf16>, vector<128x128xbf16>, vector<256x128xf32> -> vector<256x128xf32>
    %c0_13 = arith.constant 0 : index
    %c0_14 = arith.constant 0 : index
    %16 = vector.load %arg5[%c0_13, %c0_14] : memref<1x128xf32, #tpu.memory_space<vmem>>, vector<1x128xf32>
    %17 = vector.broadcast %16 : vector<1x128xf32> to vector<256x128xf32>
    %18 = arith.addf %15, %17 : vector<256x128xf32>
    %19 = arith.truncf %18 : vector<256x128xf32> to vector<256x128xbf16>
    %20 = vector.shape_cast %19 : vector<256x128xbf16> to vector<256x4x32xbf16>
    %21 = tpu.transpose %20, [1, 0, 2] : vector<256x4x32xbf16> -> vector<4x256x32xbf16>
    %c0_15 = arith.constant 0 : index
    %c0_16 = arith.constant 0 : index
    %c0_17 = arith.constant 0 : index
    %c0_18 = arith.constant 0 : index
    %22 = vector.load %arg7[%c0_15, %c0_16, %c0_17, %c0_18] : memref<1x4x256x32xbf16, #tpu.memory_space<vmem>>, vector<1x4x256x32xbf16>
    %23 = vector.shape_cast %22 : vector<1x4x256x32xbf16> to vector<4x256x32xbf16>
    %24 = vector.shape_cast %21 : vector<4x256x32xbf16> to vector<1x4x256x32xbf16>
    tpu.vector_store %arg7[%c0_15, %c0_16, %c0_17, %c0_18], %24 {strides = array<i32>} : memref<1x4x256x32xbf16, #tpu.memory_space<vmem>>, vector<1x4x256x32xbf16>,
    return
  }
  func.func @transform_0(%arg0: i32) -> (i32, i32, i32) {
    %c0_i32 = arith.constant 0 : i32
    %c0_i32_0 = arith.constant 0 : i32
    %c0_i32_1 = arith.constant 0 : i32
    return %arg0, %c0_i32, %c0_i32_0 : i32, i32, i32
  }
  func.func @transform_1(%arg0: i32) -> (i32, i32) {
    %c0_i32 = arith.constant 0 : i32
    %c0_i32_0 = arith.constant 0 : i32
    %c0_i32_1 = arith.constant 0 : i32
    return %c0_i32, %c0_i32_0 : i32, i32
  }
  func.func @transform_2(%arg0: i32) -> (i32, i32) {
    %c0_i32 = arith.constant 0 : i32
    %c0_i32_0 = arith.constant 0 : i32
    %c0_i32_1 = arith.constant 0 : i32
    return %c0_i32, %c0_i32_0 : i32, i32
  }
  func.func @transform_3(%arg0: i32) -> (i32, i32) {
    %c0_i32 = arith.constant 0 : i32
    %c0_i32_0 = arith.constant 0 : i32
    %c0_i32_1 = arith.constant 0 : i32
    return %c0_i32, %c0_i32_0 : i32, i32
  }
  func.func @transform_4(%arg0: i32) -> (i32, i32) {
    %c0_i32 = arith.constant 0 : i32
    %c0_i32_0 = arith.constant 0 : i32
    %c0_i32_1 = arith.constant 0 : i32
    return %c0_i32, %c0_i32_0 : i32, i32
  }
  func.func @transform_5(%arg0: i32) -> (i32, i32, i32, i32) {
    %c0_i32 = arith.constant 0 : i32
    %c0_i32_0 = arith.constant 0 : i32
    %c0_i32_1 = arith.constant 0 : i32
    %c0_i32_2 = arith.constant 0 : i32
    return %arg0, %c0_i32, %c0_i32_0, %c0_i32_1 : i32, i32, i32, i32
  }
  func.func @transform_6(%arg0: i32) -> (i32, i32, i32, i32) {
    %c0_i32 = arith.constant 0 : i32
    %c0_i32_0 = arith.constant 0 : i32
    %c0_i32_1 = arith.constant 0 : i32
    %c0_i32_2 = arith.constant 0 : i32
    return %arg0, %c0_i32, %c0_i32_0, %c0_i32_1 : i32, i32, i32, i32
  }
}

</mosaic_0001>

<llo_original>
// kernel: tpu_custom_call.1
$region0: #{tpu_custom_call.1}
  #allocation0 [shape = 'u32[]', space=smem, size = 0x4, offset = 0x4, fixed_abs, tag = 'smem constant byte address 0x4 - core index']
  #allocation1 [shape = 'u32[144,128]{1,0:T(1,128)}', space=vmem, size = 0x12000, scoped, tag = 'internal scratch']
  %s0 = inlined_call_operand.hbm [shape: f32[2,256,128], index: 0, kind: input, shape index: {}]
  %s1 = inlined_call_operand.hbm [shape: bf16[128,128], index: 1, kind: input, shape index: {}]
  %s2 = inlined_call_operand.vmem [shape: f32[1,128], index: 2, kind: input, shape index: {}]
  %s3 = inlined_call_operand.hbm [shape: bf16[128,128], index: 3, kind: input, shape index: {}]
  %s4 = inlined_call_operand.vmem [shape: f32[1,128], index: 4, kind: input, shape index: {}]
  %s5 = inlined_call_operand.hbm [shape: bf16[2,4,32,256], index: 5, kind: output, shape index: {0}]
  %s6 = inlined_call_operand.vmem [shape: bf16[2,4,256,32], index: 6, kind: output, shape index: {1}]
  %7 = xla_tuple %s5, %s6
  %s8 = sld [smem:[#allocation0]]
  $region73: #{tpu_custom_call.1} parent=0
    _
  %s10 = ssub.s32 1, %s8
  %s11 = scalar_select 0, %s10, %s8
  $region1: #{tpu_custom_call.1} parent=0
    #allocation2 [shape = 'u8[262144]{0}', space=vmem, size = 0x40000, scoped, tag = 'input window, operand 0']
    #allocation3 [shape = 's32[2]{0}', space=sflag, size = 0x8, scoped, tag = 'scoped memory for tpu_custom_call.1']
    #allocation4 [shape = 's32[2]{0}', space=sflag, size = 0x8, scoped, tag = 'scoped memory for tpu_custom_call.1']
    #allocation5 [shape = 'u8[32768]{0}', space=vmem, size = 0x8000, scoped, tag = 'input window, operand 1, single buffered']
    #allocation6 [shape = 's32[1]{0}', space=sflag, size = 0x4, scoped, tag = 'scoped memory for tpu_custom_call.1']
    #allocation7 [shape = 'u8[32768]{0}', space=vmem, size = 0x8000, scoped, tag = 'input window, operand 3, single buffered']
    #allocation8 [shape = 'u8[131072]{0}', space=vmem, size = 0x20000, scoped, tag = 'output window, operand 0']
    %12 = vsyncpa [#allocation3], 0
    %s13 = scalar_lea.sflag [#allocation3], 1
    %14 = vsyncpa %s13, 0
    %15 = vsyncpa [#allocation6], 0
    %16 = vsyncpa [#allocation4], 0
    %s17 = scalar_lea.sflag [#allocation4], 1
    %18 = vsyncpa %s17, 0
    loop: start=0, step=1, limit=4
    $region2: #{tpu_custom_call.1} parent=1 // loop_pre_header
      _
    $region3: #{tpu_custom_call.1} parent=1 // loop_header
      %s20 = sphi 0, %s24
      %p21 = scmp.ge.s32.totalorder %s20, 4
      %s30 = sphi 0, %s32
      %s33 = sphi 0, %s30
      %s34 = sphi 0, %s33
      %s50 = sphi 0, %s34
      %s54 = sphi 0, %s54
      %s56 = sphi 0, %s54
      %s57 = sphi 0, %s56
      %s71 = sphi 0, %s57
      %s75 = sphi 0, %s75
      %s77 = sphi 0, %s75
      %s78 = sphi 0, %s77
      %s92 = sphi 0, %s78
      %s96 = sphi 0, %s96
      %s98 = sphi 0, %s96
      %s99 = sphi 0, %s98
      %s113 = sphi 0, %s99
      %s117 = sphi 0, %s117
      %s119 = sphi 0, %s117
      %s120 = sphi 0, %s119
      %s134 = sphi 0, %s120
      %s140 = sphi 0, %s142
      %s143 = sphi 0, %s140
      %s144 = sphi 0, %s143
      %s160 = sphi 0, %s144
      %s166 = sphi 0, %s168
      %s169 = sphi 0, %s166
      %s170 = sphi 0, %s169
      %s186 = sphi 0, %s170
    $region4: #{tpu_custom_call.1} parent=1 // loop_header_branch
      %23 = sbr.rel (%p21) target = $region8
    $region5: #{tpu_custom_call.1} parent=1 // loop_body
      %s25 = ssub.s32 %s20, 1
      %s26 = ssub.s32 %s20, 2
      %s27 = sadd.s32 %s20, 1
      %s28 = ssub.s32 %s20, %s27
      %p29 = scmp.eq.s32.totalorder %s28, 0
      %s31 = sadd.s32 %s30, 1
      %s32 = scalar_select %p29, %s30, %s31
      %p35 = pneg %p29
      %p36 = scmp.eq.s32.totalorder %s20, 1
      %p37 = por %p35, %p36
      %p38 = scmp.ne.s32.totalorder %s30, %s33
      %p39 = scmp.eq.s32.totalorder %s20, 0
      %p40 = por %p38, %p39
      %p41 = scmp.ne.s32.totalorder %s30, %s33
      %p42 = scmp.eq.s32.totalorder %s25, 1
      %p43 = por %p41, %p42
      %p44 = scmp.ne.s32.totalorder %s33, %s34
      %p45 = scmp.eq.s32.totalorder %s25, 0
      %p46 = por %p44, %p45
      %p47 = scmp.ne.s32.totalorder %s33, %s34
      %p48 = scmp.eq.s32.totalorder %s26, 1
      %p49 = por %p47, %p48
      %p51 = scmp.ne.s32.totalorder %s34, %s50
      %p52 = scmp.eq.s32.totalorder %s26, 0
      %p53 = por %p51, %p52
      %s55 = sadd.s32 %s54, 1
      %p58 = scmp.eq.s32.totalorder %s20, 1
      %p59 = scmp.ne.s32.totalorder %s54, %s56
      %p60 = scmp.eq.s32.totalorder %s20, 0
      %p61 = por %p59, %p60
      %p62 = scmp.ne.s32.totalorder %s54, %s56
      %p63 = scmp.eq.s32.totalorder %s25, 1
      %p64 = por %p62, %p63
      %p65 = scmp.ne.s32.totalorder %s56, %s57
      %p66 = scmp.eq.s32.totalorder %s25, 0
      %p67 = por %p65, %p66
      %p68 = scmp.ne.s32.totalorder %s56, %s57
      %p69 = scmp.eq.s32.totalorder %s26, 1
      %p70 = por %p68, %p69
      %p72 = scmp.ne.s32.totalorder %s57, %s71
      %p73 = scmp.eq.s32.totalorder %s26, 0
      %p74 = por %p72, %p73
      %s76 = sadd.s32 %s75, 1
      %p79 = scmp.eq.s32.totalorder %s20, 1
      %p80 = scmp.ne.s32.totalorder %s75, %s77
      %p81 = scmp.eq.s32.totalorder %s20, 0
      %p82 = por %p80, %p81
      %p83 = scmp.ne.s32.totalorder %s75, %s77
      %p84 = scmp.eq.s32.totalorder %s25, 1
      %p85 = por %p83, %p84
      %p86 = scmp.ne.s32.totalorder %s77, %s78
      %p87 = scmp.eq.s32.totalorder %s25, 0
      %p88 = por %p86, %p87
      %p89 = scmp.ne.s32.totalorder %s77, %s78
      %p90 = scmp.eq.s32.totalorder %s26, 1
      %p91 = por %p89, %p90
      %p93 = scmp.ne.s32.totalorder %s78, %s92
      %p94 = scmp.eq.s32.totalorder %s26, 0
      %p95 = por %p93, %p94
      %s97 = sadd.s32 %s96, 1
      %p100 = scmp.eq.s32.totalorder %s20, 1
      %p101 = scmp.ne.s32.totalorder %s96, %s98
      %p102 = scmp.eq.s32.totalorder %s20, 0
      %p103 = por %p101, %p102
      %p104 = scmp.ne.s32.totalorder %s96, %s98
      %p105 = scmp.eq.s32.totalorder %s25, 1
      %p106 = por %p104, %p105
      %p107 = scmp.ne.s32.totalorder %s98, %s99
      %p108 = scmp.eq.s32.totalorder %s25, 0
      %p109 = por %p107, %p108
      %p110 = scmp.ne.s32.totalorder %s98, %s99
      %p111 = scmp.eq.s32.totalorder %s26, 1
      %p112 = por %p110, %p111
      %p114 = scmp.ne.s32.totalorder %s99, %s113
      %p115 = scmp.eq.s32.totalorder %s26, 0
      %p116 = por %p114, %p115
      %s118 = sadd.s32 %s117, 1
      %p121 = scmp.eq.s32.totalorder %s20, 1
      %p122 = scmp.ne.s32.totalorder %s117, %s119
      %p123 = scmp.eq.s32.totalorder %s20, 0
      %p124 = por %p122, %p123
      %p125 = scmp.ne.s32.totalorder %s117, %s119
      %p126 = scmp.eq.s32.totalorder %s25, 1
      %p127 = por %p125, %p126
      %p128 = scmp.ne.s32.totalorder %s119, %s120
      %p129 = scmp.eq.s32.totalorder %s25, 0
      %p130 = por %p128, %p129
      %p131 = scmp.ne.s32.totalorder %s119, %s120
      %p132 = scmp.eq.s32.totalorder %s26, 1
      %p133 = por %p131, %p132
      %p135 = scmp.ne.s32.totalorder %s120, %s134
      %p136 = scmp.eq.s32.totalorder %s26, 0
      %p137 = por %p135, %p136
      %s138 = ssub.s32 %s20, %s27
      %p139 = scmp.eq.s32.totalorder %s138, 0
      %s141 = sadd.s32 %s140, 1
      %s142 = scalar_select %p139, %s140, %s141
      %p145 = pneg %p139
      %p146 = scmp.eq.s32.totalorder %s20, 1
      %p147 = por %p145, %p146
      %p148 = scmp.ne.s32.totalorder %s140, %s143
      %p149 = scmp.eq.s32.totalorder %s20, 0
      %p150 = por %p148, %p149
      %p151 = scmp.ne.s32.totalorder %s140, %s143
      %p152 = scmp.eq.s32.totalorder %s25, 1
      %p153 = por %p151, %p152
      %p154 = scmp.ne.s32.totalorder %s143, %s144
      %p155 = scmp.eq.s32.totalorder %s25, 0
      %p156 = por %p154, %p155
      %p157 = scmp.ne.s32.totalorder %s143, %s144
      %p158 = scmp.eq.s32.totalorder %s26, 1
      %p159 = por %p157, %p158
      %p161 = scmp.ne.s32.totalorder %s144, %s160
      %p162 = scmp.eq.s32.totalorder %s26, 0
      %p163 = por %p161, %p162
      %s164 = ssub.s32 %s20, %s27
      %p165 = scmp.eq.s32.totalorder %s164, 0
      %s167 = sadd.s32 %s166, 1
      %s168 = scalar_select %p165, %s166, %s167
      %p171 = pneg %p165
      %p172 = scmp.eq.s32.totalorder %s20, 1
      %p173 = por %p171, %p172
      %p174 = scmp.ne.s32.totalorder %s166, %s169
      %p175 = scmp.eq.s32.totalorder %s20, 0
      %p176 = por %p174, %p175
      %p177 = scmp.ne.s32.totalorder %s166, %s169
      %p178 = scmp.eq.s32.totalorder %s25, 1
      %p179 = por %p177, %p178
      %p180 = scmp.ne.s32.totalorder %s169, %s170
      %p181 = scmp.eq.s32.totalorder %s25, 0
      %p182 = por %p180, %p181
      %p183 = scmp.ne.s32.totalorder %s169, %s170
      %p184 = scmp.eq.s32.totalorder %s26, 1
      %p185 = por %p183, %p184
      %p187 = scmp.ne.s32.totalorder %s170, %s186
      %p188 = scmp.eq.s32.totalorder %s26, 0
      %p189 = por %p187, %p188
      %p190 = scmp.le.s32.totalorder 1, %s20
      %p191 = scmp.lt.s32.totalorder %s20, 3
      %p192 = pnand %p190, %p191
      %p193 = pneg %p192
      // Predicated region
      $region9: #{tpu_custom_call.1} parent=5 // pred_check
        _
      $region10: #{tpu_custom_call.1} parent=5 // pred_check_branch
        %195 = sbr.rel (%p192) target = $region12
      $region11: #{tpu_custom_call.1} parent=5 // pred_region
        %s196 = ssub.s32 %s20, 1
        // Predicated region
        $region13: #{tpu_custom_call.1} parent=11 // pred_check
          %p197 = pneg %p67
        $region14: #{tpu_custom_call.1} parent=11 // pred_check_branch
          %199 = sbr.rel (%p197) target = $region16
        $region15: #{tpu_custom_call.1} parent=11 // pred_region
          %s201 = ssub.s32 1024, 1024
          %202 = vsyncadd [#allocation6], %s201
          %s203 = sshll.u32 [#allocation5], 4
          %s204 = int_to_ptr.vmem [resolvable:$true] %s203
          %209 = dma.hbm_to_vmem [thread:$0]  %s1, 1024, %s204, [#allocation6], 64, 64, 4
        $region16: #{tpu_custom_call.1} parent=11 // pred_fallthru
          _
        // Predicated region
        $region17: #{tpu_custom_call.1} parent=11 // pred_check
          %p210 = pneg %p88
        $region18: #{tpu_custom_call.1} parent=11 // pred_check_branch
          %212 = sbr.rel (%p210) target = $region20
        $region19: #{tpu_custom_call.1} parent=11 // pred_region
          _
        $region20: #{tpu_custom_call.1} parent=11 // pred_fallthru
          _
        // Predicated region
        $region21: #{tpu_custom_call.1} parent=11 // pred_check
          %p213 = pneg %p109
        $region22: #{tpu_custom_call.1} parent=11 // pred_check_branch
          %215 = sbr.rel (%p213) target = $region24
        $region23: #{tpu_custom_call.1} parent=11 // pred_region
          %s217 = ssub.s32 1024, 1024
          %218 = vsyncadd [#allocation6], %s217
          %s219 = sshll.u32 [#allocation7], 4
          %s220 = int_to_ptr.vmem [resolvable:$true] %s219
          %225 = dma.hbm_to_vmem [thread:$0]  %s3, 1024, %s220, [#allocation6], 64, 64, 4
        $region24: #{tpu_custom_call.1} parent=11 // pred_fallthru
          _
        // Predicated region
        $region25: #{tpu_custom_call.1} parent=11 // pred_check
          %p226 = pneg %p130
        $region26: #{tpu_custom_call.1} parent=11 // pred_check_branch
          %228 = sbr.rel (%p226) target = $region28
        $region27: #{tpu_custom_call.1} parent=11 // pred_region
          _
        $region28: #{tpu_custom_call.1} parent=11 // pred_fallthru
          _
      $region12: #{tpu_custom_call.1} parent=5 // pred_fallthru
        _
      %p229 = scmp.lt.s32.totalorder %s20, 2
      // Predicated region
      $region29: #{tpu_custom_call.1} parent=5 // pred_check
        %p230 = pneg %p229
      $region30: #{tpu_custom_call.1} parent=5 // pred_check_branch
        %232 = sbr.rel (%p230) target = $region32
      $region31: #{tpu_custom_call.1} parent=5 // pred_region
        // Predicated region
        $region33: #{tpu_custom_call.1} parent=31 // pred_check
          %p233 = pneg %p40
        $region34: #{tpu_custom_call.1} parent=31 // pred_check_branch
          %235 = sbr.rel (%p233) target = $region36
        $region35: #{tpu_custom_call.1} parent=31 // pred_region
          %s236 = sand.u32 %s30, 1
          %s237 = scalar_lea.sflag [#allocation3], %s236
          %s238 = sand.u32 %s30, 1
          %s239 = smul.addr %s238, 256
          %s240 = scalar_lea.vmem [#allocation2], %s239
          %s242 = ssub.s32 4096, 4096
          %243 = vsyncadd %s237, %s242
          %s244 = smul.addr %s20, 32
          %s245 = smul.addr %s244, 128
          %s246 = scalar_lea.hbm %s0, %s245
          %s247 = sshll.u32 %s240, 4
          %s248 = int_to_ptr.vmem [resolvable:$true] %s247
          %253 = dma.hbm_to_vmem [thread:$0]  %s246, 4096, %s248, %s237, 128, 128, 8
        $region36: #{tpu_custom_call.1} parent=31 // pred_fallthru
          _
      $region32: #{tpu_custom_call.1} parent=5 // pred_fallthru
        _
      %p254 = scmp.le.s32.totalorder 1, %s20
      %p255 = scmp.lt.s32.totalorder %s20, 3
      %p256 = pnand %p254, %p255
      %p257 = pneg %p256
      // Predicated region
      $region37: #{tpu_custom_call.1} parent=5 // pred_check
        _
      $region38: #{tpu_custom_call.1} parent=5 // pred_check_branch
        %259 = sbr.rel (%p256) target = $region40
      $region39: #{tpu_custom_call.1} parent=5 // pred_region
        %s260 = ssub.s32 %s20, 1
        %s261 = sand.u32 %s33, 1
        %s262 = scalar_lea.sflag [#allocation3], %s261
        %s263 = sand.u32 %s33, 1
        %s264 = smul.addr %s263, 256
        %s265 = scalar_lea.vmem [#allocation2], %s264
        // Predicated region
        $region41: #{tpu_custom_call.1} parent=39 // pred_check
          %p266 = pneg %p46
        $region42: #{tpu_custom_call.1} parent=39 // pred_check_branch
          %268 = sbr.rel (%p266) target = $region44
        $region43: #{tpu_custom_call.1} parent=39 // pred_region
          %269 = dma.done %s262, 4096
        $region44: #{tpu_custom_call.1} parent=39 // pred_fallthru
          _
        // Predicated region
        $region45: #{tpu_custom_call.1} parent=39 // pred_check
          %p270 = pneg %p67
        $region46: #{tpu_custom_call.1} parent=39 // pred_check_branch
          %272 = sbr.rel (%p270) target = $region48
        $region47: #{tpu_custom_call.1} parent=39 // pred_region
          %273 = dma.done [#allocation6], 1024
        $region48: #{tpu_custom_call.1} parent=39 // pred_fallthru
          _
        // Predicated region
        $region49: #{tpu_custom_call.1} parent=39 // pred_check
          %p274 = pneg %p109
        $region50: #{tpu_custom_call.1} parent=39 // pred_check_branch
          %276 = sbr.rel (%p274) target = $region52
        $region51: #{tpu_custom_call.1} parent=39 // pred_region
          %277 = dma.done [#allocation6], 1024
        $region52: #{tpu_custom_call.1} parent=39 // pred_fallthru
          _
        %s278 = sand.u32 %s33, 1
        %s279 = scalar_lea.sflag [#allocation3], %s278
        %s280 = sand.u32 %s33, 1
        %s281 = smul.addr %s280, 256
        %s282 = scalar_lea.vmem [#allocation2], %s281
        %p283 = pneg %p46
        %p284 = pneg %p43
        %p285 = pneg %p67
        %p286 = pneg %p64
        %p287 = pneg %p88
        %p288 = pneg %p85
        %p289 = pneg %p109
        %p290 = pneg %p106
        %p291 = pneg %p130
        %p292 = pneg %p127
        %p293 = pneg %p156
        %p294 = pneg %p153
        %s295 = sand.u32 %s143, 1
        %s296 = scalar_lea.sflag [#allocation4], %s295
        %s297 = sand.u32 %s143, 1
        %s298 = smul.addr %s297, 128
        %s299 = scalar_lea.vmem [#allocation8], %s298
        %p300 = pneg %p182
        %p301 = pneg %p179
        %p302 = scmp.lt.s32.totalorder %s25, 1
        %s303 = scalar_select %p302, %s25, 1
        %s304 = smul.addr %s303, 128
        %s305 = smul.addr %s304, 4
        %s306 = scalar_lea.vmem %s6, %s305
        %p307 = scmp.lt.s32.totalorder %s25, 1
        %s308 = scalar_select %p307, %s25, 1
        %s309 = smul.addr %s308, 128
        %s310 = smul.addr %s309, 4
        %s311 = scalar_lea.vmem %s6, %s310
        %v313 = vld [vmem:[%s265] sm:$0xff]
        %v314 = vld [vmem:[%s265 + $0x8] sm:$0xff]
        %v315 = vld [vmem:[%s265 + $0x10] sm:$0xff]
        %v316 = vld [vmem:[%s265 + $0x18] sm:$0xff]
        %v317 = vld [vmem:[%s265 + $0x20] sm:$0xff]
        %v318 = vld [vmem:[%s265 + $0x28] sm:$0xff]
        %v319 = vld [vmem:[%s265 + $0x30] sm:$0xff]
        %v320 = vld [vmem:[%s265 + $0x38] sm:$0xff]
        %v321 = vld [vmem:[%s265 + $0x40] sm:$0xff]
        %v322 = vld [vmem:[%s265 + $0x48] sm:$0xff]
        %v323 = vld [vmem:[%s265 + $0x50] sm:$0xff]
        %v324 = vld [vmem:[%s265 + $0x58] sm:$0xff]
        %v325 = vld [vmem:[%s265 + $0x60] sm:$0xff]
        %v326 = vld [vmem:[%s265 + $0x68] sm:$0xff]
        %v327 = vld [vmem:[%s265 + $0x70] sm:$0xff]
        %v328 = vld [vmem:[%s265 + $0x78] sm:$0xff]
        %v329 = vld [vmem:[%s265 + $0x80] sm:$0xff]
        %v330 = vld [vmem:[%s265 + $0x88] sm:$0xff]
        %v331 = vld [vmem:[%s265 + $0x90] sm:$0xff]
        %v332 = vld [vmem:[%s265 + $0x98] sm:$0xff]
        %v333 = vld [vmem:[%s265 + $0xa0] sm:$0xff]
        %v334 = vld [vmem:[%s265 + $0xa8] sm:$0xff]
        %v335 = vld [vmem:[%s265 + $0xb0] sm:$0xff]
        %v336 = vld [vmem:[%s265 + $0xb8] sm:$0xff]
        %v337 = vld [vmem:[%s265 + $0xc0] sm:$0xff]
        %v338 = vld [vmem:[%s265 + $0xc8] sm:$0xff]
        %v339 = vld [vmem:[%s265 + $0xd0] sm:$0xff]
        %v340 = vld [vmem:[%s265 + $0xd8] sm:$0xff]
        %v341 = vld [vmem:[%s265 + $0xe0] sm:$0xff]
        %v342 = vld [vmem:[%s265 + $0xe8] sm:$0xff]
        %v343 = vld [vmem:[%s265 + $0xf0] sm:$0xff]
        %v344 = vld [vmem:[%s265 + $0xf8] sm:$0xff]
        %v345 = vpack.c.bf16 %v314, %v313
        %v346 = vpack.c.bf16 %v316, %v315
        %v347 = vpack.c.bf16 %v318, %v317
        %v348 = vpack.c.bf16 %v320, %v319
        %v349 = vpack.c.bf16 %v322, %v321
        %v350 = vpack.c.bf16 %v324, %v323
        %v351 = vpack.c.bf16 %v326, %v325
        %v352 = vpack.c.bf16 %v328, %v327
        %v353 = vpack.c.bf16 %v330, %v329
        %v354 = vpack.c.bf16 %v332, %v331
        %v355 = vpack.c.bf16 %v334, %v333
        %v356 = vpack.c.bf16 %v336, %v335
        %v357 = vpack.c.bf16 %v338, %v337
        %v358 = vpack.c.bf16 %v340, %v339
        %v359 = vpack.c.bf16 %v342, %v341
        %v360 = vpack.c.bf16 %v344, %v343
        %v361 = vld [vmem:[#allocation5] sm:$0xf]
        %v362 = vld [vmem:[#allocation5 + $0x4] sm:$0xf]
        %v363 = vld [vmem:[#allocation5 + $0x8] sm:$0xf]
        %v364 = vld [vmem:[#allocation5 + $0xc] sm:$0xf]
        %v365 = vld [vmem:[#allocation5 + $0x10] sm:$0xf]
        %v366 = vld [vmem:[#allocation5 + $0x14] sm:$0xf]
        %v367 = vld [vmem:[#allocation5 + $0x18] sm:$0xf]
        %v368 = vld [vmem:[#allocation5 + $0x1c] sm:$0xf]
        %v369 = vld [vmem:[#allocation5 + $0x20] sm:$0xf]
        %v370 = vld [vmem:[#allocation5 + $0x24] sm:$0xf]
        %v371 = vld [vmem:[#allocation5 + $0x28] sm:$0xf]
        %v372 = vld [vmem:[#allocation5 + $0x2c] sm:$0xf]
        %v373 = vld [vmem:[#allocation5 + $0x30] sm:$0xf]
        %v374 = vld [vmem:[#allocation5 + $0x34] sm:$0xf]
        %v375 = vld [vmem:[#allocation5 + $0x38] sm:$0xf]
        %v376 = vld [vmem:[#allocation5 + $0x3c] sm:$0xf]
        %v377 = vld [vmem:[%s2] sm:$0x1]
        %v379 = vlaneseq
        %v380 = vshrl.u32 %v379, 7
        %v381 = vsub.s32 0, %v380
        %v382 = vrot.slane %v377, %v381
        %v400 = vunpack.c.l.b16 %v361
        %v401 = vunpack.c.l.b16 %v362
        %v402 = vunpack.c.l.b16 %v363
        %v403 = vunpack.c.l.b16 %v364
        %v404 = vunpack.c.l.b16 %v365
        %v405 = vunpack.c.l.b16 %v366
        %v406 = vunpack.c.l.b16 %v367
        %v407 = vunpack.c.l.b16 %v368
        %v408 = vunpack.c.l.b16 %v369
        %v409 = vunpack.c.l.b16 %v370
        %v410 = vunpack.c.l.b16 %v371
        %v411 = vunpack.c.l.b16 %v372
        %v412 = vunpack.c.l.b16 %v373
        %v413 = vunpack.c.l.b16 %v374
        %v414 = vunpack.c.l.b16 %v375
        %v415 = vunpack.c.l.b16 %v376
        %v416 = vpack.c.b16 %v401, %v400
        %v417 = vpack.c.b16 %v403, %v402
        %v418 = vpack.c.b16 %v405, %v404
        %v419 = vpack.c.b16 %v407, %v406
        %v420 = vpack.c.b16 %v409, %v408
        %v421 = vpack.c.b16 %v411, %v410
        %v422 = vpack.c.b16 %v413, %v412
        %v423 = vpack.c.b16 %v415, %v414
        %432 = vmatprep.subr.bf16.mxu0 0
        %433 = vmatpush1.bf16.msra.mxu0 %v416
        %434 = vmatprep.subr.bf16.mxu0 0
        %435 = vmatpush1.bf16.msra.mxu0 %v417
        %436 = vmatprep.subr.bf16.mxu0 0
        %437 = vmatpush1.bf16.msra.mxu0 %v418
        %438 = vmatprep.subr.bf16.mxu0 0
        %439 = vmatpush1.bf16.msra.mxu0 %v419
        %440 = vmatprep.subr.bf16.mxu0 0
        %441 = vmatpush1.bf16.msra.mxu0 %v420
        %442 = vmatprep.subr.bf16.mxu0 0
        %443 = vmatpush1.bf16.msra.mxu0 %v421
        %444 = vmatprep.subr.bf16.mxu0 0
        %445 = vmatpush1.bf16.msra.mxu0 %v422
        %446 = vmatprep.subr.bf16.mxu0 0
        %447 = vmatpush1.bf16.msra.mxu0 %v423
        %448 = vmatprep.subr.bf16.mxu0 0
        %449 = vmatpush1.bf16.msra.mxu0 0
        %450 = vmatprep.subr.bf16.mxu0 0
        %451 = vmatpush1.bf16.msra.mxu0 0
        %452 = vmatprep.subr.bf16.mxu0 0
        %453 = vmatpush1.bf16.msra.mxu0 0
        %454 = vmatprep.subr.bf16.mxu0 0
        %455 = vmatpush1.bf16.msra.mxu0 0
        %456 = vmatprep.subr.bf16.mxu0 0
        %457 = vmatpush1.bf16.msra.mxu0 0
        %458 = vmatprep.subr.bf16.mxu0 0
        %459 = vmatpush1.bf16.msra.mxu0 0
        %460 = vmatprep.subr.bf16.mxu0 0
        %461 = vmatpush1.bf16.msra.mxu0 0
        %462 = vmatprep.subr.bf16.mxu0 0
        %463 = vmatpush1.bf16.msra.mxu0 0
        %464 = vmatprep.mubr.bf16.mxu0 0
        %465 = vmatmul.mubr.bf16.gmra.mrb[0].mxu0 %v345
        %v466 = vpop.f32.mrb[0].mxu0
        %v467 = vadd.f32 %v382, %v466
        %v468 = vpop.f32.mrb[0].mxu0
        %v469 = vpop.f32.mrb[0].mxu0
        %v470 = vadd.f32 %v382, %v469
        %v471 = vpop.f32.mrb[0].mxu0
        %472 = vmatprep.mubr.bf16.mxu0 0
        %473 = vmatmul.mubr.bf16.gmra.mrb[0].mxu0 %v346
        %v474 = vpop.f32.mrb[0].mxu0
        %v475 = vadd.f32 %v382, %v474
        %v476 = vpop.f32.mrb[0].mxu0
        %v477 = vpop.f32.mrb[0].mxu0
        %v478 = vadd.f32 %v382, %v477
        %v479 = vpop.f32.mrb[0].mxu0
        %480 = vmatprep.mubr.bf16.mxu0 0
        %481 = vmatmul.mubr.bf16.gmra.mrb[0].mxu0 %v347
        %v482 = vpop.f32.mrb[0].mxu0
        %v483 = vadd.f32 %v382, %v482
        %v484 = vpop.f32.mrb[0].mxu0
        %v485 = vpop.f32.mrb[0].mxu0
        %v486 = vadd.f32 %v382, %v485
        %v487 = vpop.f32.mrb[0].mxu0
        %488 = vmatprep.mubr.bf16.mxu0 0
        %489 = vmatmul.mubr.bf16.gmra.mrb[0].mxu0 %v348
        %v490 = vpop.f32.mrb[0].mxu0
        %v491 = vadd.f32 %v382, %v490
        %v492 = vpop.f32.mrb[0].mxu0
        %v493 = vpop.f32.mrb[0].mxu0
        %v494 = vadd.f32 %v382, %v493
        %v495 = vpop.f32.mrb[0].mxu0
        %496 = vmatprep.mubr.bf16.mxu0 0
        %497 = vmatmul.mubr.bf16.gmra.mrb[0].mxu0 %v349
        %v498 = vpop.f32.mrb[0].mxu0
        %v499 = vadd.f32 %v382, %v498
        %v500 = vpop.f32.mrb[0].mxu0
        %v501 = vpop.f32.mrb[0].mxu0
        %v502 = vadd.f32 %v382, %v501
        %v503 = vpop.f32.mrb[0].mxu0
        %504 = vmatprep.mubr.bf16.mxu0 0
        %505 = vmatmul.mubr.bf16.gmra.mrb[0].mxu0 %v350
        %v506 = vpop.f32.mrb[0].mxu0
        %v507 = vadd.f32 %v382, %v506
        %v508 = vpop.f32.mrb[0].mxu0
        %v509 = vpop.f32.mrb[0].mxu0
        %v510 = vadd.f32 %v382, %v509
        %v511 = vpop.f32.mrb[0].mxu0
        %512 = vmatprep.mubr.bf16.mxu0 0
        %513 = vmatmul.mubr.bf16.gmra.mrb[0].mxu0 %v351
        %v514 = vpop.f32.mrb[0].mxu0
        %v515 = vadd.f32 %v382, %v514
        %v516 = vpop.f32.mrb[0].mxu0
        %v517 = vpop.f32.mrb[0].mxu0
        %v518 = vadd.f32 %v382, %v517
        %v519 = vpop.f32.mrb[0].mxu0
        %520 = vmatprep.mubr.bf16.mxu0 0
        %521 = vmatmul.mubr.bf16.gmra.mrb[0].mxu0 %v352
        %v522 = vpop.f32.mrb[0].mxu0
        %v523 = vadd.f32 %v382, %v522
        %v524 = vpop.f32.mrb[0].mxu0
        %v525 = vpop.f32.mrb[0].mxu0
        %v526 = vadd.f32 %v382, %v525
        %v527 = vpop.f32.mrb[0].mxu0
        %528 = vmatprep.mubr.bf16.mxu0 0
        %529 = vmatmul.mubr.bf16.gmra.mrb[0].mxu0 %v353
        %v530 = vpop.f32.mrb[0].mxu0
        %v531 = vadd.f32 %v382, %v530
        %v532 = vpop.f32.mrb[0].mxu0
        %v533 = vpop.f32.mrb[0].mxu0
        %v534 = vadd.f32 %v382, %v533
        %v535 = vpop.f32.mrb[0].mxu0
        %536 = vmatprep.mubr.bf16.mxu0 0
        %537 = vmatmul.mubr.bf16.gmra.mrb[0].mxu0 %v354
        %v538 = vpop.f32.mrb[0].mxu0
        %v539 = vadd.f32 %v382, %v538
        %v540 = vpop.f32.mrb[0].mxu0
        %v541 = vpop.f32.mrb[0].mxu0
        %v542 = vadd.f32 %v382, %v541
        %v543 = vpop.f32.mrb[0].mxu0
        %544 = vmatprep.mubr.bf16.mxu0 0
        %545 = vmatmul.mubr.bf16.gmra.mrb[0].mxu0 %v355
        %v546 = vpop.f32.mrb[0].mxu0
        %v547 = vadd.f32 %v382, %v546
        %v548 = vpop.f32.mrb[0].mxu0
        %v549 = vpop.f32.mrb[0].mxu0
        %v550 = vadd.f32 %v382, %v549
        %v551 = vpop.f32.mrb[0].mxu0
        %552 = vmatprep.mubr.bf16.mxu0 0
        %553 = vmatmul.mubr.bf16.gmra.mrb[0].mxu0 %v356
        %v554 = vpop.f32.mrb[0].mxu0
        %v555 = vadd.f32 %v382, %v554
        %v556 = vpop.f32.mrb[0].mxu0
        %v557 = vpop.f32.mrb[0].mxu0
        %v558 = vadd.f32 %v382, %v557
        %v559 = vpop.f32.mrb[0].mxu0
        %560 = vmatprep.mubr.bf16.mxu0 0
        %561 = vmatmul.mubr.bf16.gmra.mrb[0].mxu0 %v357
        %v562 = vpop.f32.mrb[0].mxu0
        %v563 = vadd.f32 %v382, %v562
        %v564 = vpop.f32.mrb[0].mxu0
        %v565 = vpop.f32.mrb[0].mxu0
        %v566 = vadd.f32 %v382, %v565
        %v567 = vpop.f32.mrb[0].mxu0
        %568 = vmatprep.mubr.bf16.mxu0 0
        %569 = vmatmul.mubr.bf16.gmra.mrb[0].mxu0 %v358
        %v570 = vpop.f32.mrb[0].mxu0
        %v571 = vadd.f32 %v382, %v570
        %v572 = vpop.f32.mrb[0].mxu0
        %v573 = vpop.f32.mrb[0].mxu0
        %v574 = vadd.f32 %v382, %v573
        %v575 = vpop.f32.mrb[0].mxu0
        %576 = vmatprep.mubr.bf16.mxu0 0
        %577 = vmatmul.mubr.bf16.gmra.mrb[0].mxu0 %v359
        %v578 = vpop.f32.mrb[0].mxu0
        %v579 = vadd.f32 %v382, %v578
        %v580 = vpop.f32.mrb[0].mxu0
        %v581 = vpop.f32.mrb[0].mxu0
        %v582 = vadd.f32 %v382, %v581
        %v583 = vpop.f32.mrb[0].mxu0
        %584 = vmatprep.mubr.bf16.mxu0 0
        %585 = vmatmul.mubr.bf16.gmra.mrb[0].mxu0 %v360
        %v586 = vpop.f32.mrb[0].mxu0
        %v587 = vadd.f32 %v382, %v586
        %v588 = vpop.f32.mrb[0].mxu0
        %v589 = vpop.f32.mrb[0].mxu0
        %v590 = vadd.f32 %v382, %v589
        %v591 = vpop.f32.mrb[0].mxu0
        %592 = vdwg.mxu0
        %v593 = vpack.c.bf16 %v470, %v467
        %v594 = vpack.c.bf16 %v478, %v475
        %v595 = vpack.c.bf16 %v486, %v483
        %v596 = vpack.c.bf16 %v494, %v491
        %v597 = vpack.c.bf16 %v502, %v499
        %v598 = vpack.c.bf16 %v510, %v507
        %v599 = vpack.c.bf16 %v518, %v515
        %v600 = vpack.c.bf16 %v526, %v523
        %v601 = vpack.c.bf16 %v534, %v531
        %v602 = vpack.c.bf16 %v542, %v539
        %v603 = vpack.c.bf16 %v550, %v547
        %v604 = vpack.c.bf16 %v558, %v555
        %v605 = vpack.c.bf16 %v566, %v563
        %v606 = vpack.c.bf16 %v574, %v571
        %v607 = vpack.c.bf16 %v582, %v579
        %v608 = vpack.c.bf16 %v590, %v587
        %609 = vxpose.xlu0.c.b16.start [1/8] %v593, 128
        %610 = vxpose.xlu0.c.b16.cont [2/8] %v594, 128
        %611 = vxpose.xlu0.c.b16.cont [3/8] %v595, 128
        %612 = vxpose.xlu0.c.b16.cont [4/8] %v596, 128
        %613 = vxpose.xlu0.c.b16.cont [5/8] %v597, 128
        %614 = vxpose.xlu0.c.b16.cont [6/8] %v598, 128
        %615 = vxpose.xlu0.c.b16.cont [7/8] %v599, 128
        %616 = vxpose.xlu0.c.b16.end [8/8] %v600, 128
        %v617 = vpop.trf.xlu0
        %v618 = vpop.trf.xlu0
        %v619 = vpop.trf.xlu0
        %v620 = vpop.trf.xlu0
        %v621 = vpop.trf.xlu0
        %v622 = vpop.trf.xlu0
        %v623 = vpop.trf.xlu0
        %v624 = vpop.trf.xlu0
        %625 = vxpose.xlu0.c.b16.start [1/8] %v601, 128
        %626 = vxpose.xlu0.c.b16.cont [2/8] %v602, 128
        %627 = vxpose.xlu0.c.b16.cont [3/8] %v603, 128
        %628 = vxpose.xlu0.c.b16.cont [4/8] %v604, 128
        %629 = vxpose.xlu0.c.b16.cont [5/8] %v605, 128
        %630 = vxpose.xlu0.c.b16.cont [6/8] %v606, 128
        %631 = vxpose.xlu0.c.b16.cont [7/8] %v607, 128
        %632 = vxpose.xlu0.c.b16.end [8/8] %v608, 128
        %v633 = vpop.trf.xlu0
        %v634 = vpop.trf.xlu0
        %v635 = vpop.trf.xlu0
        %v636 = vpop.trf.xlu0
        %v637 = vpop.trf.xlu0
        %v638 = vpop.trf.xlu0
        %v639 = vpop.trf.xlu0
        %v640 = vpop.trf.xlu0
        %v657 = vunpack.c.l.b16 %v617
        %v658 = vunpack.c.l.b16 %v633
        %v659 = vunpack.c.h.b16 %v617
        %v660 = vunpack.c.h.b16 %v633
        %v661 = vunpack.c.l.b16 %v618
        %v662 = vunpack.c.l.b16 %v634
        %v663 = vunpack.c.h.b16 %v618
        %v664 = vunpack.c.h.b16 %v634
        %v665 = vunpack.c.l.b16 %v619
        %v666 = vunpack.c.l.b16 %v635
        %v667 = vunpack.c.h.b16 %v619
        %v668 = vunpack.c.h.b16 %v635
        %v669 = vunpack.c.l.b16 %v620
        %v670 = vunpack.c.l.b16 %v636
        %v671 = vunpack.c.h.b16 %v620
        %v672 = vunpack.c.h.b16 %v636
        %v673 = vunpack.c.l.b16 %v621
        %v674 = vunpack.c.l.b16 %v637
        %v675 = vunpack.c.h.b16 %v621
        %v676 = vunpack.c.h.b16 %v637
        %v677 = vunpack.c.l.b16 %v622
        %v678 = vunpack.c.l.b16 %v638
        %v679 = vunpack.c.h.b16 %v622
        %v680 = vunpack.c.h.b16 %v638
        %v681 = vunpack.c.l.b16 %v623
        %v682 = vunpack.c.l.b16 %v639
        %v683 = vunpack.c.h.b16 %v623
        %v684 = vunpack.c.h.b16 %v639
        %v685 = vunpack.c.l.b16 %v624
        %v686 = vunpack.c.l.b16 %v640
        %v687 = vunpack.c.h.b16 %v624
        %v688 = vunpack.c.h.b16 %v640
        %v689 = vpack.c.b16 %v658, %v657
        %v690 = vpack.c.b16 %v660, %v659
        %v691 = vpack.c.b16 %v662, %v661
        %v692 = vpack.c.b16 %v664, %v663
        %v693 = vpack.c.b16 %v666, %v665
        %v694 = vpack.c.b16 %v668, %v667
        %v695 = vpack.c.b16 %v670, %v669
        %v696 = vpack.c.b16 %v672, %v671
        %v697 = vpack.c.b16 %v674, %v673
        %v698 = vpack.c.b16 %v676, %v675
        %v699 = vpack.c.b16 %v678, %v677
        %v700 = vpack.c.b16 %v680, %v679
        %v701 = vpack.c.b16 %v682, %v681
        %v702 = vpack.c.b16 %v684, %v683
        %v703 = vpack.c.b16 %v686, %v685
        %v704 = vpack.c.b16 %v688, %v687
        %721 = vst [vmem:[%s299] sm:$0xff] %v689
        %722 = vst [vmem:[%s299 + $0x8] sm:$0xff] %v690
        %723 = vst [vmem:[%s299 + $0x10] sm:$0xff] %v691
        %724 = vst [vmem:[%s299 + $0x18] sm:$0xff] %v692
        %725 = vst [vmem:[%s299 + $0x20] sm:$0xff] %v693
        %726 = vst [vmem:[%s299 + $0x28] sm:$0xff] %v694
        %727 = vst [vmem:[%s299 + $0x30] sm:$0xff] %v695
        %728 = vst [vmem:[%s299 + $0x38] sm:$0xff] %v696
        %729 = vst [vmem:[%s299 + $0x40] sm:$0xff] %v697
        %730 = vst [vmem:[%s299 + $0x48] sm:$0xff] %v698
        %731 = vst [vmem:[%s299 + $0x50] sm:$0xff] %v699
        %732 = vst [vmem:[%s299 + $0x58] sm:$0xff] %v700
        %733 = vst [vmem:[%s299 + $0x60] sm:$0xff] %v701
        %734 = vst [vmem:[%s299 + $0x68] sm:$0xff] %v702
        %735 = vst [vmem:[%s299 + $0x70] sm:$0xff] %v703
        %736 = vst [vmem:[%s299 + $0x78] sm:$0xff] %v704
        %v737 = vld [vmem:[#allocation7] sm:$0xf]
        %v738 = vld [vmem:[#allocation7 + $0x4] sm:$0xf]
        %v739 = vld [vmem:[#allocation7 + $0x8] sm:$0xf]
        %v740 = vld [vmem:[#allocation7 + $0xc] sm:$0xf]
        %v741 = vld [vmem:[#allocation7 + $0x10] sm:$0xf]
        %v742 = vld [vmem:[#allocation7 + $0x14] sm:$0xf]
        %v743 = vld [vmem:[#allocation7 + $0x18] sm:$0xf]
        %v744 = vld [vmem:[#allocation7 + $0x1c] sm:$0xf]
        %v745 = vld [vmem:[#allocation7 + $0x20] sm:$0xf]
        %v746 = vld [vmem:[#allocation7 + $0x24] sm:$0xf]
        %v747 = vld [vmem:[#allocation7 + $0x28] sm:$0xf]
        %v748 = vld [vmem:[#allocation7 + $0x2c] sm:$0xf]
        %v749 = vld [vmem:[#allocation7 + $0x30] sm:$0xf]
        %v750 = vld [vmem:[#allocation7 + $0x34] sm:$0xf]
        %v751 = vld [vmem:[#allocation7 + $0x38] sm:$0xf]
        %v752 = vld [vmem:[#allocation7 + $0x3c] sm:$0xf]
        %v753 = vld [vmem:[%s4] sm:$0x1]
        %v755 = vlaneseq
        %v756 = vshrl.u32 %v755, 7
        %v757 = vsub.s32 0, %v756
        %v758 = vrot.slane %v753, %v757
        %v776 = vunpack.c.l.b16 %v737
        %v777 = vunpack.c.l.b16 %v738
        %v778 = vunpack.c.l.b16 %v739
        %v779 = vunpack.c.l.b16 %v740
        %v780 = vunpack.c.l.b16 %v741
        %v781 = vunpack.c.l.b16 %v742
        %v782 = vunpack.c.l.b16 %v743
        %v783 = vunpack.c.l.b16 %v744
        %v784 = vunpack.c.l.b16 %v745
        %v785 = vunpack.c.l.b16 %v746
        %v786 = vunpack.c.l.b16 %v747
        %v787 = vunpack.c.l.b16 %v748
        %v788 = vunpack.c.l.b16 %v749
        %v789 = vunpack.c.l.b16 %v750
        %v790 = vunpack.c.l.b16 %v751
        %v791 = vunpack.c.l.b16 %v752
        %v792 = vpack.c.b16 %v777, %v776
        %v793 = vpack.c.b16 %v779, %v778
        %v794 = vpack.c.b16 %v781, %v780
        %v795 = vpack.c.b16 %v783, %v782
        %v796 = vpack.c.b16 %v785, %v784
        %v797 = vpack.c.b16 %v787, %v786
        %v798 = vpack.c.b16 %v789, %v788
        %v799 = vpack.c.b16 %v791, %v790
        %808 = vmatprep.subr.bf16.mxu0 0
        %809 = vmatpush1.bf16.msra.mxu0 %v792
        %810 = vmatprep.subr.bf16.mxu0 0
        %811 = vmatpush1.bf16.msra.mxu0 %v793
        %812 = vmatprep.subr.bf16.mxu0 0
        %813 = vmatpush1.bf16.msra.mxu0 %v794
        %814 = vmatprep.subr.bf16.mxu0 0
        %815 = vmatpush1.bf16.msra.mxu0 %v795
        %816 = vmatprep.subr.bf16.mxu0 0
        %817 = vmatpush1.bf16.msra.mxu0 %v796
        %818 = vmatprep.subr.bf16.mxu0 0
        %819 = vmatpush1.bf16.msra.mxu0 %v797
        %820 = vmatprep.subr.bf16.mxu0 0
        %821 = vmatpush1.bf16.msra.mxu0 %v798
        %822 = vmatprep.subr.bf16.mxu0 0
        %823 = vmatpush1.bf16.msra.mxu0 %v799
        %824 = vmatprep.subr.bf16.mxu0 0
        %825 = vmatpush1.bf16.msra.mxu0 0
        %826 = vmatprep.subr.bf16.mxu0 0
        %827 = vmatpush1.bf16.msra.mxu0 0
        %828 = vmatprep.subr.bf16.mxu0 0
        %829 = vmatpush1.bf16.msra.mxu0 0
        %830 = vmatprep.subr.bf16.mxu0 0
        %831 = vmatpush1.bf16.msra.mxu0 0
        %832 = vmatprep.subr.bf16.mxu0 0
        %833 = vmatpush1.bf16.msra.mxu0 0
        %834 = vmatprep.subr.bf16.mxu0 0
        %835 = vmatpush1.bf16.msra.mxu0 0
        %836 = vmatprep.subr.bf16.mxu0 0
        %837 = vmatpush1.bf16.msra.mxu0 0
        %838 = vmatprep.subr.bf16.mxu0 0
        %839 = vmatpush1.bf16.msra.mxu0 0
        %840 = vmatprep.mubr.bf16.mxu0 0
        %841 = vmatmul.mubr.bf16.gmra.mrb[0].mxu0 %v345
        %v842 = vpop.f32.mrb[0].mxu0
        %v843 = vadd.f32 %v758, %v842
        %v844 = vpop.f32.mrb[0].mxu0
        %v845 = vpop.f32.mrb[0].mxu0
        %v846 = vadd.f32 %v758, %v845
        %v847 = vpop.f32.mrb[0].mxu0
        %848 = vmatprep.mubr.bf16.mxu0 0
        %849 = vmatmul.mubr.bf16.gmra.mrb[0].mxu0 %v346
        %v850 = vpop.f32.mrb[0].mxu0
        %v851 = vadd.f32 %v758, %v850
        %v852 = vpop.f32.mrb[0].mxu0
        %v853 = vpop.f32.mrb[0].mxu0
        %v854 = vadd.f32 %v758, %v853
        %v855 = vpop.f32.mrb[0].mxu0
        %856 = vmatprep.mubr.bf16.mxu0 0
        %857 = vmatmul.mubr.bf16.gmra.mrb[0].mxu0 %v347
        %v858 = vpop.f32.mrb[0].mxu0
        %v859 = vadd.f32 %v758, %v858
        %v860 = vpop.f32.mrb[0].mxu0
        %v861 = vpop.f32.mrb[0].mxu0
        %v862 = vadd.f32 %v758, %v861
        %v863 = vpop.f32.mrb[0].mxu0
        %864 = vmatprep.mubr.bf16.mxu0 0
        %865 = vmatmul.mubr.bf16.gmra.mrb[0].mxu0 %v348
        %v866 = vpop.f32.mrb[0].mxu0
        %v867 = vadd.f32 %v758, %v866
        %v868 = vpop.f32.mrb[0].mxu0
        %v869 = vpop.f32.mrb[0].mxu0
        %v870 = vadd.f32 %v758, %v869
        %v871 = vpop.f32.mrb[0].mxu0
        %872 = vmatprep.mubr.bf16.mxu0 0
        %873 = vmatmul.mubr.bf16.gmra.mrb[0].mxu0 %v349
        %v874 = vpop.f32.mrb[0].mxu0
        %v875 = vadd.f32 %v758, %v874
        %v876 = vpop.f32.mrb[0].mxu0
        %v877 = vpop.f32.mrb[0].mxu0
        %v878 = vadd.f32 %v758, %v877
        %v879 = vpop.f32.mrb[0].mxu0
        %880 = vmatprep.mubr.bf16.mxu0 0
        %881 = vmatmul.mubr.bf16.gmra.mrb[0].mxu0 %v350
        %v882 = vpop.f32.mrb[0].mxu0
        %v883 = vadd.f32 %v758, %v882
        %v884 = vpop.f32.mrb[0].mxu0
        %v885 = vpop.f32.mrb[0].mxu0
        %v886 = vadd.f32 %v758, %v885
        %v887 = vpop.f32.mrb[0].mxu0
        %888 = vmatprep.mubr.bf16.mxu0 0
        %889 = vmatmul.mubr.bf16.gmra.mrb[0].mxu0 %v351
        %v890 = vpop.f32.mrb[0].mxu0
        %v891 = vadd.f32 %v758, %v890
        %v892 = vpop.f32.mrb[0].mxu0
        %v893 = vpop.f32.mrb[0].mxu0
        %v894 = vadd.f32 %v758, %v893
        %v895 = vpop.f32.mrb[0].mxu0
        %896 = vmatprep.mubr.bf16.mxu0 0
        %897 = vmatmul.mubr.bf16.gmra.mrb[0].mxu0 %v352
        %v898 = vpop.f32.mrb[0].mxu0
        %v899 = vadd.f32 %v758, %v898
        %v900 = vpop.f32.mrb[0].mxu0
        %v901 = vpop.f32.mrb[0].mxu0
        %v902 = vadd.f32 %v758, %v901
        %v903 = vpop.f32.mrb[0].mxu0
        %904 = vmatprep.mubr.bf16.mxu0 0
        %905 = vmatmul.mubr.bf16.gmra.mrb[0].mxu0 %v353
        %v906 = vpop.f32.mrb[0].mxu0
        %v907 = vadd.f32 %v758, %v906
        %v908 = vpop.f32.mrb[0].mxu0
        %v909 = vpop.f32.mrb[0].mxu0
        %v910 = vadd.f32 %v758, %v909
        %v911 = vpop.f32.mrb[0].mxu0
        %912 = vmatprep.mubr.bf16.mxu0 0
        %913 = vmatmul.mubr.bf16.gmra.mrb[0].mxu0 %v354
        %v914 = vpop.f32.mrb[0].mxu0
        %v915 = vadd.f32 %v758, %v914
        %v916 = vpop.f32.mrb[0].mxu0
        %v917 = vpop.f32.mrb[0].mxu0
        %v918 = vadd.f32 %v758, %v917
        %v919 = vpop.f32.mrb[0].mxu0
        %920 = vmatprep.mubr.bf16.mxu0 0
        %921 = vmatmul.mubr.bf16.gmra.mrb[0].mxu0 %v355
        %v922 = vpop.f32.mrb[0].mxu0
        %v923 = vadd.f32 %v758, %v922
        %v924 = vpop.f32.mrb[0].mxu0
        %v925 = vpop.f32.mrb[0].mxu0
        %v926 = vadd.f32 %v758, %v925
        %v927 = vpop.f32.mrb[0].mxu0
        %928 = vmatprep.mubr.bf16.mxu0 0
        %929 = vmatmul.mubr.bf16.gmra.mrb[0].mxu0 %v356
        %v930 = vpop.f32.mrb[0].mxu0
        %v931 = vadd.f32 %v758, %v930
        %v932 = vpop.f32.mrb[0].mxu0
        %v933 = vpop.f32.mrb[0].mxu0
        %v934 = vadd.f32 %v758, %v933
        %v935 = vpop.f32.mrb[0].mxu0
        %936 = vmatprep.mubr.bf16.mxu0 0
        %937 = vmatmul.mubr.bf16.gmra.mrb[0].mxu0 %v357
        %v938 = vpop.f32.mrb[0].mxu0
        %v939 = vadd.f32 %v758, %v938
        %v940 = vpop.f32.mrb[0].mxu0
        %v941 = vpop.f32.mrb[0].mxu0
        %v942 = vadd.f32 %v758, %v941
        %v943 = vpop.f32.mrb[0].mxu0
        %944 = vmatprep.mubr.bf16.mxu0 0
        %945 = vmatmul.mubr.bf16.gmra.mrb[0].mxu0 %v358
        %v946 = vpop.f32.mrb[0].mxu0
        %v947 = vadd.f32 %v758, %v946
        %v948 = vpop.f32.mrb[0].mxu0
        %v949 = vpop.f32.mrb[0].mxu0
        %v950 = vadd.f32 %v758, %v949
        %v951 = vpop.f32.mrb[0].mxu0
        %952 = vmatprep.mubr.bf16.mxu0 0
        %953 = vmatmul.mubr.bf16.gmra.mrb[0].mxu0 %v359
        %v954 = vpop.f32.mrb[0].mxu0
        %v955 = vadd.f32 %v758, %v954
        %v956 = vpop.f32.mrb[0].mxu0
        %v957 = vpop.f32.mrb[0].mxu0
        %v958 = vadd.f32 %v758, %v957
        %v959 = vpop.f32.mrb[0].mxu0
        %960 = vmatprep.mubr.bf16.mxu0 0
        %961 = vmatmul.mubr.bf16.gmra.mrb[0].mxu0 %v360
        %v962 = vpop.f32.mrb[0].mxu0
        %v963 = vadd.f32 %v758, %v962
        %v964 = vpop.f32.mrb[0].mxu0
        %v965 = vpop.f32.mrb[0].mxu0
        %v966 = vadd.f32 %v758, %v965
        %v967 = vpop.f32.mrb[0].mxu0
        %968 = vdwg.mxu0
        %v969 = vpack.c.bf16 %v846, %v843
        %v970 = vpack.c.bf16 %v854, %v851
        %v971 = vpack.c.bf16 %v862, %v859
        %v972 = vpack.c.bf16 %v870, %v867
        %v973 = vpack.c.bf16 %v878, %v875
        %v974 = vpack.c.bf16 %v886, %v883
        %v975 = vpack.c.bf16 %v894, %v891
        %v976 = vpack.c.bf16 %v902, %v899
        %v977 = vpack.c.bf16 %v910, %v907
        %v978 = vpack.c.bf16 %v918, %v915
        %v979 = vpack.c.bf16 %v926, %v923
        %v980 = vpack.c.bf16 %v934, %v931
        %v981 = vpack.c.bf16 %v942, %v939
        %v982 = vpack.c.bf16 %v950, %v947
        %v983 = vpack.c.bf16 %v958, %v955
        %v984 = vpack.c.bf16 %v966, %v963
        %1001 = vrot.lane.b32.xlu0 %v969, 96
        %v1002 = vpop.permute.xlu0 %1001
        %1003 = vrot.lane.b32.xlu0 %v970, 96
        %v1004 = vpop.permute.xlu0 %1003
        %1005 = vrot.lane.b32.xlu0 %v971, 96
        %v1006 = vpop.permute.xlu0 %1005
        %1007 = vrot.lane.b32.xlu0 %v972, 96
        %v1008 = vpop.permute.xlu0 %1007
        %1009 = vrot.lane.b32.xlu0 %v973, 96
        %v1010 = vpop.permute.xlu0 %1009
        %1011 = vrot.lane.b32.xlu0 %v974, 96
        %v1012 = vpop.permute.xlu0 %1011
        %1013 = vrot.lane.b32.xlu0 %v975, 96
        %v1014 = vpop.permute.xlu0 %1013
        %1015 = vrot.lane.b32.xlu0 %v976, 96
        %v1016 = vpop.permute.xlu0 %1015
        %1017 = vrot.lane.b32.xlu0 %v977, 96
        %v1018 = vpop.permute.xlu0 %1017
        %1019 = vrot.lane.b32.xlu0 %v978, 96
        %v1020 = vpop.permute.xlu0 %1019
        %1021 = vrot.lane.b32.xlu0 %v979, 96
        %v1022 = vpop.permute.xlu0 %1021
        %1023 = vrot.lane.b32.xlu0 %v980, 96
        %v1024 = vpop.permute.xlu0 %1023
        %1025 = vrot.lane.b32.xlu0 %v981, 96
        %v1026 = vpop.permute.xlu0 %1025
        %1027 = vrot.lane.b32.xlu0 %v982, 96
        %v1028 = vpop.permute.xlu0 %1027
        %1029 = vrot.lane.b32.xlu0 %v983, 96
        %v1030 = vpop.permute.xlu0 %1029
        %1031 = vrot.lane.b32.xlu0 %v984, 96
        %v1032 = vpop.permute.xlu0 %1031
        %1033 = vrot.lane.b32.xlu0 %v969, 64
        %v1034 = vpop.permute.xlu0 %1033
        %1035 = vrot.lane.b32.xlu0 %v970, 64
        %v1036 = vpop.permute.xlu0 %1035
        %1037 = vrot.lane.b32.xlu0 %v971, 64
        %v1038 = vpop.permute.xlu0 %1037
        %1039 = vrot.lane.b32.xlu0 %v972, 64
        %v1040 = vpop.permute.xlu0 %1039
        %1041 = vrot.lane.b32.xlu0 %v973, 64
        %v1042 = vpop.permute.xlu0 %1041
        %1043 = vrot.lane.b32.xlu0 %v974, 64
        %v1044 = vpop.permute.xlu0 %1043
        %1045 = vrot.lane.b32.xlu0 %v975, 64
        %v1046 = vpop.permute.xlu0 %1045
        %1047 = vrot.lane.b32.xlu0 %v976, 64
        %v1048 = vpop.permute.xlu0 %1047
        %1049 = vrot.lane.b32.xlu0 %v977, 64
        %v1050 = vpop.permute.xlu0 %1049
        %1051 = vrot.lane.b32.xlu0 %v978, 64
        %v1052 = vpop.permute.xlu0 %1051
        %1053 = vrot.lane.b32.xlu0 %v979, 64
        %v1054 = vpop.permute.xlu0 %1053
        %1055 = vrot.lane.b32.xlu0 %v980, 64
        %v1056 = vpop.permute.xlu0 %1055
        %1057 = vrot.lane.b32.xlu0 %v981, 64
        %v1058 = vpop.permute.xlu0 %1057
        %1059 = vrot.lane.b32.xlu0 %v982, 64
        %v1060 = vpop.permute.xlu0 %1059
        %1061 = vrot.lane.b32.xlu0 %v983, 64
        %v1062 = vpop.permute.xlu0 %1061
        %1063 = vrot.lane.b32.xlu0 %v984, 64
        %v1064 = vpop.permute.xlu0 %1063
        %1065 = vrot.lane.b32.xlu0 %v969, 32
        %v1066 = vpop.permute.xlu0 %1065
        %1067 = vrot.lane.b32.xlu0 %v970, 32
        %v1068 = vpop.permute.xlu0 %1067
        %1069 = vrot.lane.b32.xlu0 %v971, 32
        %v1070 = vpop.permute.xlu0 %1069
        %1071 = vrot.lane.b32.xlu0 %v972, 32
        %v1072 = vpop.permute.xlu0 %1071
        %1073 = vrot.lane.b32.xlu0 %v973, 32
        %v1074 = vpop.permute.xlu0 %1073
        %1075 = vrot.lane.b32.xlu0 %v974, 32
        %v1076 = vpop.permute.xlu0 %1075
        %1077 = vrot.lane.b32.xlu0 %v975, 32
        %v1078 = vpop.permute.xlu0 %1077
        %1079 = vrot.lane.b32.xlu0 %v976, 32
        %v1080 = vpop.permute.xlu0 %1079
        %1081 = vrot.lane.b32.xlu0 %v977, 32
        %v1082 = vpop.permute.xlu0 %1081
        %1083 = vrot.lane.b32.xlu0 %v978, 32
        %v1084 = vpop.permute.xlu0 %1083
        %1085 = vrot.lane.b32.xlu0 %v979, 32
        %v1086 = vpop.permute.xlu0 %1085
        %1087 = vrot.lane.b32.xlu0 %v980, 32
        %v1088 = vpop.permute.xlu0 %1087
        %1089 = vrot.lane.b32.xlu0 %v981, 32
        %v1090 = vpop.permute.xlu0 %1089
        %1091 = vrot.lane.b32.xlu0 %v982, 32
        %v1092 = vpop.permute.xlu0 %1091
        %1093 = vrot.lane.b32.xlu0 %v983, 32
        %v1094 = vpop.permute.xlu0 %1093
        %1095 = vrot.lane.b32.xlu0 %v984, 32
        %v1096 = vpop.permute.xlu0 %1095
        %v1099 = vpack.i.b16 %v1002, %v969
        %v1101 = vshrl.u32 %v969, 16
        %v1102 = vshrl.u32 %v1002, 16
        %v1103 = vpack.i.b16 %v1102, %v1101
        %v1107 = vpack.i.b16 %v1066, %v1034
        %v1109 = vshrl.u32 %v1034, 16
        %v1110 = vshrl.u32 %v1066, 16
        %v1111 = vpack.i.b16 %v1110, %v1109
        %v1114 = vpack.i.b16 0, 0
        %v1116 = vshrl.u32 0, 16
        %v1117 = vpack.i.b16 %v1116, %v1116
        %v1121 = vpack.i.b16 %v1004, %v970
        %v1123 = vshrl.u32 %v970, 16
        %v1124 = vshrl.u32 %v1004, 16
        %v1125 = vpack.i.b16 %v1124, %v1123
        %v1129 = vpack.i.b16 %v1068, %v1036
        %v1131 = vshrl.u32 %v1036, 16
        %v1132 = vshrl.u32 %v1068, 16
        %v1133 = vpack.i.b16 %v1132, %v1131
        %v1137 = vpack.i.b16 %v1006, %v971
        %v1139 = vshrl.u32 %v971, 16
        %v1140 = vshrl.u32 %v1006, 16
        %v1141 = vpack.i.b16 %v1140, %v1139
        %v1145 = vpack.i.b16 %v1070, %v1038
        %v1147 = vshrl.u32 %v1038, 16
        %v1148 = vshrl.u32 %v1070, 16
        %v1149 = vpack.i.b16 %v1148, %v1147
        %v1153 = vpack.i.b16 %v1008, %v972
        %v1155 = vshrl.u32 %v972, 16
        %v1156 = vshrl.u32 %v1008, 16
        %v1157 = vpack.i.b16 %v1156, %v1155
        %v1161 = vpack.i.b16 %v1072, %v1040
        %v1163 = vshrl.u32 %v1040, 16
        %v1164 = vshrl.u32 %v1072, 16
        %v1165 = vpack.i.b16 %v1164, %v1163
        %v1169 = vpack.i.b16 %v1010, %v973
        %v1171 = vshrl.u32 %v973, 16
        %v1172 = vshrl.u32 %v1010, 16
        %v1173 = vpack.i.b16 %v1172, %v1171
        %v1177 = vpack.i.b16 %v1074, %v1042
        %v1179 = vshrl.u32 %v1042, 16
        %v1180 = vshrl.u32 %v1074, 16
        %v1181 = vpack.i.b16 %v1180, %v1179
        %v1185 = vpack.i.b16 %v1012, %v974
        %v1187 = vshrl.u32 %v974, 16
        %v1188 = vshrl.u32 %v1012, 16
        %v1189 = vpack.i.b16 %v1188, %v1187
        %v1193 = vpack.i.b16 %v1076, %v1044
        %v1195 = vshrl.u32 %v1044, 16
        %v1196 = vshrl.u32 %v1076, 16
        %v1197 = vpack.i.b16 %v1196, %v1195
        %v1201 = vpack.i.b16 %v1014, %v975
        %v1203 = vshrl.u32 %v975, 16
        %v1204 = vshrl.u32 %v1014, 16
        %v1205 = vpack.i.b16 %v1204, %v1203
        %v1209 = vpack.i.b16 %v1078, %v1046
        %v1211 = vshrl.u32 %v1046, 16
        %v1212 = vshrl.u32 %v1078, 16
        %v1213 = vpack.i.b16 %v1212, %v1211
        %v1217 = vpack.i.b16 %v1016, %v976
        %v1219 = vshrl.u32 %v976, 16
        %v1220 = vshrl.u32 %v1016, 16
        %v1221 = vpack.i.b16 %v1220, %v1219
        %v1225 = vpack.i.b16 %v1080, %v1048
        %v1227 = vshrl.u32 %v1048, 16
        %v1228 = vshrl.u32 %v1080, 16
        %v1229 = vpack.i.b16 %v1228, %v1227
        %v1233 = vpack.i.b16 %v1018, %v977
        %v1235 = vshrl.u32 %v977, 16
        %v1236 = vshrl.u32 %v1018, 16
        %v1237 = vpack.i.b16 %v1236, %v1235
        %v1241 = vpack.i.b16 %v1082, %v1050
        %v1243 = vshrl.u32 %v1050, 16
        %v1244 = vshrl.u32 %v1082, 16
        %v1245 = vpack.i.b16 %v1244, %v1243
        %v1249 = vpack.i.b16 %v1020, %v978
        %v1251 = vshrl.u32 %v978, 16
        %v1252 = vshrl.u32 %v1020, 16
        %v1253 = vpack.i.b16 %v1252, %v1251
        %v1257 = vpack.i.b16 %v1084, %v1052
        %v1259 = vshrl.u32 %v1052, 16
        %v1260 = vshrl.u32 %v1084, 16
        %v1261 = vpack.i.b16 %v1260, %v1259
        %v1265 = vpack.i.b16 %v1022, %v979
        %v1267 = vshrl.u32 %v979, 16
        %v1268 = vshrl.u32 %v1022, 16
        %v1269 = vpack.i.b16 %v1268, %v1267
        %v1273 = vpack.i.b16 %v1086, %v1054
        %v1275 = vshrl.u32 %v1054, 16
        %v1276 = vshrl.u32 %v1086, 16
        %v1277 = vpack.i.b16 %v1276, %v1275
        %v1281 = vpack.i.b16 %v1024, %v980
        %v1283 = vshrl.u32 %v980, 16
        %v1284 = vshrl.u32 %v1024, 16
        %v1285 = vpack.i.b16 %v1284, %v1283
        %v1289 = vpack.i.b16 %v1088, %v1056
        %v1291 = vshrl.u32 %v1056, 16
        %v1292 = vshrl.u32 %v1088, 16
        %v1293 = vpack.i.b16 %v1292, %v1291
        %v1297 = vpack.i.b16 %v1026, %v981
        %v1299 = vshrl.u32 %v981, 16
        %v1300 = vshrl.u32 %v1026, 16
        %v1301 = vpack.i.b16 %v1300, %v1299
        %v1305 = vpack.i.b16 %v1090, %v1058
        %v1307 = vshrl.u32 %v1058, 16
        %v1308 = vshrl.u32 %v1090, 16
        %v1309 = vpack.i.b16 %v1308, %v1307
        %v1313 = vpack.i.b16 %v1028, %v982
        %v1315 = vshrl.u32 %v982, 16
        %v1316 = vshrl.u32 %v1028, 16
        %v1317 = vpack.i.b16 %v1316, %v1315
        %v1321 = vpack.i.b16 %v1092, %v1060
        %v1323 = vshrl.u32 %v1060, 16
        %v1324 = vshrl.u32 %v1092, 16
        %v1325 = vpack.i.b16 %v1324, %v1323
        %v1329 = vpack.i.b16 %v1030, %v983
        %v1331 = vshrl.u32 %v983, 16
        %v1332 = vshrl.u32 %v1030, 16
        %v1333 = vpack.i.b16 %v1332, %v1331
        %v1337 = vpack.i.b16 %v1094, %v1062
        %v1339 = vshrl.u32 %v1062, 16
        %v1340 = vshrl.u32 %v1094, 16
        %v1341 = vpack.i.b16 %v1340, %v1339
        %v1345 = vpack.i.b16 %v1032, %v984
        %v1347 = vshrl.u32 %v984, 16
        %v1348 = vshrl.u32 %v1032, 16
        %v1349 = vpack.i.b16 %v1348, %v1347
        %v1353 = vpack.i.b16 %v1096, %v1064
        %v1355 = vshrl.u32 %v1064, 16
        %v1356 = vshrl.u32 %v1096, 16
        %v1357 = vpack.i.b16 %v1356, %v1355
        %v1359 = vcombine.high %v1099, %v1114
        %v1361 = vunpack.c.l.s4 1983009808
        %v1362 = vunpack.c.0.s8 %v1361
        %v1363 = vlaneseq
        %v1364 = vshrl.u32 %v1363, 7
        %v1365 = vsub.s32 %v1362, %v1364
        %v1366 = vrot.slane %v1099, %v1365
        %v1368 = vunpack.c.l.s4 1983009808
        %v1369 = vunpack.c.0.s8 %v1368
        %v1370 = vlaneseq
        %v1371 = vshrl.u32 %v1370, 7
        %v1372 = vsub.s32 %v1369, %v1371
        %v1373 = vrot.slane %v1359, %v1372
        %v1374 = vcombine.high %v1107, %v1114
        %v1376 = vunpack.c.l.s4 1983009808
        %v1377 = vunpack.c.0.s8 %v1376
        %v1378 = vlaneseq
        %v1379 = vshrl.u32 %v1378, 7
        %v1380 = vsub.s32 %v1377, %v1379
        %v1381 = vrot.slane %v1107, %v1380
        %v1383 = vunpack.c.l.s4 1983009808
        %v1384 = vunpack.c.0.s8 %v1383
        %v1385 = vlaneseq
        %v1386 = vshrl.u32 %v1385, 7
        %v1387 = vsub.s32 %v1384, %v1386
        %v1388 = vrot.slane %v1374, %v1387
        %v1389 = vcombine.low %v1366, %v1381
        %v1390 = vcombine.high %v1366, %v1381
        %v1392 = vunpack.c.l.s4 1934713408
        %v1393 = vunpack.c.0.s8 %v1392
        %v1394 = vlaneseq
        %v1395 = vshrl.u32 %v1394, 7
        %v1396 = vsub.s32 %v1393, %v1395
        %v1397 = vrot.slane %v1389, %v1396
        %v1399 = vunpack.c.l.s4 1934713408
        %v1400 = vunpack.c.0.s8 %v1399
        %v1401 = vlaneseq
        %v1402 = vshrl.u32 %v1401, 7
        %v1403 = vsub.s32 %v1400, %v1402
        %v1404 = vrot.slane %v1390, %v1403
        %v1405 = vcombine.low %v1373, %v1388
        %v1406 = vcombine.high %v1373, %v1388
        %v1408 = vunpack.c.l.s4 1934713408
        %v1409 = vunpack.c.0.s8 %v1408
        %v1410 = vlaneseq
        %v1411 = vshrl.u32 %v1410, 7
        %v1412 = vsub.s32 %v1409, %v1411
        %v1413 = vrot.slane %v1405, %v1412
        %v1415 = vunpack.c.l.s4 1934713408
        %v1416 = vunpack.c.0.s8 %v1415
        %v1417 = vlaneseq
        %v1418 = vshrl.u32 %v1417, 7
        %v1419 = vsub.s32 %v1416, %v1418
        %v1420 = vrot.slane %v1406, %v1419
        %v1421 = vcombine.high %v1397, 0
        %v1422 = vcombine.high %v1404, 0
        %v1423 = vcombine.high %v1413, 0
        %v1424 = vcombine.high %v1420, 0
        %v1425 = vcombine.high %v1103, %v1117
        %v1427 = vunpack.c.l.s4 1983009808
        %v1428 = vunpack.c.0.s8 %v1427
        %v1429 = vlaneseq
        %v1430 = vshrl.u32 %v1429, 7
        %v1431 = vsub.s32 %v1428, %v1430
        %v1432 = vrot.slane %v1103, %v1431
        %v1434 = vunpack.c.l.s4 1983009808
        %v1435 = vunpack.c.0.s8 %v1434
        %v1436 = vlaneseq
        %v1437 = vshrl.u32 %v1436, 7
        %v1438 = vsub.s32 %v1435, %v1437
        %v1439 = vrot.slane %v1425, %v1438
        %v1440 = vcombine.high %v1111, %v1117
        %v1442 = vunpack.c.l.s4 1983009808
        %v1443 = vunpack.c.0.s8 %v1442
        %v1444 = vlaneseq
        %v1445 = vshrl.u32 %v1444, 7
        %v1446 = vsub.s32 %v1443, %v1445
        %v1447 = vrot.slane %v1111, %v1446
        %v1449 = vunpack.c.l.s4 1983009808
        %v1450 = vunpack.c.0.s8 %v1449
        %v1451 = vlaneseq
        %v1452 = vshrl.u32 %v1451, 7
        %v1453 = vsub.s32 %v1450, %v1452
        %v1454 = vrot.slane %v1440, %v1453
        %v1455 = vcombine.low %v1432, %v1447
        %v1456 = vcombine.high %v1432, %v1447
        %v1458 = vunpack.c.l.s4 1934713408
        %v1459 = vunpack.c.0.s8 %v1458
        %v1460 = vlaneseq
        %v1461 = vshrl.u32 %v1460, 7
        %v1462 = vsub.s32 %v1459, %v1461
        %v1463 = vrot.slane %v1455, %v1462
        %v1465 = vunpack.c.l.s4 1934713408
        %v1466 = vunpack.c.0.s8 %v1465
        %v1467 = vlaneseq
        %v1468 = vshrl.u32 %v1467, 7
        %v1469 = vsub.s32 %v1466, %v1468
        %v1470 = vrot.slane %v1456, %v1469
        %v1471 = vcombine.low %v1439, %v1454
        %v1472 = vcombine.high %v1439, %v1454
        %v1474 = vunpack.c.l.s4 1934713408
        %v1475 = vunpack.c.0.s8 %v1474
        %v1476 = vlaneseq
        %v1477 = vshrl.u32 %v1476, 7
        %v1478 = vsub.s32 %v1475, %v1477
        %v1479 = vrot.slane %v1471, %v1478
        %v1481 = vunpack.c.l.s4 1934713408
        %v1482 = vunpack.c.0.s8 %v1481
        %v1483 = vlaneseq
        %v1484 = vshrl.u32 %v1483, 7
        %v1485 = vsub.s32 %v1482, %v1484
        %v1486 = vrot.slane %v1472, %v1485
        %v1487 = vcombine.high %v1463, 0
        %v1488 = vcombine.high %v1470, 0
        %v1489 = vcombine.high %v1479, 0
        %v1490 = vcombine.high %v1486, 0
        %v1491 = vcombine.high %v1121, %v1114
        %v1493 = vunpack.c.l.s4 1983009808
        %v1494 = vunpack.c.0.s8 %v1493
        %v1495 = vlaneseq
        %v1496 = vshrl.u32 %v1495, 7
        %v1497 = vsub.s32 %v1494, %v1496
        %v1498 = vrot.slane %v1121, %v1497
        %v1500 = vunpack.c.l.s4 1983009808
        %v1501 = vunpack.c.0.s8 %v1500
        %v1502 = vlaneseq
        %v1503 = vshrl.u32 %v1502, 7
        %v1504 = vsub.s32 %v1501, %v1503
        %v1505 = vrot.slane %v1491, %v1504
        %v1506 = vcombine.high %v1129, %v1114
        %v1508 = vunpack.c.l.s4 1983009808
        %v1509 = vunpack.c.0.s8 %v1508
        %v1510 = vlaneseq
        %v1511 = vshrl.u32 %v1510, 7
        %v1512 = vsub.s32 %v1509, %v1511
        %v1513 = vrot.slane %v1129, %v1512
        %v1515 = vunpack.c.l.s4 1983009808
        %v1516 = vunpack.c.0.s8 %v1515
        %v1517 = vlaneseq
        %v1518 = vshrl.u32 %v1517, 7
        %v1519 = vsub.s32 %v1516, %v1518
        %v1520 = vrot.slane %v1506, %v1519
        %v1521 = vcombine.low %v1498, %v1513
        %v1522 = vcombine.high %v1498, %v1513
        %v1524 = vunpack.c.l.s4 1934713408
        %v1525 = vunpack.c.0.s8 %v1524
        %v1526 = vlaneseq
        %v1527 = vshrl.u32 %v1526, 7
        %v1528 = vsub.s32 %v1525, %v1527
        %v1529 = vrot.slane %v1521, %v1528
        %v1531 = vunpack.c.l.s4 1934713408
        %v1532 = vunpack.c.0.s8 %v1531
        %v1533 = vlaneseq
        %v1534 = vshrl.u32 %v1533, 7
        %v1535 = vsub.s32 %v1532, %v1534
        %v1536 = vrot.slane %v1522, %v1535
        %v1537 = vcombine.low %v1505, %v1520
        %v1538 = vcombine.high %v1505, %v1520
        %v1540 = vunpack.c.l.s4 1934713408
        %v1541 = vunpack.c.0.s8 %v1540
        %v1542 = vlaneseq
        %v1543 = vshrl.u32 %v1542, 7
        %v1544 = vsub.s32 %v1541, %v1543
        %v1545 = vrot.slane %v1537, %v1544
        %v1547 = vunpack.c.l.s4 1934713408
        %v1548 = vunpack.c.0.s8 %v1547
        %v1549 = vlaneseq
        %v1550 = vshrl.u32 %v1549, 7
        %v1551 = vsub.s32 %v1548, %v1550
        %v1552 = vrot.slane %v1538, %v1551
        %v1553 = vcombine.high %v1529, 0
        %v1554 = vcombine.high %v1536, 0
        %v1555 = vcombine.high %v1545, 0
        %v1556 = vcombine.high %v1552, 0
        %v1557 = vcombine.high %v1125, %v1117
        %v1559 = vunpack.c.l.s4 1983009808
        %v1560 = vunpack.c.0.s8 %v1559
        %v1561 = vlaneseq
        %v1562 = vshrl.u32 %v1561, 7
        %v1563 = vsub.s32 %v1560, %v1562
        %v1564 = vrot.slane %v1125, %v1563
        %v1566 = vunpack.c.l.s4 1983009808
        %v1567 = vunpack.c.0.s8 %v1566
        %v1568 = vlaneseq
        %v1569 = vshrl.u32 %v1568, 7
        %v1570 = vsub.s32 %v1567, %v1569
        %v1571 = vrot.slane %v1557, %v1570
        %v1572 = vcombine.high %v1133, %v1117
        %v1574 = vunpack.c.l.s4 1983009808
        %v1575 = vunpack.c.0.s8 %v1574
        %v1576 = vlaneseq
        %v1577 = vshrl.u32 %v1576, 7
        %v1578 = vsub.s32 %v1575, %v1577
        %v1579 = vrot.slane %v1133, %v1578
        %v1581 = vunpack.c.l.s4 1983009808
        %v1582 = vunpack.c.0.s8 %v1581
        %v1583 = vlaneseq
        %v1584 = vshrl.u32 %v1583, 7
        %v1585 = vsub.s32 %v1582, %v1584
        %v1586 = vrot.slane %v1572, %v1585
        %v1587 = vcombine.low %v1564, %v1579
        %v1588 = vcombine.high %v1564, %v1579
        %v1590 = vunpack.c.l.s4 1934713408
        %v1591 = vunpack.c.0.s8 %v1590
        %v1592 = vlaneseq
        %v1593 = vshrl.u32 %v1592, 7
        %v1594 = vsub.s32 %v1591, %v1593
        %v1595 = vrot.slane %v1587, %v1594
        %v1597 = vunpack.c.l.s4 1934713408
        %v1598 = vunpack.c.0.s8 %v1597
        %v1599 = vlaneseq
        %v1600 = vshrl.u32 %v1599, 7
        %v1601 = vsub.s32 %v1598, %v1600
        %v1602 = vrot.slane %v1588, %v1601
        %v1603 = vcombine.low %v1571, %v1586
        %v1604 = vcombine.high %v1571, %v1586
        %v1606 = vunpack.c.l.s4 1934713408
        %v1607 = vunpack.c.0.s8 %v1606
        %v1608 = vlaneseq
        %v1609 = vshrl.u32 %v1608, 7
        %v1610 = vsub.s32 %v1607, %v1609
        %v1611 = vrot.slane %v1603, %v1610
        %v1613 = vunpack.c.l.s4 1934713408
        %v1614 = vunpack.c.0.s8 %v1613
        %v1615 = vlaneseq
        %v1616 = vshrl.u32 %v1615, 7
        %v1617 = vsub.s32 %v1614, %v1616
        %v1618 = vrot.slane %v1604, %v1617
        %v1619 = vcombine.high %v1595, 0
        %v1620 = vcombine.high %v1602, 0
        %v1621 = vcombine.high %v1611, 0
        %v1622 = vcombine.high %v1618, 0
        %v1623 = vcombine.high %v1137, %v1114
        %v1625 = vunpack.c.l.s4 1983009808
        %v1626 = vunpack.c.0.s8 %v1625
        %v1627 = vlaneseq
        %v1628 = vshrl.u32 %v1627, 7
        %v1629 = vsub.s32 %v1626, %v1628
        %v1630 = vrot.slane %v1137, %v1629
        %v1632 = vunpack.c.l.s4 1983009808
        %v1633 = vunpack.c.0.s8 %v1632
        %v1634 = vlaneseq
        %v1635 = vshrl.u32 %v1634, 7
        %v1636 = vsub.s32 %v1633, %v1635
        %v1637 = vrot.slane %v1623, %v1636
        %v1638 = vcombine.high %v1145, %v1114
        %v1640 = vunpack.c.l.s4 1983009808
        %v1641 = vunpack.c.0.s8 %v1640
        %v1642 = vlaneseq
        %v1643 = vshrl.u32 %v1642, 7
        %v1644 = vsub.s32 %v1641, %v1643
        %v1645 = vrot.slane %v1145, %v1644
        %v1647 = vunpack.c.l.s4 1983009808
        %v1648 = vunpack.c.0.s8 %v1647
        %v1649 = vlaneseq
        %v1650 = vshrl.u32 %v1649, 7
        %v1651 = vsub.s32 %v1648, %v1650
        %v1652 = vrot.slane %v1638, %v1651
        %v1653 = vcombine.low %v1630, %v1645
        %v1654 = vcombine.high %v1630, %v1645
        %v1656 = vunpack.c.l.s4 1934713408
        %v1657 = vunpack.c.0.s8 %v1656
        %v1658 = vlaneseq
        %v1659 = vshrl.u32 %v1658, 7
        %v1660 = vsub.s32 %v1657, %v1659
        %v1661 = vrot.slane %v1653, %v1660
        %v1663 = vunpack.c.l.s4 1934713408
        %v1664 = vunpack.c.0.s8 %v1663
        %v1665 = vlaneseq
        %v1666 = vshrl.u32 %v1665, 7
        %v1667 = vsub.s32 %v1664, %v1666
        %v1668 = vrot.slane %v1654, %v1667
        %v1669 = vcombine.low %v1637, %v1652
        %v1670 = vcombine.high %v1637, %v1652
        %v1672 = vunpack.c.l.s4 1934713408
        %v1673 = vunpack.c.0.s8 %v1672
        %v1674 = vlaneseq
        %v1675 = vshrl.u32 %v1674, 7
        %v1676 = vsub.s32 %v1673, %v1675
        %v1677 = vrot.slane %v1669, %v1676
        %v1679 = vunpack.c.l.s4 1934713408
        %v1680 = vunpack.c.0.s8 %v1679
        %v1681 = vlaneseq
        %v1682 = vshrl.u32 %v1681, 7
        %v1683 = vsub.s32 %v1680, %v1682
        %v1684 = vrot.slane %v1670, %v1683
        %v1685 = vcombine.high %v1661, 0
        %v1686 = vcombine.high %v1668, 0
        %v1687 = vcombine.high %v1677, 0
        %v1688 = vcombine.high %v1684, 0
        %v1689 = vcombine.high %v1141, %v1117
        %v1691 = vunpack.c.l.s4 1983009808
        %v1692 = vunpack.c.0.s8 %v1691
        %v1693 = vlaneseq
        %v1694 = vshrl.u32 %v1693, 7
        %v1695 = vsub.s32 %v1692, %v1694
        %v1696 = vrot.slane %v1141, %v1695
        %v1698 = vunpack.c.l.s4 1983009808
        %v1699 = vunpack.c.0.s8 %v1698
        %v1700 = vlaneseq
        %v1701 = vshrl.u32 %v1700, 7
        %v1702 = vsub.s32 %v1699, %v1701
        %v1703 = vrot.slane %v1689, %v1702
        %v1704 = vcombine.high %v1149, %v1117
        %v1706 = vunpack.c.l.s4 1983009808
        %v1707 = vunpack.c.0.s8 %v1706
        %v1708 = vlaneseq
        %v1709 = vshrl.u32 %v1708, 7
        %v1710 = vsub.s32 %v1707, %v1709
        %v1711 = vrot.slane %v1149, %v1710
        %v1713 = vunpack.c.l.s4 1983009808
        %v1714 = vunpack.c.0.s8 %v1713
        %v1715 = vlaneseq
        %v1716 = vshrl.u32 %v1715, 7
        %v1717 = vsub.s32 %v1714, %v1716
        %v1718 = vrot.slane %v1704, %v1717
        %v1719 = vcombine.low %v1696, %v1711
        %v1720 = vcombine.high %v1696, %v1711
        %v1722 = vunpack.c.l.s4 1934713408
        %v1723 = vunpack.c.0.s8 %v1722
        %v1724 = vlaneseq
        %v1725 = vshrl.u32 %v1724, 7
        %v1726 = vsub.s32 %v1723, %v1725
        %v1727 = vrot.slane %v1719, %v1726
        %v1729 = vunpack.c.l.s4 1934713408
        %v1730 = vunpack.c.0.s8 %v1729
        %v1731 = vlaneseq
        %v1732 = vshrl.u32 %v1731, 7
        %v1733 = vsub.s32 %v1730, %v1732
        %v1734 = vrot.slane %v1720, %v1733
        %v1735 = vcombine.low %v1703, %v1718
        %v1736 = vcombine.high %v1703, %v1718
        %v1738 = vunpack.c.l.s4 1934713408
        %v1739 = vunpack.c.0.s8 %v1738
        %v1740 = vlaneseq
        %v1741 = vshrl.u32 %v1740, 7
        %v1742 = vsub.s32 %v1739, %v1741
        %v1743 = vrot.slane %v1735, %v1742
        %v1745 = vunpack.c.l.s4 1934713408
        %v1746 = vunpack.c.0.s8 %v1745
        %v1747 = vlaneseq
        %v1748 = vshrl.u32 %v1747, 7
        %v1749 = vsub.s32 %v1746, %v1748
        %v1750 = vrot.slane %v1736, %v1749
        %v1751 = vcombine.high %v1727, 0
        %v1752 = vcombine.high %v1734, 0
        %v1753 = vcombine.high %v1743, 0
        %v1754 = vcombine.high %v1750, 0
        %v1755 = vcombine.high %v1153, %v1114
        %v1757 = vunpack.c.l.s4 1983009808
        %v1758 = vunpack.c.0.s8 %v1757
        %v1759 = vlaneseq
        %v1760 = vshrl.u32 %v1759, 7
        %v1761 = vsub.s32 %v1758, %v1760
        %v1762 = vrot.slane %v1153, %v1761
        %v1764 = vunpack.c.l.s4 1983009808
        %v1765 = vunpack.c.0.s8 %v1764
        %v1766 = vlaneseq
        %v1767 = vshrl.u32 %v1766, 7
        %v1768 = vsub.s32 %v1765, %v1767
        %v1769 = vrot.slane %v1755, %v1768
        %v1770 = vcombine.high %v1161, %v1114
        %v1772 = vunpack.c.l.s4 1983009808
        %v1773 = vunpack.c.0.s8 %v1772
        %v1774 = vlaneseq
        %v1775 = vshrl.u32 %v1774, 7
        %v1776 = vsub.s32 %v1773, %v1775
        %v1777 = vrot.slane %v1161, %v1776
        %v1779 = vunpack.c.l.s4 1983009808
        %v1780 = vunpack.c.0.s8 %v1779
        %v1781 = vlaneseq
        %v1782 = vshrl.u32 %v1781, 7
        %v1783 = vsub.s32 %v1780, %v1782
        %v1784 = vrot.slane %v1770, %v1783
        %v1785 = vcombine.low %v1762, %v1777
        %v1786 = vcombine.high %v1762, %v1777
        %v1788 = vunpack.c.l.s4 1934713408
        %v1789 = vunpack.c.0.s8 %v1788
        %v1790 = vlaneseq
        %v1791 = vshrl.u32 %v1790, 7
        %v1792 = vsub.s32 %v1789, %v1791
        %v1793 = vrot.slane %v1785, %v1792
        %v1795 = vunpack.c.l.s4 1934713408
        %v1796 = vunpack.c.0.s8 %v1795
        %v1797 = vlaneseq
        %v1798 = vshrl.u32 %v1797, 7
        %v1799 = vsub.s32 %v1796, %v1798
        %v1800 = vrot.slane %v1786, %v1799
        %v1801 = vcombine.low %v1769, %v1784
        %v1802 = vcombine.high %v1769, %v1784
        %v1804 = vunpack.c.l.s4 1934713408
        %v1805 = vunpack.c.0.s8 %v1804
        %v1806 = vlaneseq
        %v1807 = vshrl.u32 %v1806, 7
        %v1808 = vsub.s32 %v1805, %v1807
        %v1809 = vrot.slane %v1801, %v1808
        %v1811 = vunpack.c.l.s4 1934713408
        %v1812 = vunpack.c.0.s8 %v1811
        %v1813 = vlaneseq
        %v1814 = vshrl.u32 %v1813, 7
        %v1815 = vsub.s32 %v1812, %v1814
        %v1816 = vrot.slane %v1802, %v1815
        %v1817 = vcombine.high %v1793, 0
        %v1818 = vcombine.high %v1800, 0
        %v1819 = vcombine.high %v1809, 0
        %v1820 = vcombine.high %v1816, 0
        %v1821 = vcombine.high %v1157, %v1117
        %v1823 = vunpack.c.l.s4 1983009808
        %v1824 = vunpack.c.0.s8 %v1823
        %v1825 = vlaneseq
        %v1826 = vshrl.u32 %v1825, 7
        %v1827 = vsub.s32 %v1824, %v1826
        %v1828 = vrot.slane %v1157, %v1827
        %v1830 = vunpack.c.l.s4 1983009808
        %v1831 = vunpack.c.0.s8 %v1830
        %v1832 = vlaneseq
        %v1833 = vshrl.u32 %v1832, 7
        %v1834 = vsub.s32 %v1831, %v1833
        %v1835 = vrot.slane %v1821, %v1834
        %v1836 = vcombine.high %v1165, %v1117
        %v1838 = vunpack.c.l.s4 1983009808
        %v1839 = vunpack.c.0.s8 %v1838
        %v1840 = vlaneseq
        %v1841 = vshrl.u32 %v1840, 7
        %v1842 = vsub.s32 %v1839, %v1841
        %v1843 = vrot.slane %v1165, %v1842
        %v1845 = vunpack.c.l.s4 1983009808
        %v1846 = vunpack.c.0.s8 %v1845
        %v1847 = vlaneseq
        %v1848 = vshrl.u32 %v1847, 7
        %v1849 = vsub.s32 %v1846, %v1848
        %v1850 = vrot.slane %v1836, %v1849
        %v1851 = vcombine.low %v1828, %v1843
        %v1852 = vcombine.high %v1828, %v1843
        %v1854 = vunpack.c.l.s4 1934713408
        %v1855 = vunpack.c.0.s8 %v1854
        %v1856 = vlaneseq
        %v1857 = vshrl.u32 %v1856, 7
        %v1858 = vsub.s32 %v1855, %v1857
        %v1859 = vrot.slane %v1851, %v1858
        %v1861 = vunpack.c.l.s4 1934713408
        %v1862 = vunpack.c.0.s8 %v1861
        %v1863 = vlaneseq
        %v1864 = vshrl.u32 %v1863, 7
        %v1865 = vsub.s32 %v1862, %v1864
        %v1866 = vrot.slane %v1852, %v1865
        %v1867 = vcombine.low %v1835, %v1850
        %v1868 = vcombine.high %v1835, %v1850
        %v1870 = vunpack.c.l.s4 1934713408
        %v1871 = vunpack.c.0.s8 %v1870
        %v1872 = vlaneseq
        %v1873 = vshrl.u32 %v1872, 7
        %v1874 = vsub.s32 %v1871, %v1873
        %v1875 = vrot.slane %v1867, %v1874
        %v1877 = vunpack.c.l.s4 1934713408
        %v1878 = vunpack.c.0.s8 %v1877
        %v1879 = vlaneseq
        %v1880 = vshrl.u32 %v1879, 7
        %v1881 = vsub.s32 %v1878, %v1880
        %v1882 = vrot.slane %v1868, %v1881
        %v1883 = vcombine.high %v1859, 0
        %v1884 = vcombine.high %v1866, 0
        %v1885 = vcombine.high %v1875, 0
        %v1886 = vcombine.high %v1882, 0
        %v1887 = vcombine.high %v1169, %v1114
        %v1889 = vunpack.c.l.s4 1983009808
        %v1890 = vunpack.c.0.s8 %v1889
        %v1891 = vlaneseq
        %v1892 = vshrl.u32 %v1891, 7
        %v1893 = vsub.s32 %v1890, %v1892
        %v1894 = vrot.slane %v1169, %v1893
        %v1896 = vunpack.c.l.s4 1983009808
        %v1897 = vunpack.c.0.s8 %v1896
        %v1898 = vlaneseq
        %v1899 = vshrl.u32 %v1898, 7
        %v1900 = vsub.s32 %v1897, %v1899
        %v1901 = vrot.slane %v1887, %v1900
        %v1902 = vcombine.high %v1177, %v1114
        %v1904 = vunpack.c.l.s4 1983009808
        %v1905 = vunpack.c.0.s8 %v1904
        %v1906 = vlaneseq
        %v1907 = vshrl.u32 %v1906, 7
        %v1908 = vsub.s32 %v1905, %v1907
        %v1909 = vrot.slane %v1177, %v1908
        %v1911 = vunpack.c.l.s4 1983009808
        %v1912 = vunpack.c.0.s8 %v1911
        %v1913 = vlaneseq
        %v1914 = vshrl.u32 %v1913, 7
        %v1915 = vsub.s32 %v1912, %v1914
        %v1916 = vrot.slane %v1902, %v1915
        %v1917 = vcombine.low %v1894, %v1909
        %v1918 = vcombine.high %v1894, %v1909
        %v1920 = vunpack.c.l.s4 1934713408
        %v1921 = vunpack.c.0.s8 %v1920
        %v1922 = vlaneseq
        %v1923 = vshrl.u32 %v1922, 7
        %v1924 = vsub.s32 %v1921, %v1923
        %v1925 = vrot.slane %v1917, %v1924
        %v1927 = vunpack.c.l.s4 1934713408
        %v1928 = vunpack.c.0.s8 %v1927
        %v1929 = vlaneseq
        %v1930 = vshrl.u32 %v1929, 7
        %v1931 = vsub.s32 %v1928, %v1930
        %v1932 = vrot.slane %v1918, %v1931
        %v1933 = vcombine.low %v1901, %v1916
        %v1934 = vcombine.high %v1901, %v1916
        %v1936 = vunpack.c.l.s4 1934713408
        %v1937 = vunpack.c.0.s8 %v1936
        %v1938 = vlaneseq
        %v1939 = vshrl.u32 %v1938, 7
        %v1940 = vsub.s32 %v1937, %v1939
        %v1941 = vrot.slane %v1933, %v1940
        %v1943 = vunpack.c.l.s4 1934713408
        %v1944 = vunpack.c.0.s8 %v1943
        %v1945 = vlaneseq
        %v1946 = vshrl.u32 %v1945, 7
        %v1947 = vsub.s32 %v1944, %v1946
        %v1948 = vrot.slane %v1934, %v1947
        %v1949 = vcombine.high %v1925, 0
        %v1950 = vcombine.high %v1932, 0
        %v1951 = vcombine.high %v1941, 0
        %v1952 = vcombine.high %v1948, 0
        %v1953 = vcombine.high %v1173, %v1117
        %v1955 = vunpack.c.l.s4 1983009808
        %v1956 = vunpack.c.0.s8 %v1955
        %v1957 = vlaneseq
        %v1958 = vshrl.u32 %v1957, 7
        %v1959 = vsub.s32 %v1956, %v1958
        %v1960 = vrot.slane %v1173, %v1959
        %v1962 = vunpack.c.l.s4 1983009808
        %v1963 = vunpack.c.0.s8 %v1962
        %v1964 = vlaneseq
        %v1965 = vshrl.u32 %v1964, 7
        %v1966 = vsub.s32 %v1963, %v1965
        %v1967 = vrot.slane %v1953, %v1966
        %v1968 = vcombine.high %v1181, %v1117
        %v1970 = vunpack.c.l.s4 1983009808
        %v1971 = vunpack.c.0.s8 %v1970
        %v1972 = vlaneseq
        %v1973 = vshrl.u32 %v1972, 7
        %v1974 = vsub.s32 %v1971, %v1973
        %v1975 = vrot.slane %v1181, %v1974
        %v1977 = vunpack.c.l.s4 1983009808
        %v1978 = vunpack.c.0.s8 %v1977
        %v1979 = vlaneseq
        %v1980 = vshrl.u32 %v1979, 7
        %v1981 = vsub.s32 %v1978, %v1980
        %v1982 = vrot.slane %v1968, %v1981
        %v1983 = vcombine.low %v1960, %v1975
        %v1984 = vcombine.high %v1960, %v1975
        %v1986 = vunpack.c.l.s4 1934713408
        %v1987 = vunpack.c.0.s8 %v1986
        %v1988 = vlaneseq
        %v1989 = vshrl.u32 %v1988, 7
        %v1990 = vsub.s32 %v1987, %v1989
        %v1991 = vrot.slane %v1983, %v1990
        %v1993 = vunpack.c.l.s4 1934713408
        %v1994 = vunpack.c.0.s8 %v1993
        %v1995 = vlaneseq
        %v1996 = vshrl.u32 %v1995, 7
        %v1997 = vsub.s32 %v1994, %v1996
        %v1998 = vrot.slane %v1984, %v1997
        %v1999 = vcombine.low %v1967, %v1982
        %v2000 = vcombine.high %v1967, %v1982
        %v2002 = vunpack.c.l.s4 1934713408
        %v2003 = vunpack.c.0.s8 %v2002
        %v2004 = vlaneseq
        %v2005 = vshrl.u32 %v2004, 7
        %v2006 = vsub.s32 %v2003, %v2005
        %v2007 = vrot.slane %v1999, %v2006
        %v2009 = vunpack.c.l.s4 1934713408
        %v2010 = vunpack.c.0.s8 %v2009
        %v2011 = vlaneseq
        %v2012 = vshrl.u32 %v2011, 7
        %v2013 = vsub.s32 %v2010, %v2012
        %v2014 = vrot.slane %v2000, %v2013
        %v2015 = vcombine.high %v1991, 0
        %v2016 = vcombine.high %v1998, 0
        %v2017 = vcombine.high %v2007, 0
        %v2018 = vcombine.high %v2014, 0
        %v2019 = vcombine.high %v1185, %v1114
        %v2021 = vunpack.c.l.s4 1983009808
        %v2022 = vunpack.c.0.s8 %v2021
        %v2023 = vlaneseq
        %v2024 = vshrl.u32 %v2023, 7
        %v2025 = vsub.s32 %v2022, %v2024
        %v2026 = vrot.slane %v1185, %v2025
        %v2028 = vunpack.c.l.s4 1983009808
        %v2029 = vunpack.c.0.s8 %v2028
        %v2030 = vlaneseq
        %v2031 = vshrl.u32 %v2030, 7
        %v2032 = vsub.s32 %v2029, %v2031
        %v2033 = vrot.slane %v2019, %v2032
        %v2034 = vcombine.high %v1193, %v1114
        %v2036 = vunpack.c.l.s4 1983009808
        %v2037 = vunpack.c.0.s8 %v2036
        %v2038 = vlaneseq
        %v2039 = vshrl.u32 %v2038, 7
        %v2040 = vsub.s32 %v2037, %v2039
        %v2041 = vrot.slane %v1193, %v2040
        %v2043 = vunpack.c.l.s4 1983009808
        %v2044 = vunpack.c.0.s8 %v2043
        %v2045 = vlaneseq
        %v2046 = vshrl.u32 %v2045, 7
        %v2047 = vsub.s32 %v2044, %v2046
        %v2048 = vrot.slane %v2034, %v2047
        %v2049 = vcombine.low %v2026, %v2041
        %v2050 = vcombine.high %v2026, %v2041
        %v2052 = vunpack.c.l.s4 1934713408
        %v2053 = vunpack.c.0.s8 %v2052
        %v2054 = vlaneseq
        %v2055 = vshrl.u32 %v2054, 7
        %v2056 = vsub.s32 %v2053, %v2055
        %v2057 = vrot.slane %v2049, %v2056
        %v2059 = vunpack.c.l.s4 1934713408
        %v2060 = vunpack.c.0.s8 %v2059
        %v2061 = vlaneseq
        %v2062 = vshrl.u32 %v2061, 7
        %v2063 = vsub.s32 %v2060, %v2062
        %v2064 = vrot.slane %v2050, %v2063
        %v2065 = vcombine.low %v2033, %v2048
        %v2066 = vcombine.high %v2033, %v2048
        %v2068 = vunpack.c.l.s4 1934713408
        %v2069 = vunpack.c.0.s8 %v2068
        %v2070 = vlaneseq
        %v2071 = vshrl.u32 %v2070, 7
        %v2072 = vsub.s32 %v2069, %v2071
        %v2073 = vrot.slane %v2065, %v2072
        %v2075 = vunpack.c.l.s4 1934713408
        %v2076 = vunpack.c.0.s8 %v2075
        %v2077 = vlaneseq
        %v2078 = vshrl.u32 %v2077, 7
        %v2079 = vsub.s32 %v2076, %v2078
        %v2080 = vrot.slane %v2066, %v2079
        %v2081 = vcombine.high %v2057, 0
        %v2082 = vcombine.high %v2064, 0
        %v2083 = vcombine.high %v2073, 0
        %v2084 = vcombine.high %v2080, 0
        %v2085 = vcombine.high %v1189, %v1117
        %v2087 = vunpack.c.l.s4 1983009808
        %v2088 = vunpack.c.0.s8 %v2087
        %v2089 = vlaneseq
        %v2090 = vshrl.u32 %v2089, 7
        %v2091 = vsub.s32 %v2088, %v2090
        %v2092 = vrot.slane %v1189, %v2091
        %v2094 = vunpack.c.l.s4 1983009808
        %v2095 = vunpack.c.0.s8 %v2094
        %v2096 = vlaneseq
        %v2097 = vshrl.u32 %v2096, 7
        %v2098 = vsub.s32 %v2095, %v2097
        %v2099 = vrot.slane %v2085, %v2098
        %v2100 = vcombine.high %v1197, %v1117
        %v2102 = vunpack.c.l.s4 1983009808
        %v2103 = vunpack.c.0.s8 %v2102
        %v2104 = vlaneseq
        %v2105 = vshrl.u32 %v2104, 7
        %v2106 = vsub.s32 %v2103, %v2105
        %v2107 = vrot.slane %v1197, %v2106
        %v2109 = vunpack.c.l.s4 1983009808
        %v2110 = vunpack.c.0.s8 %v2109
        %v2111 = vlaneseq
        %v2112 = vshrl.u32 %v2111, 7
        %v2113 = vsub.s32 %v2110, %v2112
        %v2114 = vrot.slane %v2100, %v2113
        %v2115 = vcombine.low %v2092, %v2107
        %v2116 = vcombine.high %v2092, %v2107
        %v2118 = vunpack.c.l.s4 1934713408
        %v2119 = vunpack.c.0.s8 %v2118
        %v2120 = vlaneseq
        %v2121 = vshrl.u32 %v2120, 7
        %v2122 = vsub.s32 %v2119, %v2121
        %v2123 = vrot.slane %v2115, %v2122
        %v2125 = vunpack.c.l.s4 1934713408
        %v2126 = vunpack.c.0.s8 %v2125
        %v2127 = vlaneseq
        %v2128 = vshrl.u32 %v2127, 7
        %v2129 = vsub.s32 %v2126, %v2128
        %v2130 = vrot.slane %v2116, %v2129
        %v2131 = vcombine.low %v2099, %v2114
        %v2132 = vcombine.high %v2099, %v2114
        %v2134 = vunpack.c.l.s4 1934713408
        %v2135 = vunpack.c.0.s8 %v2134
        %v2136 = vlaneseq
        %v2137 = vshrl.u32 %v2136, 7
        %v2138 = vsub.s32 %v2135, %v2137
        %v2139 = vrot.slane %v2131, %v2138
        %v2141 = vunpack.c.l.s4 1934713408
        %v2142 = vunpack.c.0.s8 %v2141
        %v2143 = vlaneseq
        %v2144 = vshrl.u32 %v2143, 7
        %v2145 = vsub.s32 %v2142, %v2144
        %v2146 = vrot.slane %v2132, %v2145
        %v2147 = vcombine.high %v2123, 0
        %v2148 = vcombine.high %v2130, 0
        %v2149 = vcombine.high %v2139, 0
        %v2150 = vcombine.high %v2146, 0
        %v2151 = vcombine.high %v1201, %v1114
        %v2153 = vunpack.c.l.s4 1983009808
        %v2154 = vunpack.c.0.s8 %v2153
        %v2155 = vlaneseq
        %v2156 = vshrl.u32 %v2155, 7
        %v2157 = vsub.s32 %v2154, %v2156
        %v2158 = vrot.slane %v1201, %v2157
        %v2160 = vunpack.c.l.s4 1983009808
        %v2161 = vunpack.c.0.s8 %v2160
        %v2162 = vlaneseq
        %v2163 = vshrl.u32 %v2162, 7
        %v2164 = vsub.s32 %v2161, %v2163
        %v2165 = vrot.slane %v2151, %v2164
        %v2166 = vcombine.high %v1209, %v1114
        %v2168 = vunpack.c.l.s4 1983009808
        %v2169 = vunpack.c.0.s8 %v2168
        %v2170 = vlaneseq
        %v2171 = vshrl.u32 %v2170, 7
        %v2172 = vsub.s32 %v2169, %v2171
        %v2173 = vrot.slane %v1209, %v2172
        %v2175 = vunpack.c.l.s4 1983009808
        %v2176 = vunpack.c.0.s8 %v2175
        %v2177 = vlaneseq
        %v2178 = vshrl.u32 %v2177, 7
        %v2179 = vsub.s32 %v2176, %v2178
        %v2180 = vrot.slane %v2166, %v2179
        %v2181 = vcombine.low %v2158, %v2173
        %v2182 = vcombine.high %v2158, %v2173
        %v2184 = vunpack.c.l.s4 1934713408
        %v2185 = vunpack.c.0.s8 %v2184
        %v2186 = vlaneseq
        %v2187 = vshrl.u32 %v2186, 7
        %v2188 = vsub.s32 %v2185, %v2187
        %v2189 = vrot.slane %v2181, %v2188
        %v2191 = vunpack.c.l.s4 1934713408
        %v2192 = vunpack.c.0.s8 %v2191
        %v2193 = vlaneseq
        %v2194 = vshrl.u32 %v2193, 7
        %v2195 = vsub.s32 %v2192, %v2194
        %v2196 = vrot.slane %v2182, %v2195
        %v2197 = vcombine.low %v2165, %v2180
        %v2198 = vcombine.high %v2165, %v2180
        %v2200 = vunpack.c.l.s4 1934713408
        %v2201 = vunpack.c.0.s8 %v2200
        %v2202 = vlaneseq
        %v2203 = vshrl.u32 %v2202, 7
        %v2204 = vsub.s32 %v2201, %v2203
        %v2205 = vrot.slane %v2197, %v2204
        %v2207 = vunpack.c.l.s4 1934713408
        %v2208 = vunpack.c.0.s8 %v2207
        %v2209 = vlaneseq
        %v2210 = vshrl.u32 %v2209, 7
        %v2211 = vsub.s32 %v2208, %v2210
        %v2212 = vrot.slane %v2198, %v2211
        %v2213 = vcombine.high %v2189, 0
        %v2214 = vcombine.high %v2196, 0
        %v2215 = vcombine.high %v2205, 0
        %v2216 = vcombine.high %v2212, 0
        %v2217 = vcombine.high %v1205, %v1117
        %v2219 = vunpack.c.l.s4 1983009808
        %v2220 = vunpack.c.0.s8 %v2219
        %v2221 = vlaneseq
        %v2222 = vshrl.u32 %v2221, 7
        %v2223 = vsub.s32 %v2220, %v2222
        %v2224 = vrot.slane %v1205, %v2223
        %v2226 = vunpack.c.l.s4 1983009808
        %v2227 = vunpack.c.0.s8 %v2226
        %v2228 = vlaneseq
        %v2229 = vshrl.u32 %v2228, 7
        %v2230 = vsub.s32 %v2227, %v2229
        %v2231 = vrot.slane %v2217, %v2230
        %v2232 = vcombine.high %v1213, %v1117
        %v2234 = vunpack.c.l.s4 1983009808
        %v2235 = vunpack.c.0.s8 %v2234
        %v2236 = vlaneseq
        %v2237 = vshrl.u32 %v2236, 7
        %v2238 = vsub.s32 %v2235, %v2237
        %v2239 = vrot.slane %v1213, %v2238
        %v2241 = vunpack.c.l.s4 1983009808
        %v2242 = vunpack.c.0.s8 %v2241
        %v2243 = vlaneseq
        %v2244 = vshrl.u32 %v2243, 7
        %v2245 = vsub.s32 %v2242, %v2244
        %v2246 = vrot.slane %v2232, %v2245
        %v2247 = vcombine.low %v2224, %v2239
        %v2248 = vcombine.high %v2224, %v2239
        %v2250 = vunpack.c.l.s4 1934713408
        %v2251 = vunpack.c.0.s8 %v2250
        %v2252 = vlaneseq
        %v2253 = vshrl.u32 %v2252, 7
        %v2254 = vsub.s32 %v2251, %v2253
        %v2255 = vrot.slane %v2247, %v2254
        %v2257 = vunpack.c.l.s4 1934713408
        %v2258 = vunpack.c.0.s8 %v2257
        %v2259 = vlaneseq
        %v2260 = vshrl.u32 %v2259, 7
        %v2261 = vsub.s32 %v2258, %v2260
        %v2262 = vrot.slane %v2248, %v2261
        %v2263 = vcombine.low %v2231, %v2246
        %v2264 = vcombine.high %v2231, %v2246
        %v2266 = vunpack.c.l.s4 1934713408
        %v2267 = vunpack.c.0.s8 %v2266
        %v2268 = vlaneseq
        %v2269 = vshrl.u32 %v2268, 7
        %v2270 = vsub.s32 %v2267, %v2269
        %v2271 = vrot.slane %v2263, %v2270
        %v2273 = vunpack.c.l.s4 1934713408
        %v2274 = vunpack.c.0.s8 %v2273
        %v2275 = vlaneseq
        %v2276 = vshrl.u32 %v2275, 7
        %v2277 = vsub.s32 %v2274, %v2276
        %v2278 = vrot.slane %v2264, %v2277
        %v2279 = vcombine.high %v2255, 0
        %v2280 = vcombine.high %v2262, 0
        %v2281 = vcombine.high %v2271, 0
        %v2282 = vcombine.high %v2278, 0
        %v2283 = vcombine.high %v1217, %v1114
        %v2285 = vunpack.c.l.s4 1983009808
        %v2286 = vunpack.c.0.s8 %v2285
        %v2287 = vlaneseq
        %v2288 = vshrl.u32 %v2287, 7
        %v2289 = vsub.s32 %v2286, %v2288
        %v2290 = vrot.slane %v1217, %v2289
        %v2292 = vunpack.c.l.s4 1983009808
        %v2293 = vunpack.c.0.s8 %v2292
        %v2294 = vlaneseq
        %v2295 = vshrl.u32 %v2294, 7
        %v2296 = vsub.s32 %v2293, %v2295
        %v2297 = vrot.slane %v2283, %v2296
        %v2298 = vcombine.high %v1225, %v1114
        %v2300 = vunpack.c.l.s4 1983009808
        %v2301 = vunpack.c.0.s8 %v2300
        %v2302 = vlaneseq
        %v2303 = vshrl.u32 %v2302, 7
        %v2304 = vsub.s32 %v2301, %v2303
        %v2305 = vrot.slane %v1225, %v2304
        %v2307 = vunpack.c.l.s4 1983009808
        %v2308 = vunpack.c.0.s8 %v2307
        %v2309 = vlaneseq
        %v2310 = vshrl.u32 %v2309, 7
        %v2311 = vsub.s32 %v2308, %v2310
        %v2312 = vrot.slane %v2298, %v2311
        %v2313 = vcombine.low %v2290, %v2305
        %v2314 = vcombine.high %v2290, %v2305
        %v2316 = vunpack.c.l.s4 1934713408
        %v2317 = vunpack.c.0.s8 %v2316
        %v2318 = vlaneseq
        %v2319 = vshrl.u32 %v2318, 7
        %v2320 = vsub.s32 %v2317, %v2319
        %v2321 = vrot.slane %v2313, %v2320
        %v2323 = vunpack.c.l.s4 1934713408
        %v2324 = vunpack.c.0.s8 %v2323
        %v2325 = vlaneseq
        %v2326 = vshrl.u32 %v2325, 7
        %v2327 = vsub.s32 %v2324, %v2326
        %v2328 = vrot.slane %v2314, %v2327
        %v2329 = vcombine.low %v2297, %v2312
        %v2330 = vcombine.high %v2297, %v2312
        %v2332 = vunpack.c.l.s4 1934713408
        %v2333 = vunpack.c.0.s8 %v2332
        %v2334 = vlaneseq
        %v2335 = vshrl.u32 %v2334, 7
        %v2336 = vsub.s32 %v2333, %v2335
        %v2337 = vrot.slane %v2329, %v2336
        %v2339 = vunpack.c.l.s4 1934713408
        %v2340 = vunpack.c.0.s8 %v2339
        %v2341 = vlaneseq
        %v2342 = vshrl.u32 %v2341, 7
        %v2343 = vsub.s32 %v2340, %v2342
        %v2344 = vrot.slane %v2330, %v2343
        %v2345 = vcombine.high %v2321, 0
        %v2346 = vcombine.high %v2328, 0
        %v2347 = vcombine.high %v2337, 0
        %v2348 = vcombine.high %v2344, 0
        %v2349 = vcombine.high %v1221, %v1117
        %v2351 = vunpack.c.l.s4 1983009808
        %v2352 = vunpack.c.0.s8 %v2351
        %v2353 = vlaneseq
        %v2354 = vshrl.u32 %v2353, 7
        %v2355 = vsub.s32 %v2352, %v2354
        %v2356 = vrot.slane %v1221, %v2355
        %v2358 = vunpack.c.l.s4 1983009808
        %v2359 = vunpack.c.0.s8 %v2358
        %v2360 = vlaneseq
        %v2361 = vshrl.u32 %v2360, 7
        %v2362 = vsub.s32 %v2359, %v2361
        %v2363 = vrot.slane %v2349, %v2362
        %v2364 = vcombine.high %v1229, %v1117
        %v2366 = vunpack.c.l.s4 1983009808
        %v2367 = vunpack.c.0.s8 %v2366
        %v2368 = vlaneseq
        %v2369 = vshrl.u32 %v2368, 7
        %v2370 = vsub.s32 %v2367, %v2369
        %v2371 = vrot.slane %v1229, %v2370
        %v2373 = vunpack.c.l.s4 1983009808
        %v2374 = vunpack.c.0.s8 %v2373
        %v2375 = vlaneseq
        %v2376 = vshrl.u32 %v2375, 7
        %v2377 = vsub.s32 %v2374, %v2376
        %v2378 = vrot.slane %v2364, %v2377
        %v2379 = vcombine.low %v2356, %v2371
        %v2380 = vcombine.high %v2356, %v2371
        %v2382 = vunpack.c.l.s4 1934713408
        %v2383 = vunpack.c.0.s8 %v2382
        %v2384 = vlaneseq
        %v2385 = vshrl.u32 %v2384, 7
        %v2386 = vsub.s32 %v2383, %v2385
        %v2387 = vrot.slane %v2379, %v2386
        %v2389 = vunpack.c.l.s4 1934713408
        %v2390 = vunpack.c.0.s8 %v2389
        %v2391 = vlaneseq
        %v2392 = vshrl.u32 %v2391, 7
        %v2393 = vsub.s32 %v2390, %v2392
        %v2394 = vrot.slane %v2380, %v2393
        %v2395 = vcombine.low %v2363, %v2378
        %v2396 = vcombine.high %v2363, %v2378
        %v2398 = vunpack.c.l.s4 1934713408
        %v2399 = vunpack.c.0.s8 %v2398
        %v2400 = vlaneseq
        %v2401 = vshrl.u32 %v2400, 7
        %v2402 = vsub.s32 %v2399, %v2401
        %v2403 = vrot.slane %v2395, %v2402
        %v2405 = vunpack.c.l.s4 1934713408
        %v2406 = vunpack.c.0.s8 %v2405
        %v2407 = vlaneseq
        %v2408 = vshrl.u32 %v2407, 7
        %v2409 = vsub.s32 %v2406, %v2408
        %v2410 = vrot.slane %v2396, %v2409
        %v2411 = vcombine.high %v2387, 0
        %v2412 = vcombine.high %v2394, 0
        %v2413 = vcombine.high %v2403, 0
        %v2414 = vcombine.high %v2410, 0
        %v2415 = vcombine.high %v1233, %v1114
        %v2417 = vunpack.c.l.s4 1983009808
        %v2418 = vunpack.c.0.s8 %v2417
        %v2419 = vlaneseq
        %v2420 = vshrl.u32 %v2419, 7
        %v2421 = vsub.s32 %v2418, %v2420
        %v2422 = vrot.slane %v1233, %v2421
        %v2424 = vunpack.c.l.s4 1983009808
        %v2425 = vunpack.c.0.s8 %v2424
        %v2426 = vlaneseq
        %v2427 = vshrl.u32 %v2426, 7
        %v2428 = vsub.s32 %v2425, %v2427
        %v2429 = vrot.slane %v2415, %v2428
        %v2430 = vcombine.high %v1241, %v1114
        %v2432 = vunpack.c.l.s4 1983009808
        %v2433 = vunpack.c.0.s8 %v2432
        %v2434 = vlaneseq
        %v2435 = vshrl.u32 %v2434, 7
        %v2436 = vsub.s32 %v2433, %v2435
        %v2437 = vrot.slane %v1241, %v2436
        %v2439 = vunpack.c.l.s4 1983009808
        %v2440 = vunpack.c.0.s8 %v2439
        %v2441 = vlaneseq
        %v2442 = vshrl.u32 %v2441, 7
        %v2443 = vsub.s32 %v2440, %v2442
        %v2444 = vrot.slane %v2430, %v2443
        %v2445 = vcombine.low %v2422, %v2437
        %v2446 = vcombine.high %v2422, %v2437
        %v2448 = vunpack.c.l.s4 1934713408
        %v2449 = vunpack.c.0.s8 %v2448
        %v2450 = vlaneseq
        %v2451 = vshrl.u32 %v2450, 7
        %v2452 = vsub.s32 %v2449, %v2451
        %v2453 = vrot.slane %v2445, %v2452
        %v2455 = vunpack.c.l.s4 1934713408
        %v2456 = vunpack.c.0.s8 %v2455
        %v2457 = vlaneseq
        %v2458 = vshrl.u32 %v2457, 7
        %v2459 = vsub.s32 %v2456, %v2458
        %v2460 = vrot.slane %v2446, %v2459
        %v2461 = vcombine.low %v2429, %v2444
        %v2462 = vcombine.high %v2429, %v2444
        %v2464 = vunpack.c.l.s4 1934713408
        %v2465 = vunpack.c.0.s8 %v2464
        %v2466 = vlaneseq
        %v2467 = vshrl.u32 %v2466, 7
        %v2468 = vsub.s32 %v2465, %v2467
        %v2469 = vrot.slane %v2461, %v2468
        %v2471 = vunpack.c.l.s4 1934713408
        %v2472 = vunpack.c.0.s8 %v2471
        %v2473 = vlaneseq
        %v2474 = vshrl.u32 %v2473, 7
        %v2475 = vsub.s32 %v2472, %v2474
        %v2476 = vrot.slane %v2462, %v2475
        %v2477 = vcombine.high %v2453, 0
        %v2478 = vcombine.high %v2460, 0
        %v2479 = vcombine.high %v2469, 0
        %v2480 = vcombine.high %v2476, 0
        %v2481 = vcombine.high %v1237, %v1117
        %v2483 = vunpack.c.l.s4 1983009808
        %v2484 = vunpack.c.0.s8 %v2483
        %v2485 = vlaneseq
        %v2486 = vshrl.u32 %v2485, 7
        %v2487 = vsub.s32 %v2484, %v2486
        %v2488 = vrot.slane %v1237, %v2487
        %v2490 = vunpack.c.l.s4 1983009808
        %v2491 = vunpack.c.0.s8 %v2490
        %v2492 = vlaneseq
        %v2493 = vshrl.u32 %v2492, 7
        %v2494 = vsub.s32 %v2491, %v2493
        %v2495 = vrot.slane %v2481, %v2494
        %v2496 = vcombine.high %v1245, %v1117
        %v2498 = vunpack.c.l.s4 1983009808
        %v2499 = vunpack.c.0.s8 %v2498
        %v2500 = vlaneseq
        %v2501 = vshrl.u32 %v2500, 7
        %v2502 = vsub.s32 %v2499, %v2501
        %v2503 = vrot.slane %v1245, %v2502
        %v2505 = vunpack.c.l.s4 1983009808
        %v2506 = vunpack.c.0.s8 %v2505
        %v2507 = vlaneseq
        %v2508 = vshrl.u32 %v2507, 7
        %v2509 = vsub.s32 %v2506, %v2508
        %v2510 = vrot.slane %v2496, %v2509
        %v2511 = vcombine.low %v2488, %v2503
        %v2512 = vcombine.high %v2488, %v2503
        %v2514 = vunpack.c.l.s4 1934713408
        %v2515 = vunpack.c.0.s8 %v2514
        %v2516 = vlaneseq
        %v2517 = vshrl.u32 %v2516, 7
        %v2518 = vsub.s32 %v2515, %v2517
        %v2519 = vrot.slane %v2511, %v2518
        %v2521 = vunpack.c.l.s4 1934713408
        %v2522 = vunpack.c.0.s8 %v2521
        %v2523 = vlaneseq
        %v2524 = vshrl.u32 %v2523, 7
        %v2525 = vsub.s32 %v2522, %v2524
        %v2526 = vrot.slane %v2512, %v2525
        %v2527 = vcombine.low %v2495, %v2510
        %v2528 = vcombine.high %v2495, %v2510
        %v2530 = vunpack.c.l.s4 1934713408
        %v2531 = vunpack.c.0.s8 %v2530
        %v2532 = vlaneseq
        %v2533 = vshrl.u32 %v2532, 7
        %v2534 = vsub.s32 %v2531, %v2533
        %v2535 = vrot.slane %v2527, %v2534
        %v2537 = vunpack.c.l.s4 1934713408
        %v2538 = vunpack.c.0.s8 %v2537
        %v2539 = vlaneseq
        %v2540 = vshrl.u32 %v2539, 7
        %v2541 = vsub.s32 %v2538, %v2540
        %v2542 = vrot.slane %v2528, %v2541
        %v2543 = vcombine.high %v2519, 0
        %v2544 = vcombine.high %v2526, 0
        %v2545 = vcombine.high %v2535, 0
        %v2546 = vcombine.high %v2542, 0
        %v2547 = vcombine.high %v1249, %v1114
        %v2549 = vunpack.c.l.s4 1983009808
        %v2550 = vunpack.c.0.s8 %v2549
        %v2551 = vlaneseq
        %v2552 = vshrl.u32 %v2551, 7
        %v2553 = vsub.s32 %v2550, %v2552
        %v2554 = vrot.slane %v1249, %v2553
        %v2556 = vunpack.c.l.s4 1983009808
        %v2557 = vunpack.c.0.s8 %v2556
        %v2558 = vlaneseq
        %v2559 = vshrl.u32 %v2558, 7
        %v2560 = vsub.s32 %v2557, %v2559
        %v2561 = vrot.slane %v2547, %v2560
        %v2562 = vcombine.high %v1257, %v1114
        %v2564 = vunpack.c.l.s4 1983009808
        %v2565 = vunpack.c.0.s8 %v2564
        %v2566 = vlaneseq
        %v2567 = vshrl.u32 %v2566, 7
        %v2568 = vsub.s32 %v2565, %v2567
        %v2569 = vrot.slane %v1257, %v2568
        %v2571 = vunpack.c.l.s4 1983009808
        %v2572 = vunpack.c.0.s8 %v2571
        %v2573 = vlaneseq
        %v2574 = vshrl.u32 %v2573, 7
        %v2575 = vsub.s32 %v2572, %v2574
        %v2576 = vrot.slane %v2562, %v2575
        %v2577 = vcombine.low %v2554, %v2569
        %v2578 = vcombine.high %v2554, %v2569
        %v2580 = vunpack.c.l.s4 1934713408
        %v2581 = vunpack.c.0.s8 %v2580
        %v2582 = vlaneseq
        %v2583 = vshrl.u32 %v2582, 7
        %v2584 = vsub.s32 %v2581, %v2583
        %v2585 = vrot.slane %v2577, %v2584
        %v2587 = vunpack.c.l.s4 1934713408
        %v2588 = vunpack.c.0.s8 %v2587
        %v2589 = vlaneseq
        %v2590 = vshrl.u32 %v2589, 7
        %v2591 = vsub.s32 %v2588, %v2590
        %v2592 = vrot.slane %v2578, %v2591
        %v2593 = vcombine.low %v2561, %v2576
        %v2594 = vcombine.high %v2561, %v2576
        %v2596 = vunpack.c.l.s4 1934713408
        %v2597 = vunpack.c.0.s8 %v2596
        %v2598 = vlaneseq
        %v2599 = vshrl.u32 %v2598, 7
        %v2600 = vsub.s32 %v2597, %v2599
        %v2601 = vrot.slane %v2593, %v2600
        %v2603 = vunpack.c.l.s4 1934713408
        %v2604 = vunpack.c.0.s8 %v2603
        %v2605 = vlaneseq
        %v2606 = vshrl.u32 %v2605, 7
        %v2607 = vsub.s32 %v2604, %v2606
        %v2608 = vrot.slane %v2594, %v2607
        %v2609 = vcombine.high %v2585, 0
        %v2610 = vcombine.high %v2592, 0
        %v2611 = vcombine.high %v2601, 0
        %v2612 = vcombine.high %v2608, 0
        %v2613 = vcombine.high %v1253, %v1117
        %v2615 = vunpack.c.l.s4 1983009808
        %v2616 = vunpack.c.0.s8 %v2615
        %v2617 = vlaneseq
        %v2618 = vshrl.u32 %v2617, 7
        %v2619 = vsub.s32 %v2616, %v2618
        %v2620 = vrot.slane %v1253, %v2619
        %v2622 = vunpack.c.l.s4 1983009808
        %v2623 = vunpack.c.0.s8 %v2622
        %v2624 = vlaneseq
        %v2625 = vshrl.u32 %v2624, 7
        %v2626 = vsub.s32 %v2623, %v2625
        %v2627 = vrot.slane %v2613, %v2626
        %v2628 = vcombine.high %v1261, %v1117
        %v2630 = vunpack.c.l.s4 1983009808
        %v2631 = vunpack.c.0.s8 %v2630
        %v2632 = vlaneseq
        %v2633 = vshrl.u32 %v2632, 7
        %v2634 = vsub.s32 %v2631, %v2633
        %v2635 = vrot.slane %v1261, %v2634
        %v2637 = vunpack.c.l.s4 1983009808
        %v2638 = vunpack.c.0.s8 %v2637
        %v2639 = vlaneseq
        %v2640 = vshrl.u32 %v2639, 7
        %v2641 = vsub.s32 %v2638, %v2640
        %v2642 = vrot.slane %v2628, %v2641
        %v2643 = vcombine.low %v2620, %v2635
        %v2644 = vcombine.high %v2620, %v2635
        %v2646 = vunpack.c.l.s4 1934713408
        %v2647 = vunpack.c.0.s8 %v2646
        %v2648 = vlaneseq
        %v2649 = vshrl.u32 %v2648, 7
        %v2650 = vsub.s32 %v2647, %v2649
        %v2651 = vrot.slane %v2643, %v2650
        %v2653 = vunpack.c.l.s4 1934713408
        %v2654 = vunpack.c.0.s8 %v2653
        %v2655 = vlaneseq
        %v2656 = vshrl.u32 %v2655, 7
        %v2657 = vsub.s32 %v2654, %v2656
        %v2658 = vrot.slane %v2644, %v2657
        %v2659 = vcombine.low %v2627, %v2642
        %v2660 = vcombine.high %v2627, %v2642
        %v2662 = vunpack.c.l.s4 1934713408
        %v2663 = vunpack.c.0.s8 %v2662
        %v2664 = vlaneseq
        %v2665 = vshrl.u32 %v2664, 7
        %v2666 = vsub.s32 %v2663, %v2665
        %v2667 = vrot.slane %v2659, %v2666
        %v2669 = vunpack.c.l.s4 1934713408
        %v2670 = vunpack.c.0.s8 %v2669
        %v2671 = vlaneseq
        %v2672 = vshrl.u32 %v2671, 7
        %v2673 = vsub.s32 %v2670, %v2672
        %v2674 = vrot.slane %v2660, %v2673
        %v2675 = vcombine.high %v2651, 0
        %v2676 = vcombine.high %v2658, 0
        %v2677 = vcombine.high %v2667, 0
        %v2678 = vcombine.high %v2674, 0
        %v2679 = vcombine.high %v1265, %v1114
        %v2681 = vunpack.c.l.s4 1983009808
        %v2682 = vunpack.c.0.s8 %v2681
        %v2683 = vlaneseq
        %v2684 = vshrl.u32 %v2683, 7
        %v2685 = vsub.s32 %v2682, %v2684
        %v2686 = vrot.slane %v1265, %v2685
        %v2688 = vunpack.c.l.s4 1983009808
        %v2689 = vunpack.c.0.s8 %v2688
        %v2690 = vlaneseq
        %v2691 = vshrl.u32 %v2690, 7
        %v2692 = vsub.s32 %v2689, %v2691
        %v2693 = vrot.slane %v2679, %v2692
        %v2694 = vcombine.high %v1273, %v1114
        %v2696 = vunpack.c.l.s4 1983009808
        %v2697 = vunpack.c.0.s8 %v2696
        %v2698 = vlaneseq
        %v2699 = vshrl.u32 %v2698, 7
        %v2700 = vsub.s32 %v2697, %v2699
        %v2701 = vrot.slane %v1273, %v2700
        %v2703 = vunpack.c.l.s4 1983009808
        %v2704 = vunpack.c.0.s8 %v2703
        %v2705 = vlaneseq
        %v2706 = vshrl.u32 %v2705, 7
        %v2707 = vsub.s32 %v2704, %v2706
        %v2708 = vrot.slane %v2694, %v2707
        %v2709 = vcombine.low %v2686, %v2701
        %v2710 = vcombine.high %v2686, %v2701
        %v2712 = vunpack.c.l.s4 1934713408
        %v2713 = vunpack.c.0.s8 %v2712
        %v2714 = vlaneseq
        %v2715 = vshrl.u32 %v2714, 7
        %v2716 = vsub.s32 %v2713, %v2715
        %v2717 = vrot.slane %v2709, %v2716
        %v2719 = vunpack.c.l.s4 1934713408
        %v2720 = vunpack.c.0.s8 %v2719
        %v2721 = vlaneseq
        %v2722 = vshrl.u32 %v2721, 7
        %v2723 = vsub.s32 %v2720, %v2722
        %v2724 = vrot.slane %v2710, %v2723
        %v2725 = vcombine.low %v2693, %v2708
        %v2726 = vcombine.high %v2693, %v2708
        %v2728 = vunpack.c.l.s4 1934713408
        %v2729 = vunpack.c.0.s8 %v2728
        %v2730 = vlaneseq
        %v2731 = vshrl.u32 %v2730, 7
        %v2732 = vsub.s32 %v2729, %v2731
        %v2733 = vrot.slane %v2725, %v2732
        %v2735 = vunpack.c.l.s4 1934713408
        %v2736 = vunpack.c.0.s8 %v2735
        %v2737 = vlaneseq
        %v2738 = vshrl.u32 %v2737, 7
        %v2739 = vsub.s32 %v2736, %v2738
        %v2740 = vrot.slane %v2726, %v2739
        %v2741 = vcombine.high %v2717, 0
        %v2742 = vcombine.high %v2724, 0
        %v2743 = vcombine.high %v2733, 0
        %v2744 = vcombine.high %v2740, 0
        %v2745 = vcombine.high %v1269, %v1117
        %v2747 = vunpack.c.l.s4 1983009808
        %v2748 = vunpack.c.0.s8 %v2747
        %v2749 = vlaneseq
        %v2750 = vshrl.u32 %v2749, 7
        %v2751 = vsub.s32 %v2748, %v2750
        %v2752 = vrot.slane %v1269, %v2751
        %v2754 = vunpack.c.l.s4 1983009808
        %v2755 = vunpack.c.0.s8 %v2754
        %v2756 = vlaneseq
        %v2757 = vshrl.u32 %v2756, 7
        %v2758 = vsub.s32 %v2755, %v2757
        %v2759 = vrot.slane %v2745, %v2758
        %v2760 = vcombine.high %v1277, %v1117
        %v2762 = vunpack.c.l.s4 1983009808
        %v2763 = vunpack.c.0.s8 %v2762
        %v2764 = vlaneseq
        %v2765 = vshrl.u32 %v2764, 7
        %v2766 = vsub.s32 %v2763, %v2765
        %v2767 = vrot.slane %v1277, %v2766
        %v2769 = vunpack.c.l.s4 1983009808
        %v2770 = vunpack.c.0.s8 %v2769
        %v2771 = vlaneseq
        %v2772 = vshrl.u32 %v2771, 7
        %v2773 = vsub.s32 %v2770, %v2772
        %v2774 = vrot.slane %v2760, %v2773
        %v2775 = vcombine.low %v2752, %v2767
        %v2776 = vcombine.high %v2752, %v2767
        %v2778 = vunpack.c.l.s4 1934713408
        %v2779 = vunpack.c.0.s8 %v2778
        %v2780 = vlaneseq
        %v2781 = vshrl.u32 %v2780, 7
        %v2782 = vsub.s32 %v2779, %v2781
        %v2783 = vrot.slane %v2775, %v2782
        %v2785 = vunpack.c.l.s4 1934713408
        %v2786 = vunpack.c.0.s8 %v2785
        %v2787 = vlaneseq
        %v2788 = vshrl.u32 %v2787, 7
        %v2789 = vsub.s32 %v2786, %v2788
        %v2790 = vrot.slane %v2776, %v2789
        %v2791 = vcombine.low %v2759, %v2774
        %v2792 = vcombine.high %v2759, %v2774
        %v2794 = vunpack.c.l.s4 1934713408
        %v2795 = vunpack.c.0.s8 %v2794
        %v2796 = vlaneseq
        %v2797 = vshrl.u32 %v2796, 7
        %v2798 = vsub.s32 %v2795, %v2797
        %v2799 = vrot.slane %v2791, %v2798
        %v2801 = vunpack.c.l.s4 1934713408
        %v2802 = vunpack.c.0.s8 %v2801
        %v2803 = vlaneseq
        %v2804 = vshrl.u32 %v2803, 7
        %v2805 = vsub.s32 %v2802, %v2804
        %v2806 = vrot.slane %v2792, %v2805
        %v2807 = vcombine.high %v2783, 0
        %v2808 = vcombine.high %v2790, 0
        %v2809 = vcombine.high %v2799, 0
        %v2810 = vcombine.high %v2806, 0
        %v2811 = vcombine.high %v1281, %v1114
        %v2813 = vunpack.c.l.s4 1983009808
        %v2814 = vunpack.c.0.s8 %v2813
        %v2815 = vlaneseq
        %v2816 = vshrl.u32 %v2815, 7
        %v2817 = vsub.s32 %v2814, %v2816
        %v2818 = vrot.slane %v1281, %v2817
        %v2820 = vunpack.c.l.s4 1983009808
        %v2821 = vunpack.c.0.s8 %v2820
        %v2822 = vlaneseq
        %v2823 = vshrl.u32 %v2822, 7
        %v2824 = vsub.s32 %v2821, %v2823
        %v2825 = vrot.slane %v2811, %v2824
        %v2826 = vcombine.high %v1289, %v1114
        %v2828 = vunpack.c.l.s4 1983009808
        %v2829 = vunpack.c.0.s8 %v2828
        %v2830 = vlaneseq
        %v2831 = vshrl.u32 %v2830, 7
        %v2832 = vsub.s32 %v2829, %v2831
        %v2833 = vrot.slane %v1289, %v2832
        %v2835 = vunpack.c.l.s4 1983009808
        %v2836 = vunpack.c.0.s8 %v2835
        %v2837 = vlaneseq
        %v2838 = vshrl.u32 %v2837, 7
        %v2839 = vsub.s32 %v2836, %v2838
        %v2840 = vrot.slane %v2826, %v2839
        %v2841 = vcombine.low %v2818, %v2833
        %v2842 = vcombine.high %v2818, %v2833
        %v2844 = vunpack.c.l.s4 1934713408
        %v2845 = vunpack.c.0.s8 %v2844
        %v2846 = vlaneseq
        %v2847 = vshrl.u32 %v2846, 7
        %v2848 = vsub.s32 %v2845, %v2847
        %v2849 = vrot.slane %v2841, %v2848
        %v2851 = vunpack.c.l.s4 1934713408
        %v2852 = vunpack.c.0.s8 %v2851
        %v2853 = vlaneseq
        %v2854 = vshrl.u32 %v2853, 7
        %v2855 = vsub.s32 %v2852, %v2854
        %v2856 = vrot.slane %v2842, %v2855
        %v2857 = vcombine.low %v2825, %v2840
        %v2858 = vcombine.high %v2825, %v2840
        %v2860 = vunpack.c.l.s4 1934713408
        %v2861 = vunpack.c.0.s8 %v2860
        %v2862 = vlaneseq
        %v2863 = vshrl.u32 %v2862, 7
        %v2864 = vsub.s32 %v2861, %v2863
        %v2865 = vrot.slane %v2857, %v2864
        %v2867 = vunpack.c.l.s4 1934713408
        %v2868 = vunpack.c.0.s8 %v2867
        %v2869 = vlaneseq
        %v2870 = vshrl.u32 %v2869, 7
        %v2871 = vsub.s32 %v2868, %v2870
        %v2872 = vrot.slane %v2858, %v2871
        %v2873 = vcombine.high %v2849, 0
        %v2874 = vcombine.high %v2856, 0
        %v2875 = vcombine.high %v2865, 0
        %v2876 = vcombine.high %v2872, 0
        %v2877 = vcombine.high %v1285, %v1117
        %v2879 = vunpack.c.l.s4 1983009808
        %v2880 = vunpack.c.0.s8 %v2879
        %v2881 = vlaneseq
        %v2882 = vshrl.u32 %v2881, 7
        %v2883 = vsub.s32 %v2880, %v2882
        %v2884 = vrot.slane %v1285, %v2883
        %v2886 = vunpack.c.l.s4 1983009808
        %v2887 = vunpack.c.0.s8 %v2886
        %v2888 = vlaneseq
        %v2889 = vshrl.u32 %v2888, 7
        %v2890 = vsub.s32 %v2887, %v2889
        %v2891 = vrot.slane %v2877, %v2890
        %v2892 = vcombine.high %v1293, %v1117
        %v2894 = vunpack.c.l.s4 1983009808
        %v2895 = vunpack.c.0.s8 %v2894
        %v2896 = vlaneseq
        %v2897 = vshrl.u32 %v2896, 7
        %v2898 = vsub.s32 %v2895, %v2897
        %v2899 = vrot.slane %v1293, %v2898
        %v2901 = vunpack.c.l.s4 1983009808
        %v2902 = vunpack.c.0.s8 %v2901
        %v2903 = vlaneseq
        %v2904 = vshrl.u32 %v2903, 7
        %v2905 = vsub.s32 %v2902, %v2904
        %v2906 = vrot.slane %v2892, %v2905
        %v2907 = vcombine.low %v2884, %v2899
        %v2908 = vcombine.high %v2884, %v2899
        %v2910 = vunpack.c.l.s4 1934713408
        %v2911 = vunpack.c.0.s8 %v2910
        %v2912 = vlaneseq
        %v2913 = vshrl.u32 %v2912, 7
        %v2914 = vsub.s32 %v2911, %v2913
        %v2915 = vrot.slane %v2907, %v2914
        %v2917 = vunpack.c.l.s4 1934713408
        %v2918 = vunpack.c.0.s8 %v2917
        %v2919 = vlaneseq
        %v2920 = vshrl.u32 %v2919, 7
        %v2921 = vsub.s32 %v2918, %v2920
        %v2922 = vrot.slane %v2908, %v2921
        %v2923 = vcombine.low %v2891, %v2906
        %v2924 = vcombine.high %v2891, %v2906
        %v2926 = vunpack.c.l.s4 1934713408
        %v2927 = vunpack.c.0.s8 %v2926
        %v2928 = vlaneseq
        %v2929 = vshrl.u32 %v2928, 7
        %v2930 = vsub.s32 %v2927, %v2929
        %v2931 = vrot.slane %v2923, %v2930
        %v2933 = vunpack.c.l.s4 1934713408
        %v2934 = vunpack.c.0.s8 %v2933
        %v2935 = vlaneseq
        %v2936 = vshrl.u32 %v2935, 7
        %v2937 = vsub.s32 %v2934, %v2936
        %v2938 = vrot.slane %v2924, %v2937
        %v2939 = vcombine.high %v2915, 0
        %v2940 = vcombine.high %v2922, 0
        %v2941 = vcombine.high %v2931, 0
        %v2942 = vcombine.high %v2938, 0
        %v2943 = vcombine.high %v1297, %v1114
        %v2945 = vunpack.c.l.s4 1983009808
        %v2946 = vunpack.c.0.s8 %v2945
        %v2947 = vlaneseq
        %v2948 = vshrl.u32 %v2947, 7
        %v2949 = vsub.s32 %v2946, %v2948
        %v2950 = vrot.slane %v1297, %v2949
        %v2952 = vunpack.c.l.s4 1983009808
        %v2953 = vunpack.c.0.s8 %v2952
        %v2954 = vlaneseq
        %v2955 = vshrl.u32 %v2954, 7
        %v2956 = vsub.s32 %v2953, %v2955
        %v2957 = vrot.slane %v2943, %v2956
        %v2958 = vcombine.high %v1305, %v1114
        %v2960 = vunpack.c.l.s4 1983009808
        %v2961 = vunpack.c.0.s8 %v2960
        %v2962 = vlaneseq
        %v2963 = vshrl.u32 %v2962, 7
        %v2964 = vsub.s32 %v2961, %v2963
        %v2965 = vrot.slane %v1305, %v2964
        %v2967 = vunpack.c.l.s4 1983009808
        %v2968 = vunpack.c.0.s8 %v2967
        %v2969 = vlaneseq
        %v2970 = vshrl.u32 %v2969, 7
        %v2971 = vsub.s32 %v2968, %v2970
        %v2972 = vrot.slane %v2958, %v2971
        %v2973 = vcombine.low %v2950, %v2965
        %v2974 = vcombine.high %v2950, %v2965
        %v2976 = vunpack.c.l.s4 1934713408
        %v2977 = vunpack.c.0.s8 %v2976
        %v2978 = vlaneseq
        %v2979 = vshrl.u32 %v2978, 7
        %v2980 = vsub.s32 %v2977, %v2979
        %v2981 = vrot.slane %v2973, %v2980
        %v2983 = vunpack.c.l.s4 1934713408
        %v2984 = vunpack.c.0.s8 %v2983
        %v2985 = vlaneseq
        %v2986 = vshrl.u32 %v2985, 7
        %v2987 = vsub.s32 %v2984, %v2986
        %v2988 = vrot.slane %v2974, %v2987
        %v2989 = vcombine.low %v2957, %v2972
        %v2990 = vcombine.high %v2957, %v2972
        %v2992 = vunpack.c.l.s4 1934713408
        %v2993 = vunpack.c.0.s8 %v2992
        %v2994 = vlaneseq
        %v2995 = vshrl.u32 %v2994, 7
        %v2996 = vsub.s32 %v2993, %v2995
        %v2997 = vrot.slane %v2989, %v2996
        %v2999 = vunpack.c.l.s4 1934713408
        %v3000 = vunpack.c.0.s8 %v2999
        %v3001 = vlaneseq
        %v3002 = vshrl.u32 %v3001, 7
        %v3003 = vsub.s32 %v3000, %v3002
        %v3004 = vrot.slane %v2990, %v3003
        %v3005 = vcombine.high %v2981, 0
        %v3006 = vcombine.high %v2988, 0
        %v3007 = vcombine.high %v2997, 0
        %v3008 = vcombine.high %v3004, 0
        %v3009 = vcombine.high %v1301, %v1117
        %v3011 = vunpack.c.l.s4 1983009808
        %v3012 = vunpack.c.0.s8 %v3011
        %v3013 = vlaneseq
        %v3014 = vshrl.u32 %v3013, 7
        %v3015 = vsub.s32 %v3012, %v3014
        %v3016 = vrot.slane %v1301, %v3015
        %v3018 = vunpack.c.l.s4 1983009808
        %v3019 = vunpack.c.0.s8 %v3018
        %v3020 = vlaneseq
        %v3021 = vshrl.u32 %v3020, 7
        %v3022 = vsub.s32 %v3019, %v3021
        %v3023 = vrot.slane %v3009, %v3022
        %v3024 = vcombine.high %v1309, %v1117
        %v3026 = vunpack.c.l.s4 1983009808
        %v3027 = vunpack.c.0.s8 %v3026
        %v3028 = vlaneseq
        %v3029 = vshrl.u32 %v3028, 7
        %v3030 = vsub.s32 %v3027, %v3029
        %v3031 = vrot.slane %v1309, %v3030
        %v3033 = vunpack.c.l.s4 1983009808
        %v3034 = vunpack.c.0.s8 %v3033
        %v3035 = vlaneseq
        %v3036 = vshrl.u32 %v3035, 7
        %v3037 = vsub.s32 %v3034, %v3036
        %v3038 = vrot.slane %v3024, %v3037
        %v3039 = vcombine.low %v3016, %v3031
        %v3040 = vcombine.high %v3016, %v3031
        %v3042 = vunpack.c.l.s4 1934713408
        %v3043 = vunpack.c.0.s8 %v3042
        %v3044 = vlaneseq
        %v3045 = vshrl.u32 %v3044, 7
        %v3046 = vsub.s32 %v3043, %v3045
        %v3047 = vrot.slane %v3039, %v3046
        %v3049 = vunpack.c.l.s4 1934713408
        %v3050 = vunpack.c.0.s8 %v3049
        %v3051 = vlaneseq
        %v3052 = vshrl.u32 %v3051, 7
        %v3053 = vsub.s32 %v3050, %v3052
        %v3054 = vrot.slane %v3040, %v3053
        %v3055 = vcombine.low %v3023, %v3038
        %v3056 = vcombine.high %v3023, %v3038
        %v3058 = vunpack.c.l.s4 1934713408
        %v3059 = vunpack.c.0.s8 %v3058
        %v3060 = vlaneseq
        %v3061 = vshrl.u32 %v3060, 7
        %v3062 = vsub.s32 %v3059, %v3061
        %v3063 = vrot.slane %v3055, %v3062
        %v3065 = vunpack.c.l.s4 1934713408
        %v3066 = vunpack.c.0.s8 %v3065
        %v3067 = vlaneseq
        %v3068 = vshrl.u32 %v3067, 7
        %v3069 = vsub.s32 %v3066, %v3068
        %v3070 = vrot.slane %v3056, %v3069
        %v3071 = vcombine.high %v3047, 0
        %v3072 = vcombine.high %v3054, 0
        %v3073 = vcombine.high %v3063, 0
        %v3074 = vcombine.high %v3070, 0
        %v3075 = vcombine.high %v1313, %v1114
        %v3077 = vunpack.c.l.s4 1983009808
        %v3078 = vunpack.c.0.s8 %v3077
        %v3079 = vlaneseq
        %v3080 = vshrl.u32 %v3079, 7
        %v3081 = vsub.s32 %v3078, %v3080
        %v3082 = vrot.slane %v1313, %v3081
        %v3084 = vunpack.c.l.s4 1983009808
        %v3085 = vunpack.c.0.s8 %v3084
        %v3086 = vlaneseq
        %v3087 = vshrl.u32 %v3086, 7
        %v3088 = vsub.s32 %v3085, %v3087
        %v3089 = vrot.slane %v3075, %v3088
        %v3090 = vcombine.high %v1321, %v1114
        %v3092 = vunpack.c.l.s4 1983009808
        %v3093 = vunpack.c.0.s8 %v3092
        %v3094 = vlaneseq
        %v3095 = vshrl.u32 %v3094, 7
        %v3096 = vsub.s32 %v3093, %v3095
        %v3097 = vrot.slane %v1321, %v3096
        %v3099 = vunpack.c.l.s4 1983009808
        %v3100 = vunpack.c.0.s8 %v3099
        %v3101 = vlaneseq
        %v3102 = vshrl.u32 %v3101, 7
        %v3103 = vsub.s32 %v3100, %v3102
        %v3104 = vrot.slane %v3090, %v3103
        %v3105 = vcombine.low %v3082, %v3097
        %v3106 = vcombine.high %v3082, %v3097
        %v3108 = vunpack.c.l.s4 1934713408
        %v3109 = vunpack.c.0.s8 %v3108
        %v3110 = vlaneseq
        %v3111 = vshrl.u32 %v3110, 7
        %v3112 = vsub.s32 %v3109, %v3111
        %v3113 = vrot.slane %v3105, %v3112
        %v3115 = vunpack.c.l.s4 1934713408
        %v3116 = vunpack.c.0.s8 %v3115
        %v3117 = vlaneseq
        %v3118 = vshrl.u32 %v3117, 7
        %v3119 = vsub.s32 %v3116, %v3118
        %v3120 = vrot.slane %v3106, %v3119
        %v3121 = vcombine.low %v3089, %v3104
        %v3122 = vcombine.high %v3089, %v3104
        %v3124 = vunpack.c.l.s4 1934713408
        %v3125 = vunpack.c.0.s8 %v3124
        %v3126 = vlaneseq
        %v3127 = vshrl.u32 %v3126, 7
        %v3128 = vsub.s32 %v3125, %v3127
        %v3129 = vrot.slane %v3121, %v3128
        %v3131 = vunpack.c.l.s4 1934713408
        %v3132 = vunpack.c.0.s8 %v3131
        %v3133 = vlaneseq
        %v3134 = vshrl.u32 %v3133, 7
        %v3135 = vsub.s32 %v3132, %v3134
        %v3136 = vrot.slane %v3122, %v3135
        %v3137 = vcombine.high %v3113, 0
        %v3138 = vcombine.high %v3120, 0
        %v3139 = vcombine.high %v3129, 0
        %v3140 = vcombine.high %v3136, 0
        %v3141 = vcombine.high %v1317, %v1117
        %v3143 = vunpack.c.l.s4 1983009808
        %v3144 = vunpack.c.0.s8 %v3143
        %v3145 = vlaneseq
        %v3146 = vshrl.u32 %v3145, 7
        %v3147 = vsub.s32 %v3144, %v3146
        %v3148 = vrot.slane %v1317, %v3147
        %v3150 = vunpack.c.l.s4 1983009808
        %v3151 = vunpack.c.0.s8 %v3150
        %v3152 = vlaneseq
        %v3153 = vshrl.u32 %v3152, 7
        %v3154 = vsub.s32 %v3151, %v3153
        %v3155 = vrot.slane %v3141, %v3154
        %v3156 = vcombine.high %v1325, %v1117
        %v3158 = vunpack.c.l.s4 1983009808
        %v3159 = vunpack.c.0.s8 %v3158
        %v3160 = vlaneseq
        %v3161 = vshrl.u32 %v3160, 7
        %v3162 = vsub.s32 %v3159, %v3161
        %v3163 = vrot.slane %v1325, %v3162
        %v3165 = vunpack.c.l.s4 1983009808
        %v3166 = vunpack.c.0.s8 %v3165
        %v3167 = vlaneseq
        %v3168 = vshrl.u32 %v3167, 7
        %v3169 = vsub.s32 %v3166, %v3168
        %v3170 = vrot.slane %v3156, %v3169
        %v3171 = vcombine.low %v3148, %v3163
        %v3172 = vcombine.high %v3148, %v3163
        %v3174 = vunpack.c.l.s4 1934713408
        %v3175 = vunpack.c.0.s8 %v3174
        %v3176 = vlaneseq
        %v3177 = vshrl.u32 %v3176, 7
        %v3178 = vsub.s32 %v3175, %v3177
        %v3179 = vrot.slane %v3171, %v3178
        %v3181 = vunpack.c.l.s4 1934713408
        %v3182 = vunpack.c.0.s8 %v3181
        %v3183 = vlaneseq
        %v3184 = vshrl.u32 %v3183, 7
        %v3185 = vsub.s32 %v3182, %v3184
        %v3186 = vrot.slane %v3172, %v3185
        %v3187 = vcombine.low %v3155, %v3170
        %v3188 = vcombine.high %v3155, %v3170
        %v3190 = vunpack.c.l.s4 1934713408
        %v3191 = vunpack.c.0.s8 %v3190
        %v3192 = vlaneseq
        %v3193 = vshrl.u32 %v3192, 7
        %v3194 = vsub.s32 %v3191, %v3193
        %v3195 = vrot.slane %v3187, %v3194
        %v3197 = vunpack.c.l.s4 1934713408
        %v3198 = vunpack.c.0.s8 %v3197
        %v3199 = vlaneseq
        %v3200 = vshrl.u32 %v3199, 7
        %v3201 = vsub.s32 %v3198, %v3200
        %v3202 = vrot.slane %v3188, %v3201
        %v3203 = vcombine.high %v3179, 0
        %v3204 = vcombine.high %v3186, 0
        %v3205 = vcombine.high %v3195, 0
        %v3206 = vcombine.high %v3202, 0
        %v3207 = vcombine.high %v1329, %v1114
        %v3209 = vunpack.c.l.s4 1983009808
        %v3210 = vunpack.c.0.s8 %v3209
        %v3211 = vlaneseq
        %v3212 = vshrl.u32 %v3211, 7
        %v3213 = vsub.s32 %v3210, %v3212
        %v3214 = vrot.slane %v1329, %v3213
        %v3216 = vunpack.c.l.s4 1983009808
        %v3217 = vunpack.c.0.s8 %v3216
        %v3218 = vlaneseq
        %v3219 = vshrl.u32 %v3218, 7
        %v3220 = vsub.s32 %v3217, %v3219
        %v3221 = vrot.slane %v3207, %v3220
        %v3222 = vcombine.high %v1337, %v1114
        %v3224 = vunpack.c.l.s4 1983009808
        %v3225 = vunpack.c.0.s8 %v3224
        %v3226 = vlaneseq
        %v3227 = vshrl.u32 %v3226, 7
        %v3228 = vsub.s32 %v3225, %v3227
        %v3229 = vrot.slane %v1337, %v3228
        %v3231 = vunpack.c.l.s4 1983009808
        %v3232 = vunpack.c.0.s8 %v3231
        %v3233 = vlaneseq
        %v3234 = vshrl.u32 %v3233, 7
        %v3235 = vsub.s32 %v3232, %v3234
        %v3236 = vrot.slane %v3222, %v3235
        %v3237 = vcombine.low %v3214, %v3229
        %v3238 = vcombine.high %v3214, %v3229
        %v3240 = vunpack.c.l.s4 1934713408
        %v3241 = vunpack.c.0.s8 %v3240
        %v3242 = vlaneseq
        %v3243 = vshrl.u32 %v3242, 7
        %v3244 = vsub.s32 %v3241, %v3243
        %v3245 = vrot.slane %v3237, %v3244
        %v3247 = vunpack.c.l.s4 1934713408
        %v3248 = vunpack.c.0.s8 %v3247
        %v3249 = vlaneseq
        %v3250 = vshrl.u32 %v3249, 7
        %v3251 = vsub.s32 %v3248, %v3250
        %v3252 = vrot.slane %v3238, %v3251
        %v3253 = vcombine.low %v3221, %v3236
        %v3254 = vcombine.high %v3221, %v3236
        %v3256 = vunpack.c.l.s4 1934713408
        %v3257 = vunpack.c.0.s8 %v3256
        %v3258 = vlaneseq
        %v3259 = vshrl.u32 %v3258, 7
        %v3260 = vsub.s32 %v3257, %v3259
        %v3261 = vrot.slane %v3253, %v3260
        %v3263 = vunpack.c.l.s4 1934713408
        %v3264 = vunpack.c.0.s8 %v3263
        %v3265 = vlaneseq
        %v3266 = vshrl.u32 %v3265, 7
        %v3267 = vsub.s32 %v3264, %v3266
        %v3268 = vrot.slane %v3254, %v3267
        %v3269 = vcombine.high %v3245, 0
        %v3270 = vcombine.high %v3252, 0
        %v3271 = vcombine.high %v3261, 0
        %v3272 = vcombine.high %v3268, 0
        %v3273 = vcombine.high %v1333, %v1117
        %v3275 = vunpack.c.l.s4 1983009808
        %v3276 = vunpack.c.0.s8 %v3275
        %v3277 = vlaneseq
        %v3278 = vshrl.u32 %v3277, 7
        %v3279 = vsub.s32 %v3276, %v3278
        %v3280 = vrot.slane %v1333, %v3279
        %v3282 = vunpack.c.l.s4 1983009808
        %v3283 = vunpack.c.0.s8 %v3282
        %v3284 = vlaneseq
        %v3285 = vshrl.u32 %v3284, 7
        %v3286 = vsub.s32 %v3283, %v3285
        %v3287 = vrot.slane %v3273, %v3286
        %v3288 = vcombine.high %v1341, %v1117
        %v3290 = vunpack.c.l.s4 1983009808
        %v3291 = vunpack.c.0.s8 %v3290
        %v3292 = vlaneseq
        %v3293 = vshrl.u32 %v3292, 7
        %v3294 = vsub.s32 %v3291, %v3293
        %v3295 = vrot.slane %v1341, %v3294
        %v3297 = vunpack.c.l.s4 1983009808
        %v3298 = vunpack.c.0.s8 %v3297
        %v3299 = vlaneseq
        %v3300 = vshrl.u32 %v3299, 7
        %v3301 = vsub.s32 %v3298, %v3300
        %v3302 = vrot.slane %v3288, %v3301
        %v3303 = vcombine.low %v3280, %v3295
        %v3304 = vcombine.high %v3280, %v3295
        %v3306 = vunpack.c.l.s4 1934713408
        %v3307 = vunpack.c.0.s8 %v3306
        %v3308 = vlaneseq
        %v3309 = vshrl.u32 %v3308, 7
        %v3310 = vsub.s32 %v3307, %v3309
        %v3311 = vrot.slane %v3303, %v3310
        %v3313 = vunpack.c.l.s4 1934713408
        %v3314 = vunpack.c.0.s8 %v3313
        %v3315 = vlaneseq
        %v3316 = vshrl.u32 %v3315, 7
        %v3317 = vsub.s32 %v3314, %v3316
        %v3318 = vrot.slane %v3304, %v3317
        %v3319 = vcombine.low %v3287, %v3302
        %v3320 = vcombine.high %v3287, %v3302
        %v3322 = vunpack.c.l.s4 1934713408
        %v3323 = vunpack.c.0.s8 %v3322
        %v3324 = vlaneseq
        %v3325 = vshrl.u32 %v3324, 7
        %v3326 = vsub.s32 %v3323, %v3325
        %v3327 = vrot.slane %v3319, %v3326
        %v3329 = vunpack.c.l.s4 1934713408
        %v3330 = vunpack.c.0.s8 %v3329
        %v3331 = vlaneseq
        %v3332 = vshrl.u32 %v3331, 7
        %v3333 = vsub.s32 %v3330, %v3332
        %v3334 = vrot.slane %v3320, %v3333
        %v3335 = vcombine.high %v3311, 0
        %v3336 = vcombine.high %v3318, 0
        %v3337 = vcombine.high %v3327, 0
        %v3338 = vcombine.high %v3334, 0
        %v3339 = vcombine.high %v1345, %v1114
        %v3341 = vunpack.c.l.s4 1983009808
        %v3342 = vunpack.c.0.s8 %v3341
        %v3343 = vlaneseq
        %v3344 = vshrl.u32 %v3343, 7
        %v3345 = vsub.s32 %v3342, %v3344
        %v3346 = vrot.slane %v1345, %v3345
        %v3348 = vunpack.c.l.s4 1983009808
        %v3349 = vunpack.c.0.s8 %v3348
        %v3350 = vlaneseq
        %v3351 = vshrl.u32 %v3350, 7
        %v3352 = vsub.s32 %v3349, %v3351
        %v3353 = vrot.slane %v3339, %v3352
        %v3354 = vcombine.high %v1353, %v1114
        %v3356 = vunpack.c.l.s4 1983009808
        %v3357 = vunpack.c.0.s8 %v3356
        %v3358 = vlaneseq
        %v3359 = vshrl.u32 %v3358, 7
        %v3360 = vsub.s32 %v3357, %v3359
        %v3361 = vrot.slane %v1353, %v3360
        %v3363 = vunpack.c.l.s4 1983009808
        %v3364 = vunpack.c.0.s8 %v3363
        %v3365 = vlaneseq
        %v3366 = vshrl.u32 %v3365, 7
        %v3367 = vsub.s32 %v3364, %v3366
        %v3368 = vrot.slane %v3354, %v3367
        %v3369 = vcombine.low %v3346, %v3361
        %v3370 = vcombine.high %v3346, %v3361
        %v3372 = vunpack.c.l.s4 1934713408
        %v3373 = vunpack.c.0.s8 %v3372
        %v3374 = vlaneseq
        %v3375 = vshrl.u32 %v3374, 7
        %v3376 = vsub.s32 %v3373, %v3375
        %v3377 = vrot.slane %v3369, %v3376
        %v3379 = vunpack.c.l.s4 1934713408
        %v3380 = vunpack.c.0.s8 %v3379
        %v3381 = vlaneseq
        %v3382 = vshrl.u32 %v3381, 7
        %v3383 = vsub.s32 %v3380, %v3382
        %v3384 = vrot.slane %v3370, %v3383
        %v3385 = vcombine.low %v3353, %v3368
        %v3386 = vcombine.high %v3353, %v3368
        %v3388 = vunpack.c.l.s4 1934713408
        %v3389 = vunpack.c.0.s8 %v3388
        %v3390 = vlaneseq
        %v3391 = vshrl.u32 %v3390, 7
        %v3392 = vsub.s32 %v3389, %v3391
        %v3393 = vrot.slane %v3385, %v3392
        %v3395 = vunpack.c.l.s4 1934713408
        %v3396 = vunpack.c.0.s8 %v3395
        %v3397 = vlaneseq
        %v3398 = vshrl.u32 %v3397, 7
        %v3399 = vsub.s32 %v3396, %v3398
        %v3400 = vrot.slane %v3386, %v3399
        %v3401 = vcombine.high %v3377, 0
        %v3402 = vcombine.high %v3384, 0
        %v3403 = vcombine.high %v3393, 0
        %v3404 = vcombine.high %v3400, 0
        %v3405 = vcombine.high %v1349, %v1117
        %v3407 = vunpack.c.l.s4 1983009808
        %v3408 = vunpack.c.0.s8 %v3407
        %v3409 = vlaneseq
        %v3410 = vshrl.u32 %v3409, 7
        %v3411 = vsub.s32 %v3408, %v3410
        %v3412 = vrot.slane %v1349, %v3411
        %v3414 = vunpack.c.l.s4 1983009808
        %v3415 = vunpack.c.0.s8 %v3414
        %v3416 = vlaneseq
        %v3417 = vshrl.u32 %v3416, 7
        %v3418 = vsub.s32 %v3415, %v3417
        %v3419 = vrot.slane %v3405, %v3418
        %v3420 = vcombine.high %v1357, %v1117
        %v3422 = vunpack.c.l.s4 1983009808
        %v3423 = vunpack.c.0.s8 %v3422
        %v3424 = vlaneseq
        %v3425 = vshrl.u32 %v3424, 7
        %v3426 = vsub.s32 %v3423, %v3425
        %v3427 = vrot.slane %v1357, %v3426
        %v3429 = vunpack.c.l.s4 1983009808
        %v3430 = vunpack.c.0.s8 %v3429
        %v3431 = vlaneseq
        %v3432 = vshrl.u32 %v3431, 7
        %v3433 = vsub.s32 %v3430, %v3432
        %v3434 = vrot.slane %v3420, %v3433
        %v3435 = vcombine.low %v3412, %v3427
        %v3436 = vcombine.high %v3412, %v3427
        %v3438 = vunpack.c.l.s4 1934713408
        %v3439 = vunpack.c.0.s8 %v3438
        %v3440 = vlaneseq
        %v3441 = vshrl.u32 %v3440, 7
        %v3442 = vsub.s32 %v3439, %v3441
        %v3443 = vrot.slane %v3435, %v3442
        %v3445 = vunpack.c.l.s4 1934713408
        %v3446 = vunpack.c.0.s8 %v3445
        %v3447 = vlaneseq
        %v3448 = vshrl.u32 %v3447, 7
        %v3449 = vsub.s32 %v3446, %v3448
        %v3450 = vrot.slane %v3436, %v3449
        %v3451 = vcombine.low %v3419, %v3434
        %v3452 = vcombine.high %v3419, %v3434
        %v3454 = vunpack.c.l.s4 1934713408
        %v3455 = vunpack.c.0.s8 %v3454
        %v3456 = vlaneseq
        %v3457 = vshrl.u32 %v3456, 7
        %v3458 = vsub.s32 %v3455, %v3457
        %v3459 = vrot.slane %v3451, %v3458
        %v3461 = vunpack.c.l.s4 1934713408
        %v3462 = vunpack.c.0.s8 %v3461
        %v3463 = vlaneseq
        %v3464 = vshrl.u32 %v3463, 7
        %v3465 = vsub.s32 %v3462, %v3464
        %v3466 = vrot.slane %v3452, %v3465
        %v3467 = vcombine.high %v3443, 0
        %v3468 = vcombine.high %v3450, 0
        %v3469 = vcombine.high %v3459, 0
        %v3470 = vcombine.high %v3466, 0
        %v3471 = vcombine.low %v1397, %v1404
        %v3473 = vunpack.c.l.s4 1983009808
        %v3474 = vunpack.c.0.s8 %v3473
        %v3475 = vlaneseq
        %v3476 = vshrl.u32 %v3475, 7
        %v3477 = vsub.s32 %v3474, %v3476
        %v3478 = vrot.slane %v3471, %v3477
        %v3479 = vcombine.low %v1421, %v1422
        %v3481 = vunpack.c.l.s4 1983009808
        %v3482 = vunpack.c.0.s8 %v3481
        %v3483 = vlaneseq
        %v3484 = vshrl.u32 %v3483, 7
        %v3485 = vsub.s32 %v3482, %v3484
        %v3486 = vrot.slane %v3479, %v3485
        %v3487 = vcombine.low %v1413, %v1420
        %v3489 = vunpack.c.l.s4 1983009808
        %v3490 = vunpack.c.0.s8 %v3489
        %v3491 = vlaneseq
        %v3492 = vshrl.u32 %v3491, 7
        %v3493 = vsub.s32 %v3490, %v3492
        %v3494 = vrot.slane %v3487, %v3493
        %v3495 = vcombine.low %v1423, %v1424
        %v3497 = vunpack.c.l.s4 1983009808
        %v3498 = vunpack.c.0.s8 %v3497
        %v3499 = vlaneseq
        %v3500 = vshrl.u32 %v3499, 7
        %v3501 = vsub.s32 %v3498, %v3500
        %v3502 = vrot.slane %v3495, %v3501
        %v3503 = vcombine.low %v3478, %v3486
        %v3505 = vunpack.c.l.s4 1934713408
        %v3506 = vunpack.c.0.s8 %v3505
        %v3507 = vlaneseq
        %v3508 = vshrl.u32 %v3507, 7
        %v3509 = vsub.s32 %v3506, %v3508
        %v3510 = vrot.slane %v3503, %v3509
        %v3511 = vcombine.low %v3494, %v3502
        %v3513 = vunpack.c.l.s4 1934713408
        %v3514 = vunpack.c.0.s8 %v3513
        %v3515 = vlaneseq
        %v3516 = vshrl.u32 %v3515, 7
        %v3517 = vsub.s32 %v3514, %v3516
        %v3518 = vrot.slane %v3511, %v3517
        %v3519 = vcombine.low %v3510, %v3518
        %v3520 = vcombine.high %v3510, %v3518
        %v3521 = vcombine.low %v1463, %v1470
        %v3523 = vunpack.c.l.s4 1983009808
        %v3524 = vunpack.c.0.s8 %v3523
        %v3525 = vlaneseq
        %v3526 = vshrl.u32 %v3525, 7
        %v3527 = vsub.s32 %v3524, %v3526
        %v3528 = vrot.slane %v3521, %v3527
        %v3529 = vcombine.low %v1487, %v1488
        %v3531 = vunpack.c.l.s4 1983009808
        %v3532 = vunpack.c.0.s8 %v3531
        %v3533 = vlaneseq
        %v3534 = vshrl.u32 %v3533, 7
        %v3535 = vsub.s32 %v3532, %v3534
        %v3536 = vrot.slane %v3529, %v3535
        %v3537 = vcombine.low %v1479, %v1486
        %v3539 = vunpack.c.l.s4 1983009808
        %v3540 = vunpack.c.0.s8 %v3539
        %v3541 = vlaneseq
        %v3542 = vshrl.u32 %v3541, 7
        %v3543 = vsub.s32 %v3540, %v3542
        %v3544 = vrot.slane %v3537, %v3543
        %v3545 = vcombine.low %v1489, %v1490
        %v3547 = vunpack.c.l.s4 1983009808
        %v3548 = vunpack.c.0.s8 %v3547
        %v3549 = vlaneseq
        %v3550 = vshrl.u32 %v3549, 7
        %v3551 = vsub.s32 %v3548, %v3550
        %v3552 = vrot.slane %v3545, %v3551
        %v3553 = vcombine.low %v3528, %v3536
        %v3555 = vunpack.c.l.s4 1934713408
        %v3556 = vunpack.c.0.s8 %v3555
        %v3557 = vlaneseq
        %v3558 = vshrl.u32 %v3557, 7
        %v3559 = vsub.s32 %v3556, %v3558
        %v3560 = vrot.slane %v3553, %v3559
        %v3561 = vcombine.low %v3544, %v3552
        %v3563 = vunpack.c.l.s4 1934713408
        %v3564 = vunpack.c.0.s8 %v3563
        %v3565 = vlaneseq
        %v3566 = vshrl.u32 %v3565, 7
        %v3567 = vsub.s32 %v3564, %v3566
        %v3568 = vrot.slane %v3561, %v3567
        %v3569 = vcombine.low %v3560, %v3568
        %v3570 = vcombine.high %v3560, %v3568
        %v3571 = vcombine.low %v1529, %v1536
        %v3573 = vunpack.c.l.s4 1983009808
        %v3574 = vunpack.c.0.s8 %v3573
        %v3575 = vlaneseq
        %v3576 = vshrl.u32 %v3575, 7
        %v3577 = vsub.s32 %v3574, %v3576
        %v3578 = vrot.slane %v3571, %v3577
        %v3579 = vcombine.low %v1553, %v1554
        %v3581 = vunpack.c.l.s4 1983009808
        %v3582 = vunpack.c.0.s8 %v3581
        %v3583 = vlaneseq
        %v3584 = vshrl.u32 %v3583, 7
        %v3585 = vsub.s32 %v3582, %v3584
        %v3586 = vrot.slane %v3579, %v3585
        %v3587 = vcombine.low %v1545, %v1552
        %v3589 = vunpack.c.l.s4 1983009808
        %v3590 = vunpack.c.0.s8 %v3589
        %v3591 = vlaneseq
        %v3592 = vshrl.u32 %v3591, 7
        %v3593 = vsub.s32 %v3590, %v3592
        %v3594 = vrot.slane %v3587, %v3593
        %v3595 = vcombine.low %v1555, %v1556
        %v3597 = vunpack.c.l.s4 1983009808
        %v3598 = vunpack.c.0.s8 %v3597
        %v3599 = vlaneseq
        %v3600 = vshrl.u32 %v3599, 7
        %v3601 = vsub.s32 %v3598, %v3600
        %v3602 = vrot.slane %v3595, %v3601
        %v3603 = vcombine.low %v3578, %v3586
        %v3605 = vunpack.c.l.s4 1934713408
        %v3606 = vunpack.c.0.s8 %v3605
        %v3607 = vlaneseq
        %v3608 = vshrl.u32 %v3607, 7
        %v3609 = vsub.s32 %v3606, %v3608
        %v3610 = vrot.slane %v3603, %v3609
        %v3611 = vcombine.low %v3594, %v3602
        %v3613 = vunpack.c.l.s4 1934713408
        %v3614 = vunpack.c.0.s8 %v3613
        %v3615 = vlaneseq
        %v3616 = vshrl.u32 %v3615, 7
        %v3617 = vsub.s32 %v3614, %v3616
        %v3618 = vrot.slane %v3611, %v3617
        %v3619 = vcombine.low %v3610, %v3618
        %v3620 = vcombine.high %v3610, %v3618
        %v3621 = vcombine.low %v1595, %v1602
        %v3623 = vunpack.c.l.s4 1983009808
        %v3624 = vunpack.c.0.s8 %v3623
        %v3625 = vlaneseq
        %v3626 = vshrl.u32 %v3625, 7
        %v3627 = vsub.s32 %v3624, %v3626
        %v3628 = vrot.slane %v3621, %v3627
        %v3629 = vcombine.low %v1619, %v1620
        %v3631 = vunpack.c.l.s4 1983009808
        %v3632 = vunpack.c.0.s8 %v3631
        %v3633 = vlaneseq
        %v3634 = vshrl.u32 %v3633, 7
        %v3635 = vsub.s32 %v3632, %v3634
        %v3636 = vrot.slane %v3629, %v3635
        %v3637 = vcombine.low %v1611, %v1618
        %v3639 = vunpack.c.l.s4 1983009808
        %v3640 = vunpack.c.0.s8 %v3639
        %v3641 = vlaneseq
        %v3642 = vshrl.u32 %v3641, 7
        %v3643 = vsub.s32 %v3640, %v3642
        %v3644 = vrot.slane %v3637, %v3643
        %v3645 = vcombine.low %v1621, %v1622
        %v3647 = vunpack.c.l.s4 1983009808
        %v3648 = vunpack.c.0.s8 %v3647
        %v3649 = vlaneseq
        %v3650 = vshrl.u32 %v3649, 7
        %v3651 = vsub.s32 %v3648, %v3650
        %v3652 = vrot.slane %v3645, %v3651
        %v3653 = vcombine.low %v3628, %v3636
        %v3655 = vunpack.c.l.s4 1934713408
        %v3656 = vunpack.c.0.s8 %v3655
        %v3657 = vlaneseq
        %v3658 = vshrl.u32 %v3657, 7
        %v3659 = vsub.s32 %v3656, %v3658
        %v3660 = vrot.slane %v3653, %v3659
        %v3661 = vcombine.low %v3644, %v3652
        %v3663 = vunpack.c.l.s4 1934713408
        %v3664 = vunpack.c.0.s8 %v3663
        %v3665 = vlaneseq
        %v3666 = vshrl.u32 %v3665, 7
        %v3667 = vsub.s32 %v3664, %v3666
        %v3668 = vrot.slane %v3661, %v3667
        %v3669 = vcombine.low %v3660, %v3668
        %v3670 = vcombine.high %v3660, %v3668
        %v3671 = vcombine.low %v1661, %v1668
        %v3673 = vunpack.c.l.s4 1983009808
        %v3674 = vunpack.c.0.s8 %v3673
        %v3675 = vlaneseq
        %v3676 = vshrl.u32 %v3675, 7
        %v3677 = vsub.s32 %v3674, %v3676
        %v3678 = vrot.slane %v3671, %v3677
        %v3679 = vcombine.low %v1685, %v1686
        %v3681 = vunpack.c.l.s4 1983009808
        %v3682 = vunpack.c.0.s8 %v3681
        %v3683 = vlaneseq
        %v3684 = vshrl.u32 %v3683, 7
        %v3685 = vsub.s32 %v3682, %v3684
        %v3686 = vrot.slane %v3679, %v3685
        %v3687 = vcombine.low %v1677, %v1684
        %v3689 = vunpack.c.l.s4 1983009808
        %v3690 = vunpack.c.0.s8 %v3689
        %v3691 = vlaneseq
        %v3692 = vshrl.u32 %v3691, 7
        %v3693 = vsub.s32 %v3690, %v3692
        %v3694 = vrot.slane %v3687, %v3693
        %v3695 = vcombine.low %v1687, %v1688
        %v3697 = vunpack.c.l.s4 1983009808
        %v3698 = vunpack.c.0.s8 %v3697
        %v3699 = vlaneseq
        %v3700 = vshrl.u32 %v3699, 7
        %v3701 = vsub.s32 %v3698, %v3700
        %v3702 = vrot.slane %v3695, %v3701
        %v3703 = vcombine.low %v3678, %v3686
        %v3705 = vunpack.c.l.s4 1934713408
        %v3706 = vunpack.c.0.s8 %v3705
        %v3707 = vlaneseq
        %v3708 = vshrl.u32 %v3707, 7
        %v3709 = vsub.s32 %v3706, %v3708
        %v3710 = vrot.slane %v3703, %v3709
        %v3711 = vcombine.low %v3694, %v3702
        %v3713 = vunpack.c.l.s4 1934713408
        %v3714 = vunpack.c.0.s8 %v3713
        %v3715 = vlaneseq
        %v3716 = vshrl.u32 %v3715, 7
        %v3717 = vsub.s32 %v3714, %v3716
        %v3718 = vrot.slane %v3711, %v3717
        %v3719 = vcombine.low %v3710, %v3718
        %v3720 = vcombine.high %v3710, %v3718
        %v3721 = vcombine.low %v1727, %v1734
        %v3723 = vunpack.c.l.s4 1983009808
        %v3724 = vunpack.c.0.s8 %v3723
        %v3725 = vlaneseq
        %v3726 = vshrl.u32 %v3725, 7
        %v3727 = vsub.s32 %v3724, %v3726
        %v3728 = vrot.slane %v3721, %v3727
        %v3729 = vcombine.low %v1751, %v1752
        %v3731 = vunpack.c.l.s4 1983009808
        %v3732 = vunpack.c.0.s8 %v3731
        %v3733 = vlaneseq
        %v3734 = vshrl.u32 %v3733, 7
        %v3735 = vsub.s32 %v3732, %v3734
        %v3736 = vrot.slane %v3729, %v3735
        %v3737 = vcombine.low %v1743, %v1750
        %v3739 = vunpack.c.l.s4 1983009808
        %v3740 = vunpack.c.0.s8 %v3739
        %v3741 = vlaneseq
        %v3742 = vshrl.u32 %v3741, 7
        %v3743 = vsub.s32 %v3740, %v3742
        %v3744 = vrot.slane %v3737, %v3743
        %v3745 = vcombine.low %v1753, %v1754
        %v3747 = vunpack.c.l.s4 1983009808
        %v3748 = vunpack.c.0.s8 %v3747
        %v3749 = vlaneseq
        %v3750 = vshrl.u32 %v3749, 7
        %v3751 = vsub.s32 %v3748, %v3750
        %v3752 = vrot.slane %v3745, %v3751
        %v3753 = vcombine.low %v3728, %v3736
        %v3755 = vunpack.c.l.s4 1934713408
        %v3756 = vunpack.c.0.s8 %v3755
        %v3757 = vlaneseq
        %v3758 = vshrl.u32 %v3757, 7
        %v3759 = vsub.s32 %v3756, %v3758
        %v3760 = vrot.slane %v3753, %v3759
        %v3761 = vcombine.low %v3744, %v3752
        %v3763 = vunpack.c.l.s4 1934713408
        %v3764 = vunpack.c.0.s8 %v3763
        %v3765 = vlaneseq
        %v3766 = vshrl.u32 %v3765, 7
        %v3767 = vsub.s32 %v3764, %v3766
        %v3768 = vrot.slane %v3761, %v3767
        %v3769 = vcombine.low %v3760, %v3768
        %v3770 = vcombine.high %v3760, %v3768
        %v3771 = vcombine.low %v1793, %v1800
        %v3773 = vunpack.c.l.s4 1983009808
        %v3774 = vunpack.c.0.s8 %v3773
        %v3775 = vlaneseq
        %v3776 = vshrl.u32 %v3775, 7
        %v3777 = vsub.s32 %v3774, %v3776
        %v3778 = vrot.slane %v3771, %v3777
        %v3779 = vcombine.low %v1817, %v1818
        %v3781 = vunpack.c.l.s4 1983009808
        %v3782 = vunpack.c.0.s8 %v3781
        %v3783 = vlaneseq
        %v3784 = vshrl.u32 %v3783, 7
        %v3785 = vsub.s32 %v3782, %v3784
        %v3786 = vrot.slane %v3779, %v3785
        %v3787 = vcombine.low %v1809, %v1816
        %v3789 = vunpack.c.l.s4 1983009808
        %v3790 = vunpack.c.0.s8 %v3789
        %v3791 = vlaneseq
        %v3792 = vshrl.u32 %v3791, 7
        %v3793 = vsub.s32 %v3790, %v3792
        %v3794 = vrot.slane %v3787, %v3793
        %v3795 = vcombine.low %v1819, %v1820
        %v3797 = vunpack.c.l.s4 1983009808
        %v3798 = vunpack.c.0.s8 %v3797
        %v3799 = vlaneseq
        %v3800 = vshrl.u32 %v3799, 7
        %v3801 = vsub.s32 %v3798, %v3800
        %v3802 = vrot.slane %v3795, %v3801
        %v3803 = vcombine.low %v3778, %v3786
        %v3805 = vunpack.c.l.s4 1934713408
        %v3806 = vunpack.c.0.s8 %v3805
        %v3807 = vlaneseq
        %v3808 = vshrl.u32 %v3807, 7
        %v3809 = vsub.s32 %v3806, %v3808
        %v3810 = vrot.slane %v3803, %v3809
        %v3811 = vcombine.low %v3794, %v3802
        %v3813 = vunpack.c.l.s4 1934713408
        %v3814 = vunpack.c.0.s8 %v3813
        %v3815 = vlaneseq
        %v3816 = vshrl.u32 %v3815, 7
        %v3817 = vsub.s32 %v3814, %v3816
        %v3818 = vrot.slane %v3811, %v3817
        %v3819 = vcombine.low %v3810, %v3818
        %v3820 = vcombine.high %v3810, %v3818
        %v3821 = vcombine.low %v1859, %v1866
        %v3823 = vunpack.c.l.s4 1983009808
        %v3824 = vunpack.c.0.s8 %v3823
        %v3825 = vlaneseq
        %v3826 = vshrl.u32 %v3825, 7
        %v3827 = vsub.s32 %v3824, %v3826
        %v3828 = vrot.slane %v3821, %v3827
        %v3829 = vcombine.low %v1883, %v1884
        %v3831 = vunpack.c.l.s4 1983009808
        %v3832 = vunpack.c.0.s8 %v3831
        %v3833 = vlaneseq
        %v3834 = vshrl.u32 %v3833, 7
        %v3835 = vsub.s32 %v3832, %v3834
        %v3836 = vrot.slane %v3829, %v3835
        %v3837 = vcombine.low %v1875, %v1882
        %v3839 = vunpack.c.l.s4 1983009808
        %v3840 = vunpack.c.0.s8 %v3839
        %v3841 = vlaneseq
        %v3842 = vshrl.u32 %v3841, 7
        %v3843 = vsub.s32 %v3840, %v3842
        %v3844 = vrot.slane %v3837, %v3843
        %v3845 = vcombine.low %v1885, %v1886
        %v3847 = vunpack.c.l.s4 1983009808
        %v3848 = vunpack.c.0.s8 %v3847
        %v3849 = vlaneseq
        %v3850 = vshrl.u32 %v3849, 7
        %v3851 = vsub.s32 %v3848, %v3850
        %v3852 = vrot.slane %v3845, %v3851
        %v3853 = vcombine.low %v3828, %v3836
        %v3855 = vunpack.c.l.s4 1934713408
        %v3856 = vunpack.c.0.s8 %v3855
        %v3857 = vlaneseq
        %v3858 = vshrl.u32 %v3857, 7
        %v3859 = vsub.s32 %v3856, %v3858
        %v3860 = vrot.slane %v3853, %v3859
        %v3861 = vcombine.low %v3844, %v3852
        %v3863 = vunpack.c.l.s4 1934713408
        %v3864 = vunpack.c.0.s8 %v3863
        %v3865 = vlaneseq
        %v3866 = vshrl.u32 %v3865, 7
        %v3867 = vsub.s32 %v3864, %v3866
        %v3868 = vrot.slane %v3861, %v3867
        %v3869 = vcombine.low %v3860, %v3868
        %v3870 = vcombine.high %v3860, %v3868
        %v3871 = vcombine.low %v1925, %v1932
        %v3873 = vunpack.c.l.s4 1983009808
        %v3874 = vunpack.c.0.s8 %v3873
        %v3875 = vlaneseq
        %v3876 = vshrl.u32 %v3875, 7
        %v3877 = vsub.s32 %v3874, %v3876
        %v3878 = vrot.slane %v3871, %v3877
        %v3879 = vcombine.low %v1949, %v1950
        %v3881 = vunpack.c.l.s4 1983009808
        %v3882 = vunpack.c.0.s8 %v3881
        %v3883 = vlaneseq
        %v3884 = vshrl.u32 %v3883, 7
        %v3885 = vsub.s32 %v3882, %v3884
        %v3886 = vrot.slane %v3879, %v3885
        %v3887 = vcombine.low %v1941, %v1948
        %v3889 = vunpack.c.l.s4 1983009808
        %v3890 = vunpack.c.0.s8 %v3889
        %v3891 = vlaneseq
        %v3892 = vshrl.u32 %v3891, 7
        %v3893 = vsub.s32 %v3890, %v3892
        %v3894 = vrot.slane %v3887, %v3893
        %v3895 = vcombine.low %v1951, %v1952
        %v3897 = vunpack.c.l.s4 1983009808
        %v3898 = vunpack.c.0.s8 %v3897
        %v3899 = vlaneseq
        %v3900 = vshrl.u32 %v3899, 7
        %v3901 = vsub.s32 %v3898, %v3900
        %v3902 = vrot.slane %v3895, %v3901
        %v3903 = vcombine.low %v3878, %v3886
        %v3905 = vunpack.c.l.s4 1934713408
        %v3906 = vunpack.c.0.s8 %v3905
        %v3907 = vlaneseq
        %v3908 = vshrl.u32 %v3907, 7
        %v3909 = vsub.s32 %v3906, %v3908
        %v3910 = vrot.slane %v3903, %v3909
        %v3911 = vcombine.low %v3894, %v3902
        %v3913 = vunpack.c.l.s4 1934713408
        %v3914 = vunpack.c.0.s8 %v3913
        %v3915 = vlaneseq
        %v3916 = vshrl.u32 %v3915, 7
        %v3917 = vsub.s32 %v3914, %v3916
        %v3918 = vrot.slane %v3911, %v3917
        %v3919 = vcombine.low %v3910, %v3918
        %v3920 = vcombine.high %v3910, %v3918
        %v3921 = vcombine.low %v1991, %v1998
        %v3923 = vunpack.c.l.s4 1983009808
        %v3924 = vunpack.c.0.s8 %v3923
        %v3925 = vlaneseq
        %v3926 = vshrl.u32 %v3925, 7
        %v3927 = vsub.s32 %v3924, %v3926
        %v3928 = vrot.slane %v3921, %v3927
        %v3929 = vcombine.low %v2015, %v2016
        %v3931 = vunpack.c.l.s4 1983009808
        %v3932 = vunpack.c.0.s8 %v3931
        %v3933 = vlaneseq
        %v3934 = vshrl.u32 %v3933, 7
        %v3935 = vsub.s32 %v3932, %v3934
        %v3936 = vrot.slane %v3929, %v3935
        %v3937 = vcombine.low %v2007, %v2014
        %v3939 = vunpack.c.l.s4 1983009808
        %v3940 = vunpack.c.0.s8 %v3939
        %v3941 = vlaneseq
        %v3942 = vshrl.u32 %v3941, 7
        %v3943 = vsub.s32 %v3940, %v3942
        %v3944 = vrot.slane %v3937, %v3943
        %v3945 = vcombine.low %v2017, %v2018
        %v3947 = vunpack.c.l.s4 1983009808
        %v3948 = vunpack.c.0.s8 %v3947
        %v3949 = vlaneseq
        %v3950 = vshrl.u32 %v3949, 7
        %v3951 = vsub.s32 %v3948, %v3950
        %v3952 = vrot.slane %v3945, %v3951
        %v3953 = vcombine.low %v3928, %v3936
        %v3955 = vunpack.c.l.s4 1934713408
        %v3956 = vunpack.c.0.s8 %v3955
        %v3957 = vlaneseq
        %v3958 = vshrl.u32 %v3957, 7
        %v3959 = vsub.s32 %v3956, %v3958
        %v3960 = vrot.slane %v3953, %v3959
        %v3961 = vcombine.low %v3944, %v3952
        %v3963 = vunpack.c.l.s4 1934713408
        %v3964 = vunpack.c.0.s8 %v3963
        %v3965 = vlaneseq
        %v3966 = vshrl.u32 %v3965, 7
        %v3967 = vsub.s32 %v3964, %v3966
        %v3968 = vrot.slane %v3961, %v3967
        %v3969 = vcombine.low %v3960, %v3968
        %v3970 = vcombine.high %v3960, %v3968
        %v3971 = vcombine.low %v2057, %v2064
        %v3973 = vunpack.c.l.s4 1983009808
        %v3974 = vunpack.c.0.s8 %v3973
        %v3975 = vlaneseq
        %v3976 = vshrl.u32 %v3975, 7
        %v3977 = vsub.s32 %v3974, %v3976
        %v3978 = vrot.slane %v3971, %v3977
        %v3979 = vcombine.low %v2081, %v2082
        %v3981 = vunpack.c.l.s4 1983009808
        %v3982 = vunpack.c.0.s8 %v3981
        %v3983 = vlaneseq
        %v3984 = vshrl.u32 %v3983, 7
        %v3985 = vsub.s32 %v3982, %v3984
        %v3986 = vrot.slane %v3979, %v3985
        %v3987 = vcombine.low %v2073, %v2080
        %v3989 = vunpack.c.l.s4 1983009808
        %v3990 = vunpack.c.0.s8 %v3989
        %v3991 = vlaneseq
        %v3992 = vshrl.u32 %v3991, 7
        %v3993 = vsub.s32 %v3990, %v3992
        %v3994 = vrot.slane %v3987, %v3993
        %v3995 = vcombine.low %v2083, %v2084
        %v3997 = vunpack.c.l.s4 1983009808
        %v3998 = vunpack.c.0.s8 %v3997
        %v3999 = vlaneseq
        %v4000 = vshrl.u32 %v3999, 7
        %v4001 = vsub.s32 %v3998, %v4000
        %v4002 = vrot.slane %v3995, %v4001
        %v4003 = vcombine.low %v3978, %v3986
        %v4005 = vunpack.c.l.s4 1934713408
        %v4006 = vunpack.c.0.s8 %v4005
        %v4007 = vlaneseq
        %v4008 = vshrl.u32 %v4007, 7
        %v4009 = vsub.s32 %v4006, %v4008
        %v4010 = vrot.slane %v4003, %v4009
        %v4011 = vcombine.low %v3994, %v4002
        %v4013 = vunpack.c.l.s4 1934713408
        %v4014 = vunpack.c.0.s8 %v4013
        %v4015 = vlaneseq
        %v4016 = vshrl.u32 %v4015, 7
        %v4017 = vsub.s32 %v4014, %v4016
        %v4018 = vrot.slane %v4011, %v4017
        %v4019 = vcombine.low %v4010, %v4018
        %v4020 = vcombine.high %v4010, %v4018
        %v4021 = vcombine.low %v2123, %v2130
        %v4023 = vunpack.c.l.s4 1983009808
        %v4024 = vunpack.c.0.s8 %v4023
        %v4025 = vlaneseq
        %v4026 = vshrl.u32 %v4025, 7
        %v4027 = vsub.s32 %v4024, %v4026
        %v4028 = vrot.slane %v4021, %v4027
        %v4029 = vcombine.low %v2147, %v2148
        %v4031 = vunpack.c.l.s4 1983009808
        %v4032 = vunpack.c.0.s8 %v4031
        %v4033 = vlaneseq
        %v4034 = vshrl.u32 %v4033, 7
        %v4035 = vsub.s32 %v4032, %v4034
        %v4036 = vrot.slane %v4029, %v4035
        %v4037 = vcombine.low %v2139, %v2146
        %v4039 = vunpack.c.l.s4 1983009808
        %v4040 = vunpack.c.0.s8 %v4039
        %v4041 = vlaneseq
        %v4042 = vshrl.u32 %v4041, 7
        %v4043 = vsub.s32 %v4040, %v4042
        %v4044 = vrot.slane %v4037, %v4043
        %v4045 = vcombine.low %v2149, %v2150
        %v4047 = vunpack.c.l.s4 1983009808
        %v4048 = vunpack.c.0.s8 %v4047
        %v4049 = vlaneseq
        %v4050 = vshrl.u32 %v4049, 7
        %v4051 = vsub.s32 %v4048, %v4050
        %v4052 = vrot.slane %v4045, %v4051
        %v4053 = vcombine.low %v4028, %v4036
        %v4055 = vunpack.c.l.s4 1934713408
        %v4056 = vunpack.c.0.s8 %v4055
        %v4057 = vlaneseq
        %v4058 = vshrl.u32 %v4057, 7
        %v4059 = vsub.s32 %v4056, %v4058
        %v4060 = vrot.slane %v4053, %v4059
        %v4061 = vcombine.low %v4044, %v4052
        %v4063 = vunpack.c.l.s4 1934713408
        %v4064 = vunpack.c.0.s8 %v4063
        %v4065 = vlaneseq
        %v4066 = vshrl.u32 %v4065, 7
        %v4067 = vsub.s32 %v4064, %v4066
        %v4068 = vrot.slane %v4061, %v4067
        %v4069 = vcombine.low %v4060, %v4068
        %v4070 = vcombine.high %v4060, %v4068
        %v4071 = vcombine.low %v2189, %v2196
        %v4073 = vunpack.c.l.s4 1983009808
        %v4074 = vunpack.c.0.s8 %v4073
        %v4075 = vlaneseq
        %v4076 = vshrl.u32 %v4075, 7
        %v4077 = vsub.s32 %v4074, %v4076
        %v4078 = vrot.slane %v4071, %v4077
        %v4079 = vcombine.low %v2213, %v2214
        %v4081 = vunpack.c.l.s4 1983009808
        %v4082 = vunpack.c.0.s8 %v4081
        %v4083 = vlaneseq
        %v4084 = vshrl.u32 %v4083, 7
        %v4085 = vsub.s32 %v4082, %v4084
        %v4086 = vrot.slane %v4079, %v4085
        %v4087 = vcombine.low %v2205, %v2212
        %v4089 = vunpack.c.l.s4 1983009808
        %v4090 = vunpack.c.0.s8 %v4089
        %v4091 = vlaneseq
        %v4092 = vshrl.u32 %v4091, 7
        %v4093 = vsub.s32 %v4090, %v4092
        %v4094 = vrot.slane %v4087, %v4093
        %v4095 = vcombine.low %v2215, %v2216
        %v4097 = vunpack.c.l.s4 1983009808
        %v4098 = vunpack.c.0.s8 %v4097
        %v4099 = vlaneseq
        %v4100 = vshrl.u32 %v4099, 7
        %v4101 = vsub.s32 %v4098, %v4100
        %v4102 = vrot.slane %v4095, %v4101
        %v4103 = vcombine.low %v4078, %v4086
        %v4105 = vunpack.c.l.s4 1934713408
        %v4106 = vunpack.c.0.s8 %v4105
        %v4107 = vlaneseq
        %v4108 = vshrl.u32 %v4107, 7
        %v4109 = vsub.s32 %v4106, %v4108
        %v4110 = vrot.slane %v4103, %v4109
        %v4111 = vcombine.low %v4094, %v4102
        %v4113 = vunpack.c.l.s4 1934713408
        %v4114 = vunpack.c.0.s8 %v4113
        %v4115 = vlaneseq
        %v4116 = vshrl.u32 %v4115, 7
        %v4117 = vsub.s32 %v4114, %v4116
        %v4118 = vrot.slane %v4111, %v4117
        %v4119 = vcombine.low %v4110, %v4118
        %v4120 = vcombine.high %v4110, %v4118
        %v4121 = vcombine.low %v2255, %v2262
        %v4123 = vunpack.c.l.s4 1983009808
        %v4124 = vunpack.c.0.s8 %v4123
        %v4125 = vlaneseq
        %v4126 = vshrl.u32 %v4125, 7
        %v4127 = vsub.s32 %v4124, %v4126
        %v4128 = vrot.slane %v4121, %v4127
        %v4129 = vcombine.low %v2279, %v2280
        %v4131 = vunpack.c.l.s4 1983009808
        %v4132 = vunpack.c.0.s8 %v4131
        %v4133 = vlaneseq
        %v4134 = vshrl.u32 %v4133, 7
        %v4135 = vsub.s32 %v4132, %v4134
        %v4136 = vrot.slane %v4129, %v4135
        %v4137 = vcombine.low %v2271, %v2278
        %v4139 = vunpack.c.l.s4 1983009808
        %v4140 = vunpack.c.0.s8 %v4139
        %v4141 = vlaneseq
        %v4142 = vshrl.u32 %v4141, 7
        %v4143 = vsub.s32 %v4140, %v4142
        %v4144 = vrot.slane %v4137, %v4143
        %v4145 = vcombine.low %v2281, %v2282
        %v4147 = vunpack.c.l.s4 1983009808
        %v4148 = vunpack.c.0.s8 %v4147
        %v4149 = vlaneseq
        %v4150 = vshrl.u32 %v4149, 7
        %v4151 = vsub.s32 %v4148, %v4150
        %v4152 = vrot.slane %v4145, %v4151
        %v4153 = vcombine.low %v4128, %v4136
        %v4155 = vunpack.c.l.s4 1934713408
        %v4156 = vunpack.c.0.s8 %v4155
        %v4157 = vlaneseq
        %v4158 = vshrl.u32 %v4157, 7
        %v4159 = vsub.s32 %v4156, %v4158
        %v4160 = vrot.slane %v4153, %v4159
        %v4161 = vcombine.low %v4144, %v4152
        %v4163 = vunpack.c.l.s4 1934713408
        %v4164 = vunpack.c.0.s8 %v4163
        %v4165 = vlaneseq
        %v4166 = vshrl.u32 %v4165, 7
        %v4167 = vsub.s32 %v4164, %v4166
        %v4168 = vrot.slane %v4161, %v4167
        %v4169 = vcombine.low %v4160, %v4168
        %v4170 = vcombine.high %v4160, %v4168
        %v4171 = vcombine.low %v2321, %v2328
        %v4173 = vunpack.c.l.s4 1983009808
        %v4174 = vunpack.c.0.s8 %v4173
        %v4175 = vlaneseq
        %v4176 = vshrl.u32 %v4175, 7
        %v4177 = vsub.s32 %v4174, %v4176
        %v4178 = vrot.slane %v4171, %v4177
        %v4179 = vcombine.low %v2345, %v2346
        %v4181 = vunpack.c.l.s4 1983009808
        %v4182 = vunpack.c.0.s8 %v4181
        %v4183 = vlaneseq
        %v4184 = vshrl.u32 %v4183, 7
        %v4185 = vsub.s32 %v4182, %v4184
        %v4186 = vrot.slane %v4179, %v4185
        %v4187 = vcombine.low %v2337, %v2344
        %v4189 = vunpack.c.l.s4 1983009808
        %v4190 = vunpack.c.0.s8 %v4189
        %v4191 = vlaneseq
        %v4192 = vshrl.u32 %v4191, 7
        %v4193 = vsub.s32 %v4190, %v4192
        %v4194 = vrot.slane %v4187, %v4193
        %v4195 = vcombine.low %v2347, %v2348
        %v4197 = vunpack.c.l.s4 1983009808
        %v4198 = vunpack.c.0.s8 %v4197
        %v4199 = vlaneseq
        %v4200 = vshrl.u32 %v4199, 7
        %v4201 = vsub.s32 %v4198, %v4200
        %v4202 = vrot.slane %v4195, %v4201
        %v4203 = vcombine.low %v4178, %v4186
        %v4205 = vunpack.c.l.s4 1934713408
        %v4206 = vunpack.c.0.s8 %v4205
        %v4207 = vlaneseq
        %v4208 = vshrl.u32 %v4207, 7
        %v4209 = vsub.s32 %v4206, %v4208
        %v4210 = vrot.slane %v4203, %v4209
        %v4211 = vcombine.low %v4194, %v4202
        %v4213 = vunpack.c.l.s4 1934713408
        %v4214 = vunpack.c.0.s8 %v4213
        %v4215 = vlaneseq
        %v4216 = vshrl.u32 %v4215, 7
        %v4217 = vsub.s32 %v4214, %v4216
        %v4218 = vrot.slane %v4211, %v4217
        %v4219 = vcombine.low %v4210, %v4218
        %v4220 = vcombine.high %v4210, %v4218
        %v4221 = vcombine.low %v2387, %v2394
        %v4223 = vunpack.c.l.s4 1983009808
        %v4224 = vunpack.c.0.s8 %v4223
        %v4225 = vlaneseq
        %v4226 = vshrl.u32 %v4225, 7
        %v4227 = vsub.s32 %v4224, %v4226
        %v4228 = vrot.slane %v4221, %v4227
        %v4229 = vcombine.low %v2411, %v2412
        %v4231 = vunpack.c.l.s4 1983009808
        %v4232 = vunpack.c.0.s8 %v4231
        %v4233 = vlaneseq
        %v4234 = vshrl.u32 %v4233, 7
        %v4235 = vsub.s32 %v4232, %v4234
        %v4236 = vrot.slane %v4229, %v4235
        %v4237 = vcombine.low %v2403, %v2410
        %v4239 = vunpack.c.l.s4 1983009808
        %v4240 = vunpack.c.0.s8 %v4239
        %v4241 = vlaneseq
        %v4242 = vshrl.u32 %v4241, 7
        %v4243 = vsub.s32 %v4240, %v4242
        %v4244 = vrot.slane %v4237, %v4243
        %v4245 = vcombine.low %v2413, %v2414
        %v4247 = vunpack.c.l.s4 1983009808
        %v4248 = vunpack.c.0.s8 %v4247
        %v4249 = vlaneseq
        %v4250 = vshrl.u32 %v4249, 7
        %v4251 = vsub.s32 %v4248, %v4250
        %v4252 = vrot.slane %v4245, %v4251
        %v4253 = vcombine.low %v4228, %v4236
        %v4255 = vunpack.c.l.s4 1934713408
        %v4256 = vunpack.c.0.s8 %v4255
        %v4257 = vlaneseq
        %v4258 = vshrl.u32 %v4257, 7
        %v4259 = vsub.s32 %v4256, %v4258
        %v4260 = vrot.slane %v4253, %v4259
        %v4261 = vcombine.low %v4244, %v4252
        %v4263 = vunpack.c.l.s4 1934713408
        %v4264 = vunpack.c.0.s8 %v4263
        %v4265 = vlaneseq
        %v4266 = vshrl.u32 %v4265, 7
        %v4267 = vsub.s32 %v4264, %v4266
        %v4268 = vrot.slane %v4261, %v4267
        %v4269 = vcombine.low %v4260, %v4268
        %v4270 = vcombine.high %v4260, %v4268
        %v4271 = vcombine.low %v2453, %v2460
        %v4273 = vunpack.c.l.s4 1983009808
        %v4274 = vunpack.c.0.s8 %v4273
        %v4275 = vlaneseq
        %v4276 = vshrl.u32 %v4275, 7
        %v4277 = vsub.s32 %v4274, %v4276
        %v4278 = vrot.slane %v4271, %v4277
        %v4279 = vcombine.low %v2477, %v2478
        %v4281 = vunpack.c.l.s4 1983009808
        %v4282 = vunpack.c.0.s8 %v4281
        %v4283 = vlaneseq
        %v4284 = vshrl.u32 %v4283, 7
        %v4285 = vsub.s32 %v4282, %v4284
        %v4286 = vrot.slane %v4279, %v4285
        %v4287 = vcombine.low %v2469, %v2476
        %v4289 = vunpack.c.l.s4 1983009808
        %v4290 = vunpack.c.0.s8 %v4289
        %v4291 = vlaneseq
        %v4292 = vshrl.u32 %v4291, 7
        %v4293 = vsub.s32 %v4290, %v4292
        %v4294 = vrot.slane %v4287, %v4293
        %v4295 = vcombine.low %v2479, %v2480
        %v4297 = vunpack.c.l.s4 1983009808
        %v4298 = vunpack.c.0.s8 %v4297
        %v4299 = vlaneseq
        %v4300 = vshrl.u32 %v4299, 7
        %v4301 = vsub.s32 %v4298, %v4300
        %v4302 = vrot.slane %v4295, %v4301
        %v4303 = vcombine.low %v4278, %v4286
        %v4305 = vunpack.c.l.s4 1934713408
        %v4306 = vunpack.c.0.s8 %v4305
        %v4307 = vlaneseq
        %v4308 = vshrl.u32 %v4307, 7
        %v4309 = vsub.s32 %v4306, %v4308
        %v4310 = vrot.slane %v4303, %v4309
        %v4311 = vcombine.low %v4294, %v4302
        %v4313 = vunpack.c.l.s4 1934713408
        %v4314 = vunpack.c.0.s8 %v4313
        %v4315 = vlaneseq
        %v4316 = vshrl.u32 %v4315, 7
        %v4317 = vsub.s32 %v4314, %v4316
        %v4318 = vrot.slane %v4311, %v4317
        %v4319 = vcombine.low %v4310, %v4318
        %v4320 = vcombine.high %v4310, %v4318
        %v4321 = vcombine.low %v2519, %v2526
        %v4323 = vunpack.c.l.s4 1983009808
        %v4324 = vunpack.c.0.s8 %v4323
        %v4325 = vlaneseq
        %v4326 = vshrl.u32 %v4325, 7
        %v4327 = vsub.s32 %v4324, %v4326
        %v4328 = vrot.slane %v4321, %v4327
        %v4329 = vcombine.low %v2543, %v2544
        %v4331 = vunpack.c.l.s4 1983009808
        %v4332 = vunpack.c.0.s8 %v4331
        %v4333 = vlaneseq
        %v4334 = vshrl.u32 %v4333, 7
        %v4335 = vsub.s32 %v4332, %v4334
        %v4336 = vrot.slane %v4329, %v4335
        %v4337 = vcombine.low %v2535, %v2542
        %v4339 = vunpack.c.l.s4 1983009808
        %v4340 = vunpack.c.0.s8 %v4339
        %v4341 = vlaneseq
        %v4342 = vshrl.u32 %v4341, 7
        %v4343 = vsub.s32 %v4340, %v4342
        %v4344 = vrot.slane %v4337, %v4343
        %v4345 = vcombine.low %v2545, %v2546
        %v4347 = vunpack.c.l.s4 1983009808
        %v4348 = vunpack.c.0.s8 %v4347
        %v4349 = vlaneseq
        %v4350 = vshrl.u32 %v4349, 7
        %v4351 = vsub.s32 %v4348, %v4350
        %v4352 = vrot.slane %v4345, %v4351
        %v4353 = vcombine.low %v4328, %v4336
        %v4355 = vunpack.c.l.s4 1934713408
        %v4356 = vunpack.c.0.s8 %v4355
        %v4357 = vlaneseq
        %v4358 = vshrl.u32 %v4357, 7
        %v4359 = vsub.s32 %v4356, %v4358
        %v4360 = vrot.slane %v4353, %v4359
        %v4361 = vcombine.low %v4344, %v4352
        %v4363 = vunpack.c.l.s4 1934713408
        %v4364 = vunpack.c.0.s8 %v4363
        %v4365 = vlaneseq
        %v4366 = vshrl.u32 %v4365, 7
        %v4367 = vsub.s32 %v4364, %v4366
        %v4368 = vrot.slane %v4361, %v4367
        %v4369 = vcombine.low %v4360, %v4368
        %v4370 = vcombine.high %v4360, %v4368
        %v4371 = vcombine.low %v2585, %v2592
        %v4373 = vunpack.c.l.s4 1983009808
        %v4374 = vunpack.c.0.s8 %v4373
        %v4375 = vlaneseq
        %v4376 = vshrl.u32 %v4375, 7
        %v4377 = vsub.s32 %v4374, %v4376
        %v4378 = vrot.slane %v4371, %v4377
        %v4379 = vcombine.low %v2609, %v2610
        %v4381 = vunpack.c.l.s4 1983009808
        %v4382 = vunpack.c.0.s8 %v4381
        %v4383 = vlaneseq
        %v4384 = vshrl.u32 %v4383, 7
        %v4385 = vsub.s32 %v4382, %v4384
        %v4386 = vrot.slane %v4379, %v4385
        %v4387 = vcombine.low %v2601, %v2608
        %v4389 = vunpack.c.l.s4 1983009808
        %v4390 = vunpack.c.0.s8 %v4389
        %v4391 = vlaneseq
        %v4392 = vshrl.u32 %v4391, 7
        %v4393 = vsub.s32 %v4390, %v4392
        %v4394 = vrot.slane %v4387, %v4393
        %v4395 = vcombine.low %v2611, %v2612
        %v4397 = vunpack.c.l.s4 1983009808
        %v4398 = vunpack.c.0.s8 %v4397
        %v4399 = vlaneseq
        %v4400 = vshrl.u32 %v4399, 7
        %v4401 = vsub.s32 %v4398, %v4400
        %v4402 = vrot.slane %v4395, %v4401
        %v4403 = vcombine.low %v4378, %v4386
        %v4405 = vunpack.c.l.s4 1934713408
        %v4406 = vunpack.c.0.s8 %v4405
        %v4407 = vlaneseq
        %v4408 = vshrl.u32 %v4407, 7
        %v4409 = vsub.s32 %v4406, %v4408
        %v4410 = vrot.slane %v4403, %v4409
        %v4411 = vcombine.low %v4394, %v4402
        %v4413 = vunpack.c.l.s4 1934713408
        %v4414 = vunpack.c.0.s8 %v4413
        %v4415 = vlaneseq
        %v4416 = vshrl.u32 %v4415, 7
        %v4417 = vsub.s32 %v4414, %v4416
        %v4418 = vrot.slane %v4411, %v4417
        %v4419 = vcombine.low %v4410, %v4418
        %v4420 = vcombine.high %v4410, %v4418
        %v4421 = vcombine.low %v2651, %v2658
        %v4423 = vunpack.c.l.s4 1983009808
        %v4424 = vunpack.c.0.s8 %v4423
        %v4425 = vlaneseq
        %v4426 = vshrl.u32 %v4425, 7
        %v4427 = vsub.s32 %v4424, %v4426
        %v4428 = vrot.slane %v4421, %v4427
        %v4429 = vcombine.low %v2675, %v2676
        %v4431 = vunpack.c.l.s4 1983009808
        %v4432 = vunpack.c.0.s8 %v4431
        %v4433 = vlaneseq
        %v4434 = vshrl.u32 %v4433, 7
        %v4435 = vsub.s32 %v4432, %v4434
        %v4436 = vrot.slane %v4429, %v4435
        %v4437 = vcombine.low %v2667, %v2674
        %v4439 = vunpack.c.l.s4 1983009808
        %v4440 = vunpack.c.0.s8 %v4439
        %v4441 = vlaneseq
        %v4442 = vshrl.u32 %v4441, 7
        %v4443 = vsub.s32 %v4440, %v4442
        %v4444 = vrot.slane %v4437, %v4443
        %v4445 = vcombine.low %v2677, %v2678
        %v4447 = vunpack.c.l.s4 1983009808
        %v4448 = vunpack.c.0.s8 %v4447
        %v4449 = vlaneseq
        %v4450 = vshrl.u32 %v4449, 7
        %v4451 = vsub.s32 %v4448, %v4450
        %v4452 = vrot.slane %v4445, %v4451
        %v4453 = vcombine.low %v4428, %v4436
        %v4455 = vunpack.c.l.s4 1934713408
        %v4456 = vunpack.c.0.s8 %v4455
        %v4457 = vlaneseq
        %v4458 = vshrl.u32 %v4457, 7
        %v4459 = vsub.s32 %v4456, %v4458
        %v4460 = vrot.slane %v4453, %v4459
        %v4461 = vcombine.low %v4444, %v4452
        %v4463 = vunpack.c.l.s4 1934713408
        %v4464 = vunpack.c.0.s8 %v4463
        %v4465 = vlaneseq
        %v4466 = vshrl.u32 %v4465, 7
        %v4467 = vsub.s32 %v4464, %v4466
        %v4468 = vrot.slane %v4461, %v4467
        %v4469 = vcombine.low %v4460, %v4468
        %v4470 = vcombine.high %v4460, %v4468
        %v4471 = vcombine.low %v2717, %v2724
        %v4473 = vunpack.c.l.s4 1983009808
        %v4474 = vunpack.c.0.s8 %v4473
        %v4475 = vlaneseq
        %v4476 = vshrl.u32 %v4475, 7
        %v4477 = vsub.s32 %v4474, %v4476
        %v4478 = vrot.slane %v4471, %v4477
        %v4479 = vcombine.low %v2741, %v2742
        %v4481 = vunpack.c.l.s4 1983009808
        %v4482 = vunpack.c.0.s8 %v4481
        %v4483 = vlaneseq
        %v4484 = vshrl.u32 %v4483, 7
        %v4485 = vsub.s32 %v4482, %v4484
        %v4486 = vrot.slane %v4479, %v4485
        %v4487 = vcombine.low %v2733, %v2740
        %v4489 = vunpack.c.l.s4 1983009808
        %v4490 = vunpack.c.0.s8 %v4489
        %v4491 = vlaneseq
        %v4492 = vshrl.u32 %v4491, 7
        %v4493 = vsub.s32 %v4490, %v4492
        %v4494 = vrot.slane %v4487, %v4493
        %v4495 = vcombine.low %v2743, %v2744
        %v4497 = vunpack.c.l.s4 1983009808
        %v4498 = vunpack.c.0.s8 %v4497
        %v4499 = vlaneseq
        %v4500 = vshrl.u32 %v4499, 7
        %v4501 = vsub.s32 %v4498, %v4500
        %v4502 = vrot.slane %v4495, %v4501
        %v4503 = vcombine.low %v4478, %v4486
        %v4505 = vunpack.c.l.s4 1934713408
        %v4506 = vunpack.c.0.s8 %v4505
        %v4507 = vlaneseq
        %v4508 = vshrl.u32 %v4507, 7
        %v4509 = vsub.s32 %v4506, %v4508
        %v4510 = vrot.slane %v4503, %v4509
        %v4511 = vcombine.low %v4494, %v4502
        %v4513 = vunpack.c.l.s4 1934713408
        %v4514 = vunpack.c.0.s8 %v4513
        %v4515 = vlaneseq
        %v4516 = vshrl.u32 %v4515, 7
        %v4517 = vsub.s32 %v4514, %v4516
        %v4518 = vrot.slane %v4511, %v4517
        %v4519 = vcombine.low %v4510, %v4518
        %v4520 = vcombine.high %v4510, %v4518
        %v4521 = vcombine.low %v2783, %v2790
        %v4523 = vunpack.c.l.s4 1983009808
        %v4524 = vunpack.c.0.s8 %v4523
        %v4525 = vlaneseq
        %v4526 = vshrl.u32 %v4525, 7
        %v4527 = vsub.s32 %v4524, %v4526
        %v4528 = vrot.slane %v4521, %v4527
        %v4529 = vcombine.low %v2807, %v2808
        %v4531 = vunpack.c.l.s4 1983009808
        %v4532 = vunpack.c.0.s8 %v4531
        %v4533 = vlaneseq
        %v4534 = vshrl.u32 %v4533, 7
        %v4535 = vsub.s32 %v4532, %v4534
        %v4536 = vrot.slane %v4529, %v4535
        %v4537 = vcombine.low %v2799, %v2806
        %v4539 = vunpack.c.l.s4 1983009808
        %v4540 = vunpack.c.0.s8 %v4539
        %v4541 = vlaneseq
        %v4542 = vshrl.u32 %v4541, 7
        %v4543 = vsub.s32 %v4540, %v4542
        %v4544 = vrot.slane %v4537, %v4543
        %v4545 = vcombine.low %v2809, %v2810
        %v4547 = vunpack.c.l.s4 1983009808
        %v4548 = vunpack.c.0.s8 %v4547
        %v4549 = vlaneseq
        %v4550 = vshrl.u32 %v4549, 7
        %v4551 = vsub.s32 %v4548, %v4550
        %v4552 = vrot.slane %v4545, %v4551
        %v4553 = vcombine.low %v4528, %v4536
        %v4555 = vunpack.c.l.s4 1934713408
        %v4556 = vunpack.c.0.s8 %v4555
        %v4557 = vlaneseq
        %v4558 = vshrl.u32 %v4557, 7
        %v4559 = vsub.s32 %v4556, %v4558
        %v4560 = vrot.slane %v4553, %v4559
        %v4561 = vcombine.low %v4544, %v4552
        %v4563 = vunpack.c.l.s4 1934713408
        %v4564 = vunpack.c.0.s8 %v4563
        %v4565 = vlaneseq
        %v4566 = vshrl.u32 %v4565, 7
        %v4567 = vsub.s32 %v4564, %v4566
        %v4568 = vrot.slane %v4561, %v4567
        %v4569 = vcombine.low %v4560, %v4568
        %v4570 = vcombine.high %v4560, %v4568
        %v4571 = vcombine.low %v2849, %v2856
        %v4573 = vunpack.c.l.s4 1983009808
        %v4574 = vunpack.c.0.s8 %v4573
        %v4575 = vlaneseq
        %v4576 = vshrl.u32 %v4575, 7
        %v4577 = vsub.s32 %v4574, %v4576
        %v4578 = vrot.slane %v4571, %v4577
        %v4579 = vcombine.low %v2873, %v2874
        %v4581 = vunpack.c.l.s4 1983009808
        %v4582 = vunpack.c.0.s8 %v4581
        %v4583 = vlaneseq
        %v4584 = vshrl.u32 %v4583, 7
        %v4585 = vsub.s32 %v4582, %v4584
        %v4586 = vrot.slane %v4579, %v4585
        %v4587 = vcombine.low %v2865, %v2872
        %v4589 = vunpack.c.l.s4 1983009808
        %v4590 = vunpack.c.0.s8 %v4589
        %v4591 = vlaneseq
        %v4592 = vshrl.u32 %v4591, 7
        %v4593 = vsub.s32 %v4590, %v4592
        %v4594 = vrot.slane %v4587, %v4593
        %v4595 = vcombine.low %v2875, %v2876
        %v4597 = vunpack.c.l.s4 1983009808
        %v4598 = vunpack.c.0.s8 %v4597
        %v4599 = vlaneseq
        %v4600 = vshrl.u32 %v4599, 7
        %v4601 = vsub.s32 %v4598, %v4600
        %v4602 = vrot.slane %v4595, %v4601
        %v4603 = vcombine.low %v4578, %v4586
        %v4605 = vunpack.c.l.s4 1934713408
        %v4606 = vunpack.c.0.s8 %v4605
        %v4607 = vlaneseq
        %v4608 = vshrl.u32 %v4607, 7
        %v4609 = vsub.s32 %v4606, %v4608
        %v4610 = vrot.slane %v4603, %v4609
        %v4611 = vcombine.low %v4594, %v4602
        %v4613 = vunpack.c.l.s4 1934713408
        %v4614 = vunpack.c.0.s8 %v4613
        %v4615 = vlaneseq
        %v4616 = vshrl.u32 %v4615, 7
        %v4617 = vsub.s32 %v4614, %v4616
        %v4618 = vrot.slane %v4611, %v4617
        %v4619 = vcombine.low %v4610, %v4618
        %v4620 = vcombine.high %v4610, %v4618
        %v4621 = vcombine.low %v2915, %v2922
        %v4623 = vunpack.c.l.s4 1983009808
        %v4624 = vunpack.c.0.s8 %v4623
        %v4625 = vlaneseq
        %v4626 = vshrl.u32 %v4625, 7
        %v4627 = vsub.s32 %v4624, %v4626
        %v4628 = vrot.slane %v4621, %v4627
        %v4629 = vcombine.low %v2939, %v2940
        %v4631 = vunpack.c.l.s4 1983009808
        %v4632 = vunpack.c.0.s8 %v4631
        %v4633 = vlaneseq
        %v4634 = vshrl.u32 %v4633, 7
        %v4635 = vsub.s32 %v4632, %v4634
        %v4636 = vrot.slane %v4629, %v4635
        %v4637 = vcombine.low %v2931, %v2938
        %v4639 = vunpack.c.l.s4 1983009808
        %v4640 = vunpack.c.0.s8 %v4639
        %v4641 = vlaneseq
        %v4642 = vshrl.u32 %v4641, 7
        %v4643 = vsub.s32 %v4640, %v4642
        %v4644 = vrot.slane %v4637, %v4643
        %v4645 = vcombine.low %v2941, %v2942
        %v4647 = vunpack.c.l.s4 1983009808
        %v4648 = vunpack.c.0.s8 %v4647
        %v4649 = vlaneseq
        %v4650 = vshrl.u32 %v4649, 7
        %v4651 = vsub.s32 %v4648, %v4650
        %v4652 = vrot.slane %v4645, %v4651
        %v4653 = vcombine.low %v4628, %v4636
        %v4655 = vunpack.c.l.s4 1934713408
        %v4656 = vunpack.c.0.s8 %v4655
        %v4657 = vlaneseq
        %v4658 = vshrl.u32 %v4657, 7
        %v4659 = vsub.s32 %v4656, %v4658
        %v4660 = vrot.slane %v4653, %v4659
        %v4661 = vcombine.low %v4644, %v4652
        %v4663 = vunpack.c.l.s4 1934713408
        %v4664 = vunpack.c.0.s8 %v4663
        %v4665 = vlaneseq
        %v4666 = vshrl.u32 %v4665, 7
        %v4667 = vsub.s32 %v4664, %v4666
        %v4668 = vrot.slane %v4661, %v4667
        %v4669 = vcombine.low %v4660, %v4668
        %v4670 = vcombine.high %v4660, %v4668
        %v4671 = vcombine.low %v2981, %v2988
        %v4673 = vunpack.c.l.s4 1983009808
        %v4674 = vunpack.c.0.s8 %v4673
        %v4675 = vlaneseq
        %v4676 = vshrl.u32 %v4675, 7
        %v4677 = vsub.s32 %v4674, %v4676
        %v4678 = vrot.slane %v4671, %v4677
        %v4679 = vcombine.low %v3005, %v3006
        %v4681 = vunpack.c.l.s4 1983009808
        %v4682 = vunpack.c.0.s8 %v4681
        %v4683 = vlaneseq
        %v4684 = vshrl.u32 %v4683, 7
        %v4685 = vsub.s32 %v4682, %v4684
        %v4686 = vrot.slane %v4679, %v4685
        %v4687 = vcombine.low %v2997, %v3004
        %v4689 = vunpack.c.l.s4 1983009808
        %v4690 = vunpack.c.0.s8 %v4689
        %v4691 = vlaneseq
        %v4692 = vshrl.u32 %v4691, 7
        %v4693 = vsub.s32 %v4690, %v4692
        %v4694 = vrot.slane %v4687, %v4693
        %v4695 = vcombine.low %v3007, %v3008
        %v4697 = vunpack.c.l.s4 1983009808
        %v4698 = vunpack.c.0.s8 %v4697
        %v4699 = vlaneseq
        %v4700 = vshrl.u32 %v4699, 7
        %v4701 = vsub.s32 %v4698, %v4700
        %v4702 = vrot.slane %v4695, %v4701
        %v4703 = vcombine.low %v4678, %v4686
        %v4705 = vunpack.c.l.s4 1934713408
        %v4706 = vunpack.c.0.s8 %v4705
        %v4707 = vlaneseq
        %v4708 = vshrl.u32 %v4707, 7
        %v4709 = vsub.s32 %v4706, %v4708
        %v4710 = vrot.slane %v4703, %v4709
        %v4711 = vcombine.low %v4694, %v4702
        %v4713 = vunpack.c.l.s4 1934713408
        %v4714 = vunpack.c.0.s8 %v4713
        %v4715 = vlaneseq
        %v4716 = vshrl.u32 %v4715, 7
        %v4717 = vsub.s32 %v4714, %v4716
        %v4718 = vrot.slane %v4711, %v4717
        %v4719 = vcombine.low %v4710, %v4718
        %v4720 = vcombine.high %v4710, %v4718
        %v4721 = vcombine.low %v3047, %v3054
        %v4723 = vunpack.c.l.s4 1983009808
        %v4724 = vunpack.c.0.s8 %v4723
        %v4725 = vlaneseq
        %v4726 = vshrl.u32 %v4725, 7
        %v4727 = vsub.s32 %v4724, %v4726
        %v4728 = vrot.slane %v4721, %v4727
        %v4729 = vcombine.low %v3071, %v3072
        %v4731 = vunpack.c.l.s4 1983009808
        %v4732 = vunpack.c.0.s8 %v4731
        %v4733 = vlaneseq
        %v4734 = vshrl.u32 %v4733, 7
        %v4735 = vsub.s32 %v4732, %v4734
        %v4736 = vrot.slane %v4729, %v4735
        %v4737 = vcombine.low %v3063, %v3070
        %v4739 = vunpack.c.l.s4 1983009808
        %v4740 = vunpack.c.0.s8 %v4739
        %v4741 = vlaneseq
        %v4742 = vshrl.u32 %v4741, 7
        %v4743 = vsub.s32 %v4740, %v4742
        %v4744 = vrot.slane %v4737, %v4743
        %v4745 = vcombine.low %v3073, %v3074
        %v4747 = vunpack.c.l.s4 1983009808
        %v4748 = vunpack.c.0.s8 %v4747
        %v4749 = vlaneseq
        %v4750 = vshrl.u32 %v4749, 7
        %v4751 = vsub.s32 %v4748, %v4750
        %v4752 = vrot.slane %v4745, %v4751
        %v4753 = vcombine.low %v4728, %v4736
        %v4755 = vunpack.c.l.s4 1934713408
        %v4756 = vunpack.c.0.s8 %v4755
        %v4757 = vlaneseq
        %v4758 = vshrl.u32 %v4757, 7
        %v4759 = vsub.s32 %v4756, %v4758
        %v4760 = vrot.slane %v4753, %v4759
        %v4761 = vcombine.low %v4744, %v4752
        %v4763 = vunpack.c.l.s4 1934713408
        %v4764 = vunpack.c.0.s8 %v4763
        %v4765 = vlaneseq
        %v4766 = vshrl.u32 %v4765, 7
        %v4767 = vsub.s32 %v4764, %v4766
        %v4768 = vrot.slane %v4761, %v4767
        %v4769 = vcombine.low %v4760, %v4768
        %v4770 = vcombine.high %v4760, %v4768
        %v4771 = vcombine.low %v3113, %v3120
        %v4773 = vunpack.c.l.s4 1983009808
        %v4774 = vunpack.c.0.s8 %v4773
        %v4775 = vlaneseq
        %v4776 = vshrl.u32 %v4775, 7
        %v4777 = vsub.s32 %v4774, %v4776
        %v4778 = vrot.slane %v4771, %v4777
        %v4779 = vcombine.low %v3137, %v3138
        %v4781 = vunpack.c.l.s4 1983009808
        %v4782 = vunpack.c.0.s8 %v4781
        %v4783 = vlaneseq
        %v4784 = vshrl.u32 %v4783, 7
        %v4785 = vsub.s32 %v4782, %v4784
        %v4786 = vrot.slane %v4779, %v4785
        %v4787 = vcombine.low %v3129, %v3136
        %v4789 = vunpack.c.l.s4 1983009808
        %v4790 = vunpack.c.0.s8 %v4789
        %v4791 = vlaneseq
        %v4792 = vshrl.u32 %v4791, 7
        %v4793 = vsub.s32 %v4790, %v4792
        %v4794 = vrot.slane %v4787, %v4793
        %v4795 = vcombine.low %v3139, %v3140
        %v4797 = vunpack.c.l.s4 1983009808
        %v4798 = vunpack.c.0.s8 %v4797
        %v4799 = vlaneseq
        %v4800 = vshrl.u32 %v4799, 7
        %v4801 = vsub.s32 %v4798, %v4800
        %v4802 = vrot.slane %v4795, %v4801
        %v4803 = vcombine.low %v4778, %v4786
        %v4805 = vunpack.c.l.s4 1934713408
        %v4806 = vunpack.c.0.s8 %v4805
        %v4807 = vlaneseq
        %v4808 = vshrl.u32 %v4807, 7
        %v4809 = vsub.s32 %v4806, %v4808
        %v4810 = vrot.slane %v4803, %v4809
        %v4811 = vcombine.low %v4794, %v4802
        %v4813 = vunpack.c.l.s4 1934713408
        %v4814 = vunpack.c.0.s8 %v4813
        %v4815 = vlaneseq
        %v4816 = vshrl.u32 %v4815, 7
        %v4817 = vsub.s32 %v4814, %v4816
        %v4818 = vrot.slane %v4811, %v4817
        %v4819 = vcombine.low %v4810, %v4818
        %v4820 = vcombine.high %v4810, %v4818
        %v4821 = vcombine.low %v3179, %v3186
        %v4823 = vunpack.c.l.s4 1983009808
        %v4824 = vunpack.c.0.s8 %v4823
        %v4825 = vlaneseq
        %v4826 = vshrl.u32 %v4825, 7
        %v4827 = vsub.s32 %v4824, %v4826
        %v4828 = vrot.slane %v4821, %v4827
        %v4829 = vcombine.low %v3203, %v3204
        %v4831 = vunpack.c.l.s4 1983009808
        %v4832 = vunpack.c.0.s8 %v4831
        %v4833 = vlaneseq
        %v4834 = vshrl.u32 %v4833, 7
        %v4835 = vsub.s32 %v4832, %v4834
        %v4836 = vrot.slane %v4829, %v4835
        %v4837 = vcombine.low %v3195, %v3202
        %v4839 = vunpack.c.l.s4 1983009808
        %v4840 = vunpack.c.0.s8 %v4839
        %v4841 = vlaneseq
        %v4842 = vshrl.u32 %v4841, 7
        %v4843 = vsub.s32 %v4840, %v4842
        %v4844 = vrot.slane %v4837, %v4843
        %v4845 = vcombine.low %v3205, %v3206
        %v4847 = vunpack.c.l.s4 1983009808
        %v4848 = vunpack.c.0.s8 %v4847
        %v4849 = vlaneseq
        %v4850 = vshrl.u32 %v4849, 7
        %v4851 = vsub.s32 %v4848, %v4850
        %v4852 = vrot.slane %v4845, %v4851
        %v4853 = vcombine.low %v4828, %v4836
        %v4855 = vunpack.c.l.s4 1934713408
        %v4856 = vunpack.c.0.s8 %v4855
        %v4857 = vlaneseq
        %v4858 = vshrl.u32 %v4857, 7
        %v4859 = vsub.s32 %v4856, %v4858
        %v4860 = vrot.slane %v4853, %v4859
        %v4861 = vcombine.low %v4844, %v4852
        %v4863 = vunpack.c.l.s4 1934713408
        %v4864 = vunpack.c.0.s8 %v4863
        %v4865 = vlaneseq
        %v4866 = vshrl.u32 %v4865, 7
        %v4867 = vsub.s32 %v4864, %v4866
        %v4868 = vrot.slane %v4861, %v4867
        %v4869 = vcombine.low %v4860, %v4868
        %v4870 = vcombine.high %v4860, %v4868
        %v4871 = vcombine.low %v3245, %v3252
        %v4873 = vunpack.c.l.s4 1983009808
        %v4874 = vunpack.c.0.s8 %v4873
        %v4875 = vlaneseq
        %v4876 = vshrl.u32 %v4875, 7
        %v4877 = vsub.s32 %v4874, %v4876
        %v4878 = vrot.slane %v4871, %v4877
        %v4879 = vcombine.low %v3269, %v3270
        %v4881 = vunpack.c.l.s4 1983009808
        %v4882 = vunpack.c.0.s8 %v4881
        %v4883 = vlaneseq
        %v4884 = vshrl.u32 %v4883, 7
        %v4885 = vsub.s32 %v4882, %v4884
        %v4886 = vrot.slane %v4879, %v4885
        %v4887 = vcombine.low %v3261, %v3268
        %v4889 = vunpack.c.l.s4 1983009808
        %v4890 = vunpack.c.0.s8 %v4889
        %v4891 = vlaneseq
        %v4892 = vshrl.u32 %v4891, 7
        %v4893 = vsub.s32 %v4890, %v4892
        %v4894 = vrot.slane %v4887, %v4893
        %v4895 = vcombine.low %v3271, %v3272
        %v4897 = vunpack.c.l.s4 1983009808
        %v4898 = vunpack.c.0.s8 %v4897
        %v4899 = vlaneseq
        %v4900 = vshrl.u32 %v4899, 7
        %v4901 = vsub.s32 %v4898, %v4900
        %v4902 = vrot.slane %v4895, %v4901
        %v4903 = vcombine.low %v4878, %v4886
        %v4905 = vunpack.c.l.s4 1934713408
        %v4906 = vunpack.c.0.s8 %v4905
        %v4907 = vlaneseq
        %v4908 = vshrl.u32 %v4907, 7
        %v4909 = vsub.s32 %v4906, %v4908
        %v4910 = vrot.slane %v4903, %v4909
        %v4911 = vcombine.low %v4894, %v4902
        %v4913 = vunpack.c.l.s4 1934713408
        %v4914 = vunpack.c.0.s8 %v4913
        %v4915 = vlaneseq
        %v4916 = vshrl.u32 %v4915, 7
        %v4917 = vsub.s32 %v4914, %v4916
        %v4918 = vrot.slane %v4911, %v4917
        %v4919 = vcombine.low %v4910, %v4918
        %v4920 = vcombine.high %v4910, %v4918
        %v4921 = vcombine.low %v3311, %v3318
        %v4923 = vunpack.c.l.s4 1983009808
        %v4924 = vunpack.c.0.s8 %v4923
        %v4925 = vlaneseq
        %v4926 = vshrl.u32 %v4925, 7
        %v4927 = vsub.s32 %v4924, %v4926
        %v4928 = vrot.slane %v4921, %v4927
        %v4929 = vcombine.low %v3335, %v3336
        %v4931 = vunpack.c.l.s4 1983009808
        %v4932 = vunpack.c.0.s8 %v4931
        %v4933 = vlaneseq
        %v4934 = vshrl.u32 %v4933, 7
        %v4935 = vsub.s32 %v4932, %v4934
        %v4936 = vrot.slane %v4929, %v4935
        %v4937 = vcombine.low %v3327, %v3334
        %v4939 = vunpack.c.l.s4 1983009808
        %v4940 = vunpack.c.0.s8 %v4939
        %v4941 = vlaneseq
        %v4942 = vshrl.u32 %v4941, 7
        %v4943 = vsub.s32 %v4940, %v4942
        %v4944 = vrot.slane %v4937, %v4943
        %v4945 = vcombine.low %v3337, %v3338
        %v4947 = vunpack.c.l.s4 1983009808
        %v4948 = vunpack.c.0.s8 %v4947
        %v4949 = vlaneseq
        %v4950 = vshrl.u32 %v4949, 7
        %v4951 = vsub.s32 %v4948, %v4950
        %v4952 = vrot.slane %v4945, %v4951
        %v4953 = vcombine.low %v4928, %v4936
        %v4955 = vunpack.c.l.s4 1934713408
        %v4956 = vunpack.c.0.s8 %v4955
        %v4957 = vlaneseq
        %v4958 = vshrl.u32 %v4957, 7
        %v4959 = vsub.s32 %v4956, %v4958
        %v4960 = vrot.slane %v4953, %v4959
        %v4961 = vcombine.low %v4944, %v4952
        %v4963 = vunpack.c.l.s4 1934713408
        %v4964 = vunpack.c.0.s8 %v4963
        %v4965 = vlaneseq
        %v4966 = vshrl.u32 %v4965, 7
        %v4967 = vsub.s32 %v4964, %v4966
        %v4968 = vrot.slane %v4961, %v4967
        %v4969 = vcombine.low %v4960, %v4968
        %v4970 = vcombine.high %v4960, %v4968
        %v4971 = vcombine.low %v3377, %v3384
        %v4973 = vunpack.c.l.s4 1983009808
        %v4974 = vunpack.c.0.s8 %v4973
        %v4975 = vlaneseq
        %v4976 = vshrl.u32 %v4975, 7
        %v4977 = vsub.s32 %v4974, %v4976
        %v4978 = vrot.slane %v4971, %v4977
        %v4979 = vcombine.low %v3401, %v3402
        %v4981 = vunpack.c.l.s4 1983009808
        %v4982 = vunpack.c.0.s8 %v4981
        %v4983 = vlaneseq
        %v4984 = vshrl.u32 %v4983, 7
        %v4985 = vsub.s32 %v4982, %v4984
        %v4986 = vrot.slane %v4979, %v4985
        %v4987 = vcombine.low %v3393, %v3400
        %v4989 = vunpack.c.l.s4 1983009808
        %v4990 = vunpack.c.0.s8 %v4989
        %v4991 = vlaneseq
        %v4992 = vshrl.u32 %v4991, 7
        %v4993 = vsub.s32 %v4990, %v4992
        %v4994 = vrot.slane %v4987, %v4993
        %v4995 = vcombine.low %v3403, %v3404
        %v4997 = vunpack.c.l.s4 1983009808
        %v4998 = vunpack.c.0.s8 %v4997
        %v4999 = vlaneseq
        %v5000 = vshrl.u32 %v4999, 7
        %v5001 = vsub.s32 %v4998, %v5000
        %v5002 = vrot.slane %v4995, %v5001
        %v5003 = vcombine.low %v4978, %v4986
        %v5005 = vunpack.c.l.s4 1934713408
        %v5006 = vunpack.c.0.s8 %v5005
        %v5007 = vlaneseq
        %v5008 = vshrl.u32 %v5007, 7
        %v5009 = vsub.s32 %v5006, %v5008
        %v5010 = vrot.slane %v5003, %v5009
        %v5011 = vcombine.low %v4994, %v5002
        %v5013 = vunpack.c.l.s4 1934713408
        %v5014 = vunpack.c.0.s8 %v5013
        %v5015 = vlaneseq
        %v5016 = vshrl.u32 %v5015, 7
        %v5017 = vsub.s32 %v5014, %v5016
        %v5018 = vrot.slane %v5011, %v5017
        %v5019 = vcombine.low %v5010, %v5018
        %v5020 = vcombine.high %v5010, %v5018
        %v5021 = vcombine.low %v3443, %v3450
        %v5023 = vunpack.c.l.s4 1983009808
        %v5024 = vunpack.c.0.s8 %v5023
        %v5025 = vlaneseq
        %v5026 = vshrl.u32 %v5025, 7
        %v5027 = vsub.s32 %v5024, %v5026
        %v5028 = vrot.slane %v5021, %v5027
        %v5029 = vcombine.low %v3467, %v3468
        %v5031 = vunpack.c.l.s4 1983009808
        %v5032 = vunpack.c.0.s8 %v5031
        %v5033 = vlaneseq
        %v5034 = vshrl.u32 %v5033, 7
        %v5035 = vsub.s32 %v5032, %v5034
        %v5036 = vrot.slane %v5029, %v5035
        %v5037 = vcombine.low %v3459, %v3466
        %v5039 = vunpack.c.l.s4 1983009808
        %v5040 = vunpack.c.0.s8 %v5039
        %v5041 = vlaneseq
        %v5042 = vshrl.u32 %v5041, 7
        %v5043 = vsub.s32 %v5040, %v5042
        %v5044 = vrot.slane %v5037, %v5043
        %v5045 = vcombine.low %v3469, %v3470
        %v5047 = vunpack.c.l.s4 1983009808
        %v5048 = vunpack.c.0.s8 %v5047
        %v5049 = vlaneseq
        %v5050 = vshrl.u32 %v5049, 7
        %v5051 = vsub.s32 %v5048, %v5050
        %v5052 = vrot.slane %v5045, %v5051
        %v5053 = vcombine.low %v5028, %v5036
        %v5055 = vunpack.c.l.s4 1934713408
        %v5056 = vunpack.c.0.s8 %v5055
        %v5057 = vlaneseq
        %v5058 = vshrl.u32 %v5057, 7
        %v5059 = vsub.s32 %v5056, %v5058
        %v5060 = vrot.slane %v5053, %v5059
        %v5061 = vcombine.low %v5044, %v5052
        %v5063 = vunpack.c.l.s4 1934713408
        %v5064 = vunpack.c.0.s8 %v5063
        %v5065 = vlaneseq
        %v5066 = vshrl.u32 %v5065, 7
        %v5067 = vsub.s32 %v5064, %v5066
        %v5068 = vrot.slane %v5061, %v5067
        %v5069 = vcombine.low %v5060, %v5068
        %v5070 = vcombine.high %v5060, %v5068
        %v5073 = vpack.i.b16 %v3569, %v3519
        %v5074 = vshrl.u32 %v3519, 16
        %v5075 = vshrl.u32 %v3569, 16
        %v5076 = vpack.i.b16 %v5075, %v5074
        %v5079 = vpack.i.b16 %v3570, %v3520
        %v5080 = vshrl.u32 %v3520, 16
        %v5081 = vshrl.u32 %v3570, 16
        %v5082 = vpack.i.b16 %v5081, %v5080
        %v5085 = vpack.i.b16 %v3669, %v3619
        %v5086 = vshrl.u32 %v3619, 16
        %v5087 = vshrl.u32 %v3669, 16
        %v5088 = vpack.i.b16 %v5087, %v5086
        %v5091 = vpack.i.b16 %v3670, %v3620
        %v5092 = vshrl.u32 %v3620, 16
        %v5093 = vshrl.u32 %v3670, 16
        %v5094 = vpack.i.b16 %v5093, %v5092
        %v5097 = vpack.i.b16 %v3769, %v3719
        %v5098 = vshrl.u32 %v3719, 16
        %v5099 = vshrl.u32 %v3769, 16
        %v5100 = vpack.i.b16 %v5099, %v5098
        %v5103 = vpack.i.b16 %v3770, %v3720
        %v5104 = vshrl.u32 %v3720, 16
        %v5105 = vshrl.u32 %v3770, 16
        %v5106 = vpack.i.b16 %v5105, %v5104
        %v5109 = vpack.i.b16 %v3869, %v3819
        %v5110 = vshrl.u32 %v3819, 16
        %v5111 = vshrl.u32 %v3869, 16
        %v5112 = vpack.i.b16 %v5111, %v5110
        %v5115 = vpack.i.b16 %v3870, %v3820
        %v5116 = vshrl.u32 %v3820, 16
        %v5117 = vshrl.u32 %v3870, 16
        %v5118 = vpack.i.b16 %v5117, %v5116
        %v5121 = vpack.i.b16 %v3969, %v3919
        %v5122 = vshrl.u32 %v3919, 16
        %v5123 = vshrl.u32 %v3969, 16
        %v5124 = vpack.i.b16 %v5123, %v5122
        %v5127 = vpack.i.b16 %v3970, %v3920
        %v5128 = vshrl.u32 %v3920, 16
        %v5129 = vshrl.u32 %v3970, 16
        %v5130 = vpack.i.b16 %v5129, %v5128
        %v5133 = vpack.i.b16 %v4069, %v4019
        %v5134 = vshrl.u32 %v4019, 16
        %v5135 = vshrl.u32 %v4069, 16
        %v5136 = vpack.i.b16 %v5135, %v5134
        %v5139 = vpack.i.b16 %v4070, %v4020
        %v5140 = vshrl.u32 %v4020, 16
        %v5141 = vshrl.u32 %v4070, 16
        %v5142 = vpack.i.b16 %v5141, %v5140
        %v5145 = vpack.i.b16 %v4169, %v4119
        %v5146 = vshrl.u32 %v4119, 16
        %v5147 = vshrl.u32 %v4169, 16
        %v5148 = vpack.i.b16 %v5147, %v5146
        %v5151 = vpack.i.b16 %v4170, %v4120
        %v5152 = vshrl.u32 %v4120, 16
        %v5153 = vshrl.u32 %v4170, 16
        %v5154 = vpack.i.b16 %v5153, %v5152
        %v5157 = vpack.i.b16 %v4269, %v4219
        %v5158 = vshrl.u32 %v4219, 16
        %v5159 = vshrl.u32 %v4269, 16
        %v5160 = vpack.i.b16 %v5159, %v5158
        %v5163 = vpack.i.b16 %v4270, %v4220
        %v5164 = vshrl.u32 %v4220, 16
        %v5165 = vshrl.u32 %v4270, 16
        %v5166 = vpack.i.b16 %v5165, %v5164
        %v5169 = vpack.i.b16 %v4369, %v4319
        %v5170 = vshrl.u32 %v4319, 16
        %v5171 = vshrl.u32 %v4369, 16
        %v5172 = vpack.i.b16 %v5171, %v5170
        %v5175 = vpack.i.b16 %v4370, %v4320
        %v5176 = vshrl.u32 %v4320, 16
        %v5177 = vshrl.u32 %v4370, 16
        %v5178 = vpack.i.b16 %v5177, %v5176
        %v5181 = vpack.i.b16 %v4469, %v4419
        %v5182 = vshrl.u32 %v4419, 16
        %v5183 = vshrl.u32 %v4469, 16
        %v5184 = vpack.i.b16 %v5183, %v5182
        %v5187 = vpack.i.b16 %v4470, %v4420
        %v5188 = vshrl.u32 %v4420, 16
        %v5189 = vshrl.u32 %v4470, 16
        %v5190 = vpack.i.b16 %v5189, %v5188
        %v5193 = vpack.i.b16 %v4569, %v4519
        %v5194 = vshrl.u32 %v4519, 16
        %v5195 = vshrl.u32 %v4569, 16
        %v5196 = vpack.i.b16 %v5195, %v5194
        %v5199 = vpack.i.b16 %v4570, %v4520
        %v5200 = vshrl.u32 %v4520, 16
        %v5201 = vshrl.u32 %v4570, 16
        %v5202 = vpack.i.b16 %v5201, %v5200
        %v5205 = vpack.i.b16 %v4669, %v4619
        %v5206 = vshrl.u32 %v4619, 16
        %v5207 = vshrl.u32 %v4669, 16
        %v5208 = vpack.i.b16 %v5207, %v5206
        %v5211 = vpack.i.b16 %v4670, %v4620
        %v5212 = vshrl.u32 %v4620, 16
        %v5213 = vshrl.u32 %v4670, 16
        %v5214 = vpack.i.b16 %v5213, %v5212
        %v5217 = vpack.i.b16 %v4769, %v4719
        %v5218 = vshrl.u32 %v4719, 16
        %v5219 = vshrl.u32 %v4769, 16
        %v5220 = vpack.i.b16 %v5219, %v5218
        %v5223 = vpack.i.b16 %v4770, %v4720
        %v5224 = vshrl.u32 %v4720, 16
        %v5225 = vshrl.u32 %v4770, 16
        %v5226 = vpack.i.b16 %v5225, %v5224
        %v5229 = vpack.i.b16 %v4869, %v4819
        %v5230 = vshrl.u32 %v4819, 16
        %v5231 = vshrl.u32 %v4869, 16
        %v5232 = vpack.i.b16 %v5231, %v5230
        %v5235 = vpack.i.b16 %v4870, %v4820
        %v5236 = vshrl.u32 %v4820, 16
        %v5237 = vshrl.u32 %v4870, 16
        %v5238 = vpack.i.b16 %v5237, %v5236
        %v5241 = vpack.i.b16 %v4969, %v4919
        %v5242 = vshrl.u32 %v4919, 16
        %v5243 = vshrl.u32 %v4969, 16
        %v5244 = vpack.i.b16 %v5243, %v5242
        %v5247 = vpack.i.b16 %v4970, %v4920
        %v5248 = vshrl.u32 %v4920, 16
        %v5249 = vshrl.u32 %v4970, 16
        %v5250 = vpack.i.b16 %v5249, %v5248
        %v5253 = vpack.i.b16 %v5069, %v5019
        %v5254 = vshrl.u32 %v5019, 16
        %v5255 = vshrl.u32 %v5069, 16
        %v5256 = vpack.i.b16 %v5255, %v5254
        %v5259 = vpack.i.b16 %v5070, %v5020
        %v5260 = vshrl.u32 %v5020, 16
        %v5261 = vshrl.u32 %v5070, 16
        %v5262 = vpack.i.b16 %v5261, %v5260
        %v5263 = vunpack.c.l.b16 %v5073
        %v5264 = vunpack.c.h.b16 %v5073
        %v5265 = vunpack.c.l.b16 %v5085
        %v5266 = vunpack.c.h.b16 %v5085
        %v5267 = vunpack.c.l.b16 %v5097
        %v5268 = vunpack.c.h.b16 %v5097
        %v5269 = vunpack.c.l.b16 %v5109
        %v5270 = vunpack.c.h.b16 %v5109
        %v5271 = vunpack.c.l.b16 %v5121
        %v5272 = vunpack.c.h.b16 %v5121
        %v5273 = vunpack.c.l.b16 %v5133
        %v5274 = vunpack.c.h.b16 %v5133
        %v5275 = vunpack.c.l.b16 %v5145
        %v5276 = vunpack.c.h.b16 %v5145
        %v5277 = vunpack.c.l.b16 %v5157
        %v5278 = vunpack.c.h.b16 %v5157
        %v5279 = vunpack.c.l.b16 %v5169
        %v5280 = vunpack.c.h.b16 %v5169
        %v5281 = vunpack.c.l.b16 %v5181
        %v5282 = vunpack.c.h.b16 %v5181
        %v5283 = vunpack.c.l.b16 %v5193
        %v5284 = vunpack.c.h.b16 %v5193
        %v5285 = vunpack.c.l.b16 %v5205
        %v5286 = vunpack.c.h.b16 %v5205
        %v5287 = vunpack.c.l.b16 %v5217
        %v5288 = vunpack.c.h.b16 %v5217
        %v5289 = vunpack.c.l.b16 %v5229
        %v5290 = vunpack.c.h.b16 %v5229
        %v5291 = vunpack.c.l.b16 %v5241
        %v5292 = vunpack.c.h.b16 %v5241
        %v5293 = vunpack.c.l.b16 %v5253
        %v5294 = vunpack.c.h.b16 %v5253
        %v5295 = vunpack.c.l.b16 %v5076
        %v5296 = vunpack.c.h.b16 %v5076
        %v5297 = vunpack.c.l.b16 %v5088
        %v5298 = vunpack.c.h.b16 %v5088
        %v5299 = vunpack.c.l.b16 %v5100
        %v5300 = vunpack.c.h.b16 %v5100
        %v5301 = vunpack.c.l.b16 %v5112
        %v5302 = vunpack.c.h.b16 %v5112
        %v5303 = vunpack.c.l.b16 %v5124
        %v5304 = vunpack.c.h.b16 %v5124
        %v5305 = vunpack.c.l.b16 %v5136
        %v5306 = vunpack.c.h.b16 %v5136
        %v5307 = vunpack.c.l.b16 %v5148
        %v5308 = vunpack.c.h.b16 %v5148
        %v5309 = vunpack.c.l.b16 %v5160
        %v5310 = vunpack.c.h.b16 %v5160
        %v5311 = vunpack.c.l.b16 %v5172
        %v5312 = vunpack.c.h.b16 %v5172
        %v5313 = vunpack.c.l.b16 %v5184
        %v5314 = vunpack.c.h.b16 %v5184
        %v5315 = vunpack.c.l.b16 %v5196
        %v5316 = vunpack.c.h.b16 %v5196
        %v5317 = vunpack.c.l.b16 %v5208
        %v5318 = vunpack.c.h.b16 %v5208
        %v5319 = vunpack.c.l.b16 %v5220
        %v5320 = vunpack.c.h.b16 %v5220
        %v5321 = vunpack.c.l.b16 %v5232
        %v5322 = vunpack.c.h.b16 %v5232
        %v5323 = vunpack.c.l.b16 %v5244
        %v5324 = vunpack.c.h.b16 %v5244
        %v5325 = vunpack.c.l.b16 %v5256
        %v5326 = vunpack.c.h.b16 %v5256
        %v5327 = vunpack.c.l.b16 %v5079
        %v5328 = vunpack.c.h.b16 %v5079
        %v5329 = vunpack.c.l.b16 %v5091
        %v5330 = vunpack.c.h.b16 %v5091
        %v5331 = vunpack.c.l.b16 %v5103
        %v5332 = vunpack.c.h.b16 %v5103
        %v5333 = vunpack.c.l.b16 %v5115
        %v5334 = vunpack.c.h.b16 %v5115
        %v5335 = vunpack.c.l.b16 %v5127
        %v5336 = vunpack.c.h.b16 %v5127
        %v5337 = vunpack.c.l.b16 %v5139
        %v5338 = vunpack.c.h.b16 %v5139
        %v5339 = vunpack.c.l.b16 %v5151
        %v5340 = vunpack.c.h.b16 %v5151
        %v5341 = vunpack.c.l.b16 %v5163
        %v5342 = vunpack.c.h.b16 %v5163
        %v5343 = vunpack.c.l.b16 %v5175
        %v5344 = vunpack.c.h.b16 %v5175
        %v5345 = vunpack.c.l.b16 %v5187
        %v5346 = vunpack.c.h.b16 %v5187
        %v5347 = vunpack.c.l.b16 %v5199
        %v5348 = vunpack.c.h.b16 %v5199
        %v5349 = vunpack.c.l.b16 %v5211
        %v5350 = vunpack.c.h.b16 %v5211
        %v5351 = vunpack.c.l.b16 %v5223
        %v5352 = vunpack.c.h.b16 %v5223
        %v5353 = vunpack.c.l.b16 %v5235
        %v5354 = vunpack.c.h.b16 %v5235
        %v5355 = vunpack.c.l.b16 %v5247
        %v5356 = vunpack.c.h.b16 %v5247
        %v5357 = vunpack.c.l.b16 %v5259
        %v5358 = vunpack.c.h.b16 %v5259
        %v5359 = vunpack.c.l.b16 %v5082
        %v5360 = vunpack.c.h.b16 %v5082
        %v5361 = vunpack.c.l.b16 %v5094
        %v5362 = vunpack.c.h.b16 %v5094
        %v5363 = vunpack.c.l.b16 %v5106
        %v5364 = vunpack.c.h.b16 %v5106
        %v5365 = vunpack.c.l.b16 %v5118
        %v5366 = vunpack.c.h.b16 %v5118
        %v5367 = vunpack.c.l.b16 %v5130
        %v5368 = vunpack.c.h.b16 %v5130
        %v5369 = vunpack.c.l.b16 %v5142
        %v5370 = vunpack.c.h.b16 %v5142
        %v5371 = vunpack.c.l.b16 %v5154
        %v5372 = vunpack.c.h.b16 %v5154
        %v5373 = vunpack.c.l.b16 %v5166
        %v5374 = vunpack.c.h.b16 %v5166
        %v5375 = vunpack.c.l.b16 %v5178
        %v5376 = vunpack.c.h.b16 %v5178
        %v5377 = vunpack.c.l.b16 %v5190
        %v5378 = vunpack.c.h.b16 %v5190
        %v5379 = vunpack.c.l.b16 %v5202
        %v5380 = vunpack.c.h.b16 %v5202
        %v5381 = vunpack.c.l.b16 %v5214
        %v5382 = vunpack.c.h.b16 %v5214
        %v5383 = vunpack.c.l.b16 %v5226
        %v5384 = vunpack.c.h.b16 %v5226
        %v5385 = vunpack.c.l.b16 %v5238
        %v5386 = vunpack.c.h.b16 %v5238
        %v5387 = vunpack.c.l.b16 %v5250
        %v5388 = vunpack.c.h.b16 %v5250
        %v5389 = vunpack.c.l.b16 %v5262
        %v5390 = vunpack.c.h.b16 %v5262
        %v5391 = vpack.c.b16 %v5263, %v5263
        %v5392 = vpack.c.b16 %v5264, %v5264
        %v5393 = vpack.c.b16 %v5265, %v5265
        %v5394 = vpack.c.b16 %v5266, %v5266
        %v5395 = vpack.c.b16 %v5267, %v5267
        %v5396 = vpack.c.b16 %v5268, %v5268
        %v5397 = vpack.c.b16 %v5269, %v5269
        %v5398 = vpack.c.b16 %v5270, %v5270
        %v5399 = vpack.c.b16 %v5271, %v5271
        %v5400 = vpack.c.b16 %v5272, %v5272
        %v5401 = vpack.c.b16 %v5273, %v5273
        %v5402 = vpack.c.b16 %v5274, %v5274
        %v5403 = vpack.c.b16 %v5275, %v5275
        %v5404 = vpack.c.b16 %v5276, %v5276
        %v5405 = vpack.c.b16 %v5277, %v5277
        %v5406 = vpack.c.b16 %v5278, %v5278
        %v5407 = vpack.c.b16 %v5279, %v5279
        %v5408 = vpack.c.b16 %v5280, %v5280
        %v5409 = vpack.c.b16 %v5281, %v5281
        %v5410 = vpack.c.b16 %v5282, %v5282
        %v5411 = vpack.c.b16 %v5283, %v5283
        %v5412 = vpack.c.b16 %v5284, %v5284
        %v5413 = vpack.c.b16 %v5285, %v5285
        %v5414 = vpack.c.b16 %v5286, %v5286
        %v5415 = vpack.c.b16 %v5287, %v5287
        %v5416 = vpack.c.b16 %v5288, %v5288
        %v5417 = vpack.c.b16 %v5289, %v5289
        %v5418 = vpack.c.b16 %v5290, %v5290
        %v5419 = vpack.c.b16 %v5291, %v5291
        %v5420 = vpack.c.b16 %v5292, %v5292
        %v5421 = vpack.c.b16 %v5293, %v5293
        %v5422 = vpack.c.b16 %v5294, %v5294
        %v5423 = vpack.c.b16 %v5295, %v5295
        %v5424 = vpack.c.b16 %v5296, %v5296
        %v5425 = vpack.c.b16 %v5297, %v5297
        %v5426 = vpack.c.b16 %v5298, %v5298
        %v5427 = vpack.c.b16 %v5299, %v5299
        %v5428 = vpack.c.b16 %v5300, %v5300
        %v5429 = vpack.c.b16 %v5301, %v5301
        %v5430 = vpack.c.b16 %v5302, %v5302
        %v5431 = vpack.c.b16 %v5303, %v5303
        %v5432 = vpack.c.b16 %v5304, %v5304
        %v5433 = vpack.c.b16 %v5305, %v5305
        %v5434 = vpack.c.b16 %v5306, %v5306
        %v5435 = vpack.c.b16 %v5307, %v5307
        %v5436 = vpack.c.b16 %v5308, %v5308
        %v5437 = vpack.c.b16 %v5309, %v5309
        %v5438 = vpack.c.b16 %v5310, %v5310
        %v5439 = vpack.c.b16 %v5311, %v5311
        %v5440 = vpack.c.b16 %v5312, %v5312
        %v5441 = vpack.c.b16 %v5313, %v5313
        %v5442 = vpack.c.b16 %v5314, %v5314
        %v5443 = vpack.c.b16 %v5315, %v5315
        %v5444 = vpack.c.b16 %v5316, %v5316
        %v5445 = vpack.c.b16 %v5317, %v5317
        %v5446 = vpack.c.b16 %v5318, %v5318
        %v5447 = vpack.c.b16 %v5319, %v5319
        %v5448 = vpack.c.b16 %v5320, %v5320
        %v5449 = vpack.c.b16 %v5321, %v5321
        %v5450 = vpack.c.b16 %v5322, %v5322
        %v5451 = vpack.c.b16 %v5323, %v5323
        %v5452 = vpack.c.b16 %v5324, %v5324
        %v5453 = vpack.c.b16 %v5325, %v5325
        %v5454 = vpack.c.b16 %v5326, %v5326
        %v5455 = vpack.c.b16 %v5327, %v5327
        %v5456 = vpack.c.b16 %v5328, %v5328
        %v5457 = vpack.c.b16 %v5329, %v5329
        %v5458 = vpack.c.b16 %v5330, %v5330
        %v5459 = vpack.c.b16 %v5331, %v5331
        %v5460 = vpack.c.b16 %v5332, %v5332
        %v5461 = vpack.c.b16 %v5333, %v5333
        %v5462 = vpack.c.b16 %v5334, %v5334
        %v5463 = vpack.c.b16 %v5335, %v5335
        %v5464 = vpack.c.b16 %v5336, %v5336
        %v5465 = vpack.c.b16 %v5337, %v5337
        %v5466 = vpack.c.b16 %v5338, %v5338
        %v5467 = vpack.c.b16 %v5339, %v5339
        %v5468 = vpack.c.b16 %v5340, %v5340
        %v5469 = vpack.c.b16 %v5341, %v5341
        %v5470 = vpack.c.b16 %v5342, %v5342
        %v5471 = vpack.c.b16 %v5343, %v5343
        %v5472 = vpack.c.b16 %v5344, %v5344
        %v5473 = vpack.c.b16 %v5345, %v5345
        %v5474 = vpack.c.b16 %v5346, %v5346
        %v5475 = vpack.c.b16 %v5347, %v5347
        %v5476 = vpack.c.b16 %v5348, %v5348
        %v5477 = vpack.c.b16 %v5349, %v5349
        %v5478 = vpack.c.b16 %v5350, %v5350
        %v5479 = vpack.c.b16 %v5351, %v5351
        %v5480 = vpack.c.b16 %v5352, %v5352
        %v5481 = vpack.c.b16 %v5353, %v5353
        %v5482 = vpack.c.b16 %v5354, %v5354
        %v5483 = vpack.c.b16 %v5355, %v5355
        %v5484 = vpack.c.b16 %v5356, %v5356
        %v5485 = vpack.c.b16 %v5357, %v5357
        %v5486 = vpack.c.b16 %v5358, %v5358
        %v5487 = vpack.c.b16 %v5359, %v5359
        %v5488 = vpack.c.b16 %v5360, %v5360
        %v5489 = vpack.c.b16 %v5361, %v5361
        %v5490 = vpack.c.b16 %v5362, %v5362
        %v5491 = vpack.c.b16 %v5363, %v5363
        %v5492 = vpack.c.b16 %v5364, %v5364
        %v5493 = vpack.c.b16 %v5365, %v5365
        %v5494 = vpack.c.b16 %v5366, %v5366
        %v5495 = vpack.c.b16 %v5367, %v5367
        %v5496 = vpack.c.b16 %v5368, %v5368
        %v5497 = vpack.c.b16 %v5369, %v5369
        %v5498 = vpack.c.b16 %v5370, %v5370
        %v5499 = vpack.c.b16 %v5371, %v5371
        %v5500 = vpack.c.b16 %v5372, %v5372
        %v5501 = vpack.c.b16 %v5373, %v5373
        %v5502 = vpack.c.b16 %v5374, %v5374
        %v5503 = vpack.c.b16 %v5375, %v5375
        %v5504 = vpack.c.b16 %v5376, %v5376
        %v5505 = vpack.c.b16 %v5377, %v5377
        %v5506 = vpack.c.b16 %v5378, %v5378
        %v5507 = vpack.c.b16 %v5379, %v5379
        %v5508 = vpack.c.b16 %v5380, %v5380
        %v5509 = vpack.c.b16 %v5381, %v5381
        %v5510 = vpack.c.b16 %v5382, %v5382
        %v5511 = vpack.c.b16 %v5383, %v5383
        %v5512 = vpack.c.b16 %v5384, %v5384
        %v5513 = vpack.c.b16 %v5385, %v5385
        %v5514 = vpack.c.b16 %v5386, %v5386
        %v5515 = vpack.c.b16 %v5387, %v5387
        %v5516 = vpack.c.b16 %v5388, %v5388
        %v5517 = vpack.c.b16 %v5389, %v5389
        %v5518 = vpack.c.b16 %v5390, %v5390
        %vm5647 = vcmask 257024
        %5648 = vst.msk [vmem:[%s311] sm:$0xf] %vm5647, %v5391
        %5649 = vst.msk [vmem:[%s311 + $0x4] sm:$0xf] %vm5647, %v5392
        %5650 = vst.msk [vmem:[%s311 + $0x8] sm:$0xf] %vm5647, %v5393
        %5651 = vst.msk [vmem:[%s311 + $0xc] sm:$0xf] %vm5647, %v5394
        %5652 = vst.msk [vmem:[%s311 + $0x10] sm:$0xf] %vm5647, %v5395
        %5653 = vst.msk [vmem:[%s311 + $0x14] sm:$0xf] %vm5647, %v5396
        %5654 = vst.msk [vmem:[%s311 + $0x18] sm:$0xf] %vm5647, %v5397
        %5655 = vst.msk [vmem:[%s311 + $0x1c] sm:$0xf] %vm5647, %v5398
        %5656 = vst.msk [vmem:[%s311 + $0x20] sm:$0xf] %vm5647, %v5399
        %5657 = vst.msk [vmem:[%s311 + $0x24] sm:$0xf] %vm5647, %v5400
        %5658 = vst.msk [vmem:[%s311 + $0x28] sm:$0xf] %vm5647, %v5401
        %5659 = vst.msk [vmem:[%s311 + $0x2c] sm:$0xf] %vm5647, %v5402
        %5660 = vst.msk [vmem:[%s311 + $0x30] sm:$0xf] %vm5647, %v5403
        %5661 = vst.msk [vmem:[%s311 + $0x34] sm:$0xf] %vm5647, %v5404
        %5662 = vst.msk [vmem:[%s311 + $0x38] sm:$0xf] %vm5647, %v5405
        %5663 = vst.msk [vmem:[%s311 + $0x3c] sm:$0xf] %vm5647, %v5406
        %5664 = vst.msk [vmem:[%s311 + $0x40] sm:$0xf] %vm5647, %v5407
        %5665 = vst.msk [vmem:[%s311 + $0x44] sm:$0xf] %vm5647, %v5408
        %5666 = vst.msk [vmem:[%s311 + $0x48] sm:$0xf] %vm5647, %v5409
        %5667 = vst.msk [vmem:[%s311 + $0x4c] sm:$0xf] %vm5647, %v5410
        %5668 = vst.msk [vmem:[%s311 + $0x50] sm:$0xf] %vm5647, %v5411
        %5669 = vst.msk [vmem:[%s311 + $0x54] sm:$0xf] %vm5647, %v5412
        %5670 = vst.msk [vmem:[%s311 + $0x58] sm:$0xf] %vm5647, %v5413
        %5671 = vst.msk [vmem:[%s311 + $0x5c] sm:$0xf] %vm5647, %v5414
        %5672 = vst.msk [vmem:[%s311 + $0x60] sm:$0xf] %vm5647, %v5415
        %5673 = vst.msk [vmem:[%s311 + $0x64] sm:$0xf] %vm5647, %v5416
        %5674 = vst.msk [vmem:[%s311 + $0x68] sm:$0xf] %vm5647, %v5417
        %5675 = vst.msk [vmem:[%s311 + $0x6c] sm:$0xf] %vm5647, %v5418
        %5676 = vst.msk [vmem:[%s311 + $0x70] sm:$0xf] %vm5647, %v5419
        %5677 = vst.msk [vmem:[%s311 + $0x74] sm:$0xf] %vm5647, %v5420
        %5678 = vst.msk [vmem:[%s311 + $0x78] sm:$0xf] %vm5647, %v5421
        %5679 = vst.msk [vmem:[%s311 + $0x7c] sm:$0xf] %vm5647, %v5422
        %5680 = vst.msk [vmem:[%s311 + $0x80] sm:$0xf] %vm5647, %v5423
        %5681 = vst.msk [vmem:[%s311 + $0x84] sm:$0xf] %vm5647, %v5424
        %5682 = vst.msk [vmem:[%s311 + $0x88] sm:$0xf] %vm5647, %v5425
        %5683 = vst.msk [vmem:[%s311 + $0x8c] sm:$0xf] %vm5647, %v5426
        %5684 = vst.msk [vmem:[%s311 + $0x90] sm:$0xf] %vm5647, %v5427
        %5685 = vst.msk [vmem:[%s311 + $0x94] sm:$0xf] %vm5647, %v5428
        %5686 = vst.msk [vmem:[%s311 + $0x98] sm:$0xf] %vm5647, %v5429
        %5687 = vst.msk [vmem:[%s311 + $0x9c] sm:$0xf] %vm5647, %v5430
        %5688 = vst.msk [vmem:[%s311 + $0xa0] sm:$0xf] %vm5647, %v5431
        %5689 = vst.msk [vmem:[%s311 + $0xa4] sm:$0xf] %vm5647, %v5432
        %5690 = vst.msk [vmem:[%s311 + $0xa8] sm:$0xf] %vm5647, %v5433
        %5691 = vst.msk [vmem:[%s311 + $0xac] sm:$0xf] %vm5647, %v5434
        %5692 = vst.msk [vmem:[%s311 + $0xb0] sm:$0xf] %vm5647, %v5435
        %5693 = vst.msk [vmem:[%s311 + $0xb4] sm:$0xf] %vm5647, %v5436
        %5694 = vst.msk [vmem:[%s311 + $0xb8] sm:$0xf] %vm5647, %v5437
        %5695 = vst.msk [vmem:[%s311 + $0xbc] sm:$0xf] %vm5647, %v5438
        %5696 = vst.msk [vmem:[%s311 + $0xc0] sm:$0xf] %vm5647, %v5439
        %5697 = vst.msk [vmem:[%s311 + $0xc4] sm:$0xf] %vm5647, %v5440
        %5698 = vst.msk [vmem:[%s311 + $0xc8] sm:$0xf] %vm5647, %v5441
        %5699 = vst.msk [vmem:[%s311 + $0xcc] sm:$0xf] %vm5647, %v5442
        %5700 = vst.msk [vmem:[%s311 + $0xd0] sm:$0xf] %vm5647, %v5443
        %5701 = vst.msk [vmem:[%s311 + $0xd4] sm:$0xf] %vm5647, %v5444
        %5702 = vst.msk [vmem:[%s311 + $0xd8] sm:$0xf] %vm5647, %v5445
        %5703 = vst.msk [vmem:[%s311 + $0xdc] sm:$0xf] %vm5647, %v5446
        %5704 = vst.msk [vmem:[%s311 + $0xe0] sm:$0xf] %vm5647, %v5447
        %5705 = vst.msk [vmem:[%s311 + $0xe4] sm:$0xf] %vm5647, %v5448
        %5706 = vst.msk [vmem:[%s311 + $0xe8] sm:$0xf] %vm5647, %v5449
        %5707 = vst.msk [vmem:[%s311 + $0xec] sm:$0xf] %vm5647, %v5450
        %5708 = vst.msk [vmem:[%s311 + $0xf0] sm:$0xf] %vm5647, %v5451
        %5709 = vst.msk [vmem:[%s311 + $0xf4] sm:$0xf] %vm5647, %v5452
        %5710 = vst.msk [vmem:[%s311 + $0xf8] sm:$0xf] %vm5647, %v5453
        %5711 = vst.msk [vmem:[%s311 + $0xfc] sm:$0xf] %vm5647, %v5454
        %5712 = vst.msk [vmem:[%s311 + $0x100] sm:$0xf] %vm5647, %v5455
        %5713 = vst.msk [vmem:[%s311 + $0x104] sm:$0xf] %vm5647, %v5456
        %5714 = vst.msk [vmem:[%s311 + $0x108] sm:$0xf] %vm5647, %v5457
        %5715 = vst.msk [vmem:[%s311 + $0x10c] sm:$0xf] %vm5647, %v5458
        %5716 = vst.msk [vmem:[%s311 + $0x110] sm:$0xf] %vm5647, %v5459
        %5717 = vst.msk [vmem:[%s311 + $0x114] sm:$0xf] %vm5647, %v5460
        %5718 = vst.msk [vmem:[%s311 + $0x118] sm:$0xf] %vm5647, %v5461
        %5719 = vst.msk [vmem:[%s311 + $0x11c] sm:$0xf] %vm5647, %v5462
        %5720 = vst.msk [vmem:[%s311 + $0x120] sm:$0xf] %vm5647, %v5463
        %5721 = vst.msk [vmem:[%s311 + $0x124] sm:$0xf] %vm5647, %v5464
        %5722 = vst.msk [vmem:[%s311 + $0x128] sm:$0xf] %vm5647, %v5465
        %5723 = vst.msk [vmem:[%s311 + $0x12c] sm:$0xf] %vm5647, %v5466
        %5724 = vst.msk [vmem:[%s311 + $0x130] sm:$0xf] %vm5647, %v5467
        %5725 = vst.msk [vmem:[%s311 + $0x134] sm:$0xf] %vm5647, %v5468
        %5726 = vst.msk [vmem:[%s311 + $0x138] sm:$0xf] %vm5647, %v5469
        %5727 = vst.msk [vmem:[%s311 + $0x13c] sm:$0xf] %vm5647, %v5470
        %5728 = vst.msk [vmem:[%s311 + $0x140] sm:$0xf] %vm5647, %v5471
        %5729 = vst.msk [vmem:[%s311 + $0x144] sm:$0xf] %vm5647, %v5472
        %5730 = vst.msk [vmem:[%s311 + $0x148] sm:$0xf] %vm5647, %v5473
        %5731 = vst.msk [vmem:[%s311 + $0x14c] sm:$0xf] %vm5647, %v5474
        %5732 = vst.msk [vmem:[%s311 + $0x150] sm:$0xf] %vm5647, %v5475
        %5733 = vst.msk [vmem:[%s311 + $0x154] sm:$0xf] %vm5647, %v5476
        %5734 = vst.msk [vmem:[%s311 + $0x158] sm:$0xf] %vm5647, %v5477
        %5735 = vst.msk [vmem:[%s311 + $0x15c] sm:$0xf] %vm5647, %v5478
        %5736 = vst.msk [vmem:[%s311 + $0x160] sm:$0xf] %vm5647, %v5479
        %5737 = vst.msk [vmem:[%s311 + $0x164] sm:$0xf] %vm5647, %v5480
        %5738 = vst.msk [vmem:[%s311 + $0x168] sm:$0xf] %vm5647, %v5481
        %5739 = vst.msk [vmem:[%s311 + $0x16c] sm:$0xf] %vm5647, %v5482
        %5740 = vst.msk [vmem:[%s311 + $0x170] sm:$0xf] %vm5647, %v5483
        %5741 = vst.msk [vmem:[%s311 + $0x174] sm:$0xf] %vm5647, %v5484
        %5742 = vst.msk [vmem:[%s311 + $0x178] sm:$0xf] %vm5647, %v5485
        %5743 = vst.msk [vmem:[%s311 + $0x17c] sm:$0xf] %vm5647, %v5486
        %5744 = vst.msk [vmem:[%s311 + $0x180] sm:$0xf] %vm5647, %v5487
        %5745 = vst.msk [vmem:[%s311 + $0x184] sm:$0xf] %vm5647, %v5488
        %5746 = vst.msk [vmem:[%s311 + $0x188] sm:$0xf] %vm5647, %v5489
        %5747 = vst.msk [vmem:[%s311 + $0x18c] sm:$0xf] %vm5647, %v5490
        %5748 = vst.msk [vmem:[%s311 + $0x190] sm:$0xf] %vm5647, %v5491
        %5749 = vst.msk [vmem:[%s311 + $0x194] sm:$0xf] %vm5647, %v5492
        %5750 = vst.msk [vmem:[%s311 + $0x198] sm:$0xf] %vm5647, %v5493
        %5751 = vst.msk [vmem:[%s311 + $0x19c] sm:$0xf] %vm5647, %v5494
        %5752 = vst.msk [vmem:[%s311 + $0x1a0] sm:$0xf] %vm5647, %v5495
        %5753 = vst.msk [vmem:[%s311 + $0x1a4] sm:$0xf] %vm5647, %v5496
        %5754 = vst.msk [vmem:[%s311 + $0x1a8] sm:$0xf] %vm5647, %v5497
        %5755 = vst.msk [vmem:[%s311 + $0x1ac] sm:$0xf] %vm5647, %v5498
        %5756 = vst.msk [vmem:[%s311 + $0x1b0] sm:$0xf] %vm5647, %v5499
        %5757 = vst.msk [vmem:[%s311 + $0x1b4] sm:$0xf] %vm5647, %v5500
        %5758 = vst.msk [vmem:[%s311 + $0x1b8] sm:$0xf] %vm5647, %v5501
        %5759 = vst.msk [vmem:[%s311 + $0x1bc] sm:$0xf] %vm5647, %v5502
        %5760 = vst.msk [vmem:[%s311 + $0x1c0] sm:$0xf] %vm5647, %v5503
        %5761 = vst.msk [vmem:[%s311 + $0x1c4] sm:$0xf] %vm5647, %v5504
        %5762 = vst.msk [vmem:[%s311 + $0x1c8] sm:$0xf] %vm5647, %v5505
        %5763 = vst.msk [vmem:[%s311 + $0x1cc] sm:$0xf] %vm5647, %v5506
        %5764 = vst.msk [vmem:[%s311 + $0x1d0] sm:$0xf] %vm5647, %v5507
        %5765 = vst.msk [vmem:[%s311 + $0x1d4] sm:$0xf] %vm5647, %v5508
        %5766 = vst.msk [vmem:[%s311 + $0x1d8] sm:$0xf] %vm5647, %v5509
        %5767 = vst.msk [vmem:[%s311 + $0x1dc] sm:$0xf] %vm5647, %v5510
        %5768 = vst.msk [vmem:[%s311 + $0x1e0] sm:$0xf] %vm5647, %v5511
        %5769 = vst.msk [vmem:[%s311 + $0x1e4] sm:$0xf] %vm5647, %v5512
        %5770 = vst.msk [vmem:[%s311 + $0x1e8] sm:$0xf] %vm5647, %v5513
        %5771 = vst.msk [vmem:[%s311 + $0x1ec] sm:$0xf] %vm5647, %v5514
        %5772 = vst.msk [vmem:[%s311 + $0x1f0] sm:$0xf] %vm5647, %v5515
        %5773 = vst.msk [vmem:[%s311 + $0x1f4] sm:$0xf] %vm5647, %v5516
        %5774 = vst.msk [vmem:[%s311 + $0x1f8] sm:$0xf] %vm5647, %v5517
        %5775 = vst.msk [vmem:[%s311 + $0x1fc] sm:$0xf] %vm5647, %v5518
        %s5776 = sand.u32 %s143, 1
        %s5777 = scalar_lea.sflag [#allocation4], %s5776
        %s5778 = sand.u32 %s143, 1
        %s5779 = smul.addr %s5778, 128
        %s5780 = scalar_lea.vmem [#allocation8], %s5779
        %p5781 = scmp.lt.s32.totalorder %s25, 1
        %s5782 = scalar_select %p5781, %s25, 1
        %s5783 = smul.addr %s5782, 128
        %s5784 = smul.addr %s5783, 4
        %s5785 = scalar_lea.vmem %s6, %s5784
        // Predicated region
        $region53: #{tpu_custom_call.1} parent=39 // pred_check
          %p5786 = pneg %p153
        $region54: #{tpu_custom_call.1} parent=39 // pred_check_branch
          %5788 = sbr.rel (%p5786) target = $region56
        $region55: #{tpu_custom_call.1} parent=39 // pred_region
          %s5790 = ssub.s32 2048, 2048
          %5791 = vsyncadd %s5777, %s5790
          %s5792 = smul.addr %s25, 32
          %s5793 = smul.addr %s5792, 64
          %s5794 = scalar_lea.hbm %s5, %s5793
          %s5795 = sshll.u32 %s5780, 4
          %s5796 = int_to_ptr.vmem [resolvable:$true] %s5795
          %5801 = dma.vmem_to_hbm [thread:$0]  %s5796, 2048, %s5794, %s5777, 128, 128, 8
        $region56: #{tpu_custom_call.1} parent=39 // pred_fallthru
          _
        // Predicated region
        $region57: #{tpu_custom_call.1} parent=39 // pred_check
          %p5802 = pneg %p179
        $region58: #{tpu_custom_call.1} parent=39 // pred_check_branch
          %5804 = sbr.rel (%p5802) target = $region60
        $region59: #{tpu_custom_call.1} parent=39 // pred_region
          _
        $region60: #{tpu_custom_call.1} parent=39 // pred_fallthru
          _
      $region40: #{tpu_custom_call.1} parent=5 // pred_fallthru
        _
      %p5805 = scmp.le.s32.totalorder 2, %s20
      // Predicated region
      $region61: #{tpu_custom_call.1} parent=5 // pred_check
        %p5806 = pneg %p5805
      $region62: #{tpu_custom_call.1} parent=5 // pred_check_branch
        %5808 = sbr.rel (%p5806) target = $region64
      $region63: #{tpu_custom_call.1} parent=5 // pred_region
        %s5809 = ssub.s32 %s20, 2
        // Predicated region
        $region65: #{tpu_custom_call.1} parent=63 // pred_check
          %p5810 = pneg %p159
        $region66: #{tpu_custom_call.1} parent=63 // pred_check_branch
          %5812 = sbr.rel (%p5810) target = $region68
        $region67: #{tpu_custom_call.1} parent=63 // pred_region
          %s5813 = sand.u32 %s144, 1
          %s5814 = scalar_lea.sflag [#allocation4], %s5813
          %s5815 = sand.u32 %s144, 1
          %s5816 = smul.addr %s5815, 128
          %s5817 = scalar_lea.vmem [#allocation8], %s5816
          %5818 = dma.done %s5814, 2048
        $region68: #{tpu_custom_call.1} parent=63 // pred_fallthru
          _
        // Predicated region
        $region69: #{tpu_custom_call.1} parent=63 // pred_check
          %p5819 = pneg %p185
        $region70: #{tpu_custom_call.1} parent=63 // pred_check_branch
          %5821 = sbr.rel (%p5819) target = $region72
        $region71: #{tpu_custom_call.1} parent=63 // pred_region
          %p5822 = scmp.lt.s32.totalorder %s26, 1
          %s5823 = scalar_select %p5822, %s26, 1
          %s5824 = smul.addr %s5823, 128
          %s5825 = smul.addr %s5824, 4
          %s5826 = scalar_lea.vmem %s6, %s5825
        $region72: #{tpu_custom_call.1} parent=63 // pred_fallthru
          _
      $region64: #{tpu_custom_call.1} parent=5 // pred_fallthru
        _
    $region6: #{tpu_custom_call.1} parent=1 // loop_footer
      %s24 = sadd.s32 1, %s20
    $region7: #{tpu_custom_call.1} parent=1 // loop_footer_branch
      %19 = sbr.rel target = $region3
    $region8: #{tpu_custom_call.1} parent=1 // loop_exit
      _
    %5827 = vsyncpa [#allocation3], 1
    %s5828 = scalar_lea.sflag [#allocation3], 1
    %5829 = vsyncpa %s5828, 1
    %5830 = vsyncpa [#allocation6], 1
    %5831 = vsyncpa [#allocation4], 1
    %s5832 = scalar_lea.sflag [#allocation4], 1
    %5833 = vsyncpa %s5832, 1

</llo_original>
